<compile_context>
chip_gen: v7x
topology: tpu7x:2x2x1
jax: 0.10.0
libtpu: 0.0.40
codegen_flags: <defaults>
</compile_context>

<pallas_src>
import functools

import jax
import jax.numpy as jnp
from jax.experimental import pallas as pl
from jax.experimental.pallas import tpu as pltpu


def _round_up(x, m):
    return (x + m - 1) // m * m


def _cdiv(a, b):
    return (a + b - 1) // b


def _pick_nk_tile(dim):
    """Prefer 256-wide N/K tiles (matches v6e/v7x 256x256 MXU) unless the extra
    zero padding would exceed ~12.5%; 128 otherwise (optimal for v5e)."""
    if dim >= 256 and _round_up(dim, 256) - dim <= dim // 8:
        return 256
    return 128


# ----------------------------------------------------------------------------
# Tiled matmul kernel: (M,K) @ (K,N) + bias, fused pre/post ReLU, bf16 out
# ----------------------------------------------------------------------------
def _matmul_kernel(a_ref, b_ref, bias_ref, o_ref, acc_ref, *, pre_relu, post_relu):
    @pl.when(pl.program_id(2) == 0)
    def _():
        acc_ref[...] = jnp.zeros_like(acc_ref)

    a = a_ref[...]
    if pre_relu:
        a = jnp.maximum(a, 0)
    acc_ref[...] += jnp.dot(a, b_ref[...], preferred_element_type=jnp.float32)

    @pl.when(pl.program_id(2) == pl.num_programs(2) - 1)
    def _():
        out = acc_ref[...] + bias_ref[...]          # (1, tn) broadcast over rows
        if post_relu:
            out = jnp.maximum(out, 0.0)
        o_ref[...] = out.astype(o_ref.dtype)


def pallas_matmul(a, b, bias=None, *, pre_relu=False, post_relu=False,
                  out_dtype=jnp.bfloat16, tm_max=512):
    """a:(M,K) @ b:(K,N) + bias -> (M,N) in out_dtype.

    MXU operands are bf16 (no-op cast if already bf16), accumulation and the
    bias/ReLU epilogue stay f32.
    """
    M, K = a.shape
    K2, N = b.shape
    assert K == K2
    tn = _pick_nk_tile(N)
    tk = _pick_nk_tile(K)
    n_m = _cdiv(M, tm_max)
    tm = _round_up(_cdiv(M, n_m), 16)               # 16-row granularity (bf16 A)
    Mp, Kp, Np = tm * n_m, _round_up(K, tk), _round_up(N, tn)

    def pad2(x, r, c):
        if x.shape == (r, c):
            return x
        return jnp.pad(x, ((0, r - x.shape[0]), (0, c - x.shape[1])))

    a_p = pad2(a.astype(jnp.bfloat16), Mp, Kp)
    b_p = pad2(b.astype(jnp.bfloat16), Kp, Np)
    bias_vec = (jnp.zeros((N,), jnp.float32) if bias is None
                else bias.astype(jnp.float32).reshape(N))
    bias_p = jnp.pad(bias_vec, (0, Np - N)).reshape(1, Np)

    kern = functools.partial(_matmul_kernel, pre_relu=pre_relu, post_relu=post_relu)
    out_p = pl.pallas_call(
        kern,
        out_shape=jax.ShapeDtypeStruct((Mp, Np), out_dtype),
        grid=(Mp // tm, Np // tn, Kp // tk),
        in_specs=[pl.BlockSpec((tm, tk), lambda i, j, k: (i, k)),
                  pl.BlockSpec((tk, tn), lambda i, j, k: (k, j)),
                  pl.BlockSpec((1, tn), lambda i, j, k: (0, j))],
        out_specs=pl.BlockSpec((tm, tn), lambda i, j, k: (i, j)),
        scratch_shapes=[pltpu.VMEM((tm, tn), jnp.float32)],
        compiler_params=pltpu.CompilerParams(
            dimension_semantics=("parallel", "parallel", "arbitrary"),
            vmem_limit_bytes=32 * 1024 * 1024),
    )(a_p, b_p, bias_p)
    if (Mp, Np) == (M, N):
        return out_p
    return out_p[:M, :N]


# ----------------------------------------------------------------------------
# Vector quantizer kernel: tiled over M, codebook (+ its transpose, + e_sq)
# resident; per-parallel-slice partial SSE / counts for megacore.
# ----------------------------------------------------------------------------
def _vq_kernel(z_ref, e_ref, et_ref, esq_ref, zq_ref, sse_ref, cnt_ref,
               sse_acc, cnt_acc, *, n_emb, m_total, tm):
    p = pl.program_id(0)
    t = pl.program_id(1)
    tiles_per_slice = pl.num_programs(1)

    @pl.when(t == 0)
    def _():
        sse_acc[...] = jnp.zeros_like(sse_acc)
        cnt_acc[...] = jnp.zeros_like(cnt_acc)

    z_bf = z_ref[...]                                   # (tm, Dp) bf16
    z = z_bf.astype(jnp.float32)
    z_sq = jnp.sum(z * z, axis=1, keepdims=True)        # (tm, 1) f32

    # bf16 MXU cross term against the pre-transposed codebook (no in-kernel
    # transpose); e_sq is precomputed in the wrapper (no per-tile reduction).
    cross = jnp.dot(z_bf, et_ref[...], preferred_element_type=jnp.float32)
    dist = z_sq + esq_ref[...] - 2.0 * cross            # (tm, n_emb_p) f32

    col = jax.lax.broadcasted_iota(jnp.int32, dist.shape, 1)
    dist = jnp.where(col < n_emb, dist, 1e30)           # mask padded codes

    # first-minimal-index argmin (matches torch.argmin tie-breaking)
    dmin = jnp.min(dist, axis=1, keepdims=True)
    idx = jnp.min(jnp.where(dist == dmin, col, jnp.int32(dist.shape[1])),
                  axis=1, keepdims=True)                 # (tm, 1)

    # mask rows past the real M (they are zero-padded z rows)
    row = (p * tiles_per_slice + t) * tm + \
        jax.lax.broadcasted_iota(jnp.int32, (tm, 1), 0)
    valid = (row < m_total).astype(jnp.float32)          # (tm, 1)
    onehot = jnp.where(col == idx, 1.0, 0.0) * valid     # (tm, n_emb_p)

    zq = jnp.dot(onehot.astype(jnp.bfloat16), e_ref[...],
                 preferred_element_type=jnp.float32)      # (tm, Dp) f32
    zq_ref[...] = zq.astype(zq_ref.dtype)                 # straight-through fwd value

    diff = zq - z                                         # padded rows/cols are 0
    sse_acc[...] += jnp.sum(diff * diff, keepdims=True)
    cnt_acc[...] += jnp.sum(onehot, axis=0, keepdims=True)

    @pl.when(t == tiles_per_slice - 1)
    def _():
        sse_ref[...] = jnp.broadcast_to(sse_acc[...], sse_ref.shape)
        cnt_ref[...] = jnp.broadcast_to(cnt_acc[...], cnt_ref.shape)


def vector_quantize(z_nhwc, emb, beta, tm_max=1024):
    N, H, W, D = z_nhwc.shape
    M = N * H * W
    n_emb = emb.shape[0]
    Dp = _round_up(D, 128)
    n_emb_p = _round_up(n_emb, 128)

    n_tiles = _cdiv(M, tm_max)
    tm = _round_up(_cdiv(M, n_tiles), 16)
    Mp = tm * n_tiles
    # Megacore: split M tiles over a leading "parallel" axis when possible
    # (2x on v7x's two TensorCores; identical results on single-TC v5e/v6e).
    P = 2 if n_tiles % 2 == 0 else 1
    T = n_tiles // P

    z_p = z_nhwc.reshape(M, D).astype(jnp.bfloat16)
    if (Mp, Dp) != (M, D):
        z_p = jnp.pad(z_p, ((0, Mp - M), (0, Dp - D)))
    e_f32 = emb.astype(jnp.float32)
    e_p = jnp.pad(e_f32, ((0, n_emb_p - n_emb), (0, Dp - D))).astype(jnp.bfloat16)
    et_p = e_p.T                                           # (Dp, n_emb_p) bf16
    esq_p = jnp.pad(jnp.sum(e_f32 * e_f32, axis=1),
                    (0, n_emb_p - n_emb)).reshape(1, n_emb_p)

    kern = functools.partial(_vq_kernel, n_emb=n_emb, m_total=M, tm=tm)
    zq_p, sse_out, cnt_out = pl.pallas_call(
        kern,
        out_shape=(jax.ShapeDtypeStruct((Mp, Dp), jnp.bfloat16),
                   jax.ShapeDtypeStruct((8 * P, 128), jnp.float32),
                   jax.ShapeDtypeStruct((8 * P, n_emb_p), jnp.float32)),
        grid=(P, T),
        in_specs=[pl.BlockSpec((tm, Dp), lambda p, t: (p * T + t, 0)),
                  pl.BlockSpec((n_emb_p, Dp), lambda p, t: (0, 0)),
                  pl.BlockSpec((Dp, n_emb_p), lambda p, t: (0, 0)),
                  pl.BlockSpec((1, n_emb_p), lambda p, t: (0, 0))],
        out_specs=(pl.BlockSpec((tm, Dp), lambda p, t: (p * T + t, 0)),
                   pl.BlockSpec((8, 128), lambda p, t: (p, 0)),
                   pl.BlockSpec((8, n_emb_p), lambda p, t: (p, 0))),
        scratch_shapes=[pltpu.VMEM((1, 1), jnp.float32),
                        pltpu.VMEM((1, n_emb_p), jnp.float32)],
        compiler_params=pltpu.CompilerParams(
            dimension_semantics=("parallel", "arbitrary"),
            vmem_limit_bytes=32 * 1024 * 1024),
    )(z_p, e_p, et_p, esq_p)

    zq = zq_p[:M, :D].reshape(N, H, W, D)
    sse = jnp.sum(sse_out[::8, 0])                                   # per-slice partials
    counts = jnp.sum(cnt_out.reshape(P, 8, n_emb_p)[:, 0, :n_emb], axis=0)
    # forward value of mean((zq.detach()-z)^2) + beta*mean((zq-z.detach())^2)
    loss = (1.0 + beta) * sse / (M * D)
    e_mean = counts / M
    perplexity = jnp.exp(-jnp.sum(e_mean * jnp.log(e_mean + 1e-10)))
    return zq, loss, perplexity


# ----------------------------------------------------------------------------
# Conv glue (bf16 im2col / fused sub-pixel transposed conv) -> Pallas matmul
# ----------------------------------------------------------------------------
def _im2col(x, kh, kw, stride, pad):
    N, H, W, C = x.shape
    xp = jnp.pad(x, ((0, 0), (pad, pad), (pad, pad), (0, 0)))
    OH = (H + 2 * pad - kh) // stride + 1
    OW = (W + 2 * pad - kw) // stride + 1
    cols = []
    for i in range(kh):
        for j in range(kw):
            cols.append(xp[:, i:i + (OH - 1) * stride + 1:stride,
                           j:j + (OW - 1) * stride + 1:stride, :])
    patches = jnp.stack(cols, axis=3)                 # (N, OH, OW, kh*kw, C)
    return patches.reshape(N * OH * OW, kh * kw * C), OH, OW


def conv2d(x, w_oihw, b, stride, pad, pre_relu=False, post_relu=False,
           out_dtype=jnp.bfloat16):
    O, C, kh, kw = w_oihw.shape
    A, OH, OW = _im2col(x.astype(jnp.bfloat16), kh, kw, stride, pad)
    Wm = jnp.transpose(w_oihw, (2, 3, 1, 0)).reshape(kh * kw * C, O)
    out = pallas_matmul(A, Wm, b, pre_relu=pre_relu, post_relu=post_relu,
                        out_dtype=out_dtype)
    return out.reshape(x.shape[0], OH, OW, O)


def _zero_insert(x, s):
    if s == 1:
        return x
    N, H, W, C = x.shape
    out = jnp.zeros((N, (H - 1) * s + 1, (W - 1) * s + 1, C), x.dtype)
    return out.at[:, ::s, ::s, :].set(x)


def conv_transpose2d(x, w_iokk, b, stride, pad, pre_relu=False,
                     out_dtype=jnp.bfloat16):
    """PyTorch ConvTranspose2d, weight layout (Cin, Cout, kh, kw)."""
    Ci, Co, kh, kw = w_iokk.shape
    # equivalent direct conv: swap in/out channels and flip spatially
    w_conv = jnp.flip(jnp.transpose(w_iokk, (1, 0, 2, 3)), axis=(2, 3))

    if stride == 1:
        return conv2d(x, w_conv, b, stride=1, pad=kh - 1 - pad,
                      pre_relu=pre_relu, out_dtype=out_dtype)

    if not (stride == 2 and kh == 4 and kw == 4 and pad == 1):
        # generic (slower) fallback: zero-insertion + flipped conv
        x_up = _zero_insert(x, stride)
        return conv2d(x_up, w_conv, b, stride=1, pad=kh - 1 - pad,
                      pre_relu=pre_relu, out_dtype=out_dtype)

    # Fused sub-pixel decomposition for stride 2, k=4, p=1:
    #   out[2m+ph, 2n+pw] uses input rows (m-1,m) if ph==0 else (m,m+1) (same
    #   in W), so ONE shared 3x3 stride-1 im2col (pad=1) covers all 4 parity
    #   classes.  Each parity's 2x2 taps are embedded (with zeros) into a 3x3
    #   weight and the 4 blocks are concatenated along N -> a single matmul
    #   with N = 4*Co, finished by one depth-to-space reshape.
    tapmap = {0: {0: 0, 1: 2}, 1: {1: 1, 2: 3}}        # parity -> {3x3 pos: flipped tap}
    blocks = []
    for ph in (0, 1):
        for pw in (0, 1):
            w3 = jnp.zeros((Co, Ci, 3, 3), w_conv.dtype)
            for rh, th in tapmap[ph].items():
                for rw, tw in tapmap[pw].items():
                    w3 = w3.at[:, :, rh, rw].set(w_conv[:, :, th, tw])
            blocks.append(w3)
    w_big = jnp.concatenate(blocks, axis=0)            # (4*Co, Ci, 3, 3)
    b_big = None if b is None else jnp.tile(b.reshape(-1), 4)

    y = conv2d(x, w_big, b_big, stride=1, pad=1, pre_relu=pre_relu,
               out_dtype=out_dtype)                    # (N, H, W, 4*Co)
    N, H, W, _ = x.shape
    y = y.reshape(N, H, W, 2, 2, Co)
    y = jnp.transpose(y, (0, 1, 3, 2, 4, 5)).reshape(N, 2 * H, 2 * W, Co)
    return y


def resblock(x, w1, w2):
    r = conv2d(x, w1, None, stride=1, pad=1, pre_relu=True)   # ReLU -> 3x3 conv
    r = conv2d(r, w2, None, stride=1, pad=0, pre_relu=True)   # ReLU -> 1x1 conv
    return r + x


# ----------------------------------------------------------------------------
# Full VQ-VAE forward
# ----------------------------------------------------------------------------
def vq_vae_forward(x_nchw, p, beta=0.25):
    x = jnp.transpose(x_nchw, (0, 2, 3, 1))                   # NCHW -> NHWC

    # Encoder
    h = conv2d(x, p['e1_w'], p['e1_b'], stride=2, pad=1, post_relu=True)
    h = conv2d(h, p['e2_w'], p['e2_b'], stride=2, pad=1, post_relu=True)
    h = conv2d(h, p['e3_w'], p['e3_b'], stride=1, pad=1)
    h = resblock(h, p['er1_w1'], p['er1_w2'])
    h = resblock(h, p['er2_w1'], p['er2_w2'])
    # encoder's trailing ReLU fused as pre_relu of the downsample conv
    z = conv2d(h, p['ds_w'], p['ds_b'], stride=1, pad=0, pre_relu=True)

    # Vector quantizer
    zq, emb_loss, _perplexity = vector_quantize(z, p['emb'], beta)

    # Upsample + Decoder
    h = conv_transpose2d(zq, p['up_w'], p['up_b'], stride=1, pad=1)
    h = resblock(h, p['dr1_w1'], p['dr1_w2'])
    h = resblock(h, p['dr2_w1'], p['dr2_w2'])
    h = conv_transpose2d(h, p['dc1_w'], p['dc1_b'], stride=2, pad=1, pre_relu=True)
    xr = conv_transpose2d(h, p['dc2_w'], p['dc2_b'], stride=2, pad=1, pre_relu=True)

    return jnp.transpose(xr, (0, 3, 1, 2)).astype(jnp.float32), emb_loss


# ----------------------------------------------------------------------------
# Deterministic parameter init (shapes follow the module's __init__)
# ----------------------------------------------------------------------------
def init_params(key, n_channels, h_dim, res_dim, n_emb, emb_dim):
    keys = iter(jax.random.split(key, 32))

    def w(shape, scale=0.1):
        return scale * jax.random.normal(next(keys), shape, jnp.float32)

    def b(n):
        return 0.01 * jax.random.normal(next(keys), (n,), jnp.float32)

    h2 = h_dim // 2
    p = {
        # Encoder
        'e1_w': w((h2, n_channels, 4, 4)), 'e1_b': b(h2),
        'e2_w': w((h_dim, h2, 4, 4)),      'e2_b': b(h_dim),
        'e3_w': w((h_dim, h_dim, 3, 3)),   'e3_b': b(h_dim),
        'er1_w1': w((res_dim, h_dim, 3, 3)), 'er1_w2': w((h_dim, res_dim, 1, 1)),
        'er2_w1': w((res_dim, h_dim, 3, 3)), 'er2_w2': w((h_dim, res_dim, 1, 1)),
        # Downsample 1x1 conv
        'ds_w': w((emb_dim, h_dim, 1, 1)), 'ds_b': b(emb_dim),
        # Codebook: uniform(-1/n_emb, 1/n_emb)
        'emb': jax.random.uniform(next(keys), (n_emb, emb_dim), jnp.float32,
                                  minval=-1.0 / n_emb, maxval=1.0 / n_emb),
        # Upsample (ConvTranspose weight layout: (in, out, kh, kw))
        'up_w': w((emb_dim, h_dim, 3, 3)), 'up_b': b(h_dim),
        # Decoder
        'dr1_w1': w((res_dim, h_dim, 3, 3)), 'dr1_w2': w((h_dim, res_dim, 1, 1)),
        'dr2_w1': w((res_dim, h_dim, 3, 3)), 'dr2_w2': w((h_dim, res_dim, 1, 1)),
        'dc1_w': w((h_dim, h2, 4, 4)),         'dc1_b': b(h2),
        'dc2_w': w((h2, n_channels, 4, 4)),    'dc2_b': b(n_channels),
    }
    return p


if __name__ == "__main__":
    # Small, module-consistent hyper-parameters
    n_channels, h_dim, res_dim = 3, 32, 16
    n_emb, emb_dim, beta = 64, 16, 0.25

    key = jax.random.PRNGKey(0)
    kp, kx = jax.random.split(key)
    params = init_params(kp, n_channels, h_dim, res_dim, n_emb, emb_dim)
    x = jax.random.normal(kx, (2, n_channels, 16, 16), jnp.float32)  # NCHW input

    fwd = jax.jit(functools.partial(vq_vae_forward, beta=beta))
    recon_x, emb_loss = fwd(x, params)
    jax.block_until_ready((recon_x, emb_loss))

    assert recon_x.shape == x.shape, recon_x.shape
    assert emb_loss.shape == (), emb_loss.shape
    print("KERNEL_OK")
</pallas_src>

<mosaic_0001>
module attributes {stable_mosaic.version = 11 : i64} {
  func.func @_matmul_kernel(%arg0: i32, %arg1: i32, %arg2: i32, %arg3: memref<128x128xbf16, #tpu.memory_space<vmem>>, %arg4: memref<128x128xbf16, #tpu.memory_space<vmem>>, %arg5: memref<1x128xf32, #tpu.memory_space<vmem>>, %arg6: memref<128x128xbf16, #tpu.memory_space<vmem>>, %arg7: memref<128x128xf32, #tpu.memory_space<vmem>>) attributes {dimension_semantics = [#tpu.dimension_semantics<parallel>, #tpu.dimension_semantics<parallel>, #tpu.dimension_semantics<arbitrary>], iteration_bounds = array<i64: 1, 1, 1>, scalar_prefetch = 0 : i64, scratch_operands = 1 : i64, tpu.core_type = #tpu.core_type<tc>, window_params = [{transform_indices = @transform_0, window_bounds = array<i64: 128, 128>}, {transform_indices = @transform_1, window_bounds = array<i64: 128, 128>}, {transform_indices = @transform_2, window_bounds = array<i64: 1, 128>}, {transform_indices = @transform_3, window_bounds = array<i64: 128, 128>}]} {
    %c0_i32 = arith.constant 0 : i32
    %0 = arith.cmpi eq, %arg2, %c0_i32 : i32
    %1 = arith.extui %0 : i1 to i32
    %c0_i32_0 = arith.constant 0 : i32
    %2 = arith.cmpi ne, %1, %c0_i32_0 : i32
    scf.if %2 {
      %cst_10 = arith.constant 0.000000e+00 : f32
      %12 = vector.broadcast %cst_10 : f32 to vector<128x128xf32>
      %c0_11 = arith.constant 0 : index
      %c0_12 = arith.constant 0 : index
      %13 = vector.load %arg7[%c0_11, %c0_12] : memref<128x128xf32, #tpu.memory_space<vmem>>, vector<128x128xf32>
      tpu.vector_store %arg7[%c0_11, %c0_12], %12 {strides = array<i32>} : memref<128x128xf32, #tpu.memory_space<vmem>>, vector<128x128xf32>,
    } else {
    }
    %c0 = arith.constant 0 : index
    %c0_1 = arith.constant 0 : index
    %3 = vector.load %arg3[%c0, %c0_1] : memref<128x128xbf16, #tpu.memory_space<vmem>>, vector<128x128xbf16>
    %c0_2 = arith.constant 0 : index
    %c0_3 = arith.constant 0 : index
    %4 = vector.load %arg7[%c0_2, %c0_3] : memref<128x128xf32, #tpu.memory_space<vmem>>, vector<128x128xf32>
    %c0_4 = arith.constant 0 : index
    %c0_5 = arith.constant 0 : index
    %5 = vector.load %arg4[%c0_4, %c0_5] : memref<128x128xbf16, #tpu.memory_space<vmem>>, vector<128x128xbf16>
    %cst = arith.constant dense<0.000000e+00> : vector<128x128xf32>
    %6 = tpu.matmul %3, %5, %cst {dimension_numbers = #tpu.dot_dimension_numbers<[1], [0], [0], [1], [0, 0, 1, 1], [], []>} : vector<128x128xbf16>, vector<128x128xbf16>, vector<128x128xf32> -> vector<128x128xf32>
    %7 = arith.addf %4, %6 : vector<128x128xf32>
    %c0_6 = arith.constant 0 : index
    %c0_7 = arith.constant 0 : index
    %8 = vector.load %arg7[%c0_6, %c0_7] : memref<128x128xf32, #tpu.memory_space<vmem>>, vector<128x128xf32>
    tpu.vector_store %arg7[%c0_6, %c0_7], %7 {strides = array<i32>} : memref<128x128xf32, #tpu.memory_space<vmem>>, vector<128x128xf32>,
    %c0_i32_8 = arith.constant 0 : i32
    %9 = arith.cmpi eq, %arg2, %c0_i32_8 : i32
    %10 = arith.extui %9 : i1 to i32
    %c0_i32_9 = arith.constant 0 : i32
    %11 = arith.cmpi ne, %10, %c0_i32_9 : i32
    scf.if %11 {
      %c0_10 = arith.constant 0 : index
      %c0_11 = arith.constant 0 : index
      %12 = vector.load %arg7[%c0_10, %c0_11] : memref<128x128xf32, #tpu.memory_space<vmem>>, vector<128x128xf32>
      %c0_12 = arith.constant 0 : index
      %c0_13 = arith.constant 0 : index
      %13 = vector.load %arg5[%c0_12, %c0_13] : memref<1x128xf32, #tpu.memory_space<vmem>>, vector<1x128xf32>
      %14 = vector.broadcast %13 : vector<1x128xf32> to vector<128x128xf32>
      %15 = arith.addf %12, %14 : vector<128x128xf32>
      %cst_14 = arith.constant 0.000000e+00 : f32
      %16 = vector.broadcast %cst_14 : f32 to vector<128x128xf32>
      %17 = arith.maximumf %15, %16 : vector<128x128xf32>
      %18 = arith.truncf %17 : vector<128x128xf32> to vector<128x128xbf16>
      %c0_15 = arith.constant 0 : index
      %c0_16 = arith.constant 0 : index
      %19 = vector.load %arg6[%c0_15, %c0_16] : memref<128x128xbf16, #tpu.memory_space<vmem>>, vector<128x128xbf16>
      tpu.vector_store %arg6[%c0_15, %c0_16], %18 {strides = array<i32>} : memref<128x128xbf16, #tpu.memory_space<vmem>>, vector<128x128xbf16>,
    } else {
    }
    return
  }
  func.func @transform_0(%arg0: i32, %arg1: i32, %arg2: i32) -> (i32, i32) {
    %c0_i32 = arith.constant 0 : i32
    return %arg0, %arg2 : i32, i32
  }
  func.func @transform_1(%arg0: i32, %arg1: i32, %arg2: i32) -> (i32, i32) {
    %c0_i32 = arith.constant 0 : i32
    return %arg2, %arg1 : i32, i32
  }
  func.func @transform_2(%arg0: i32, %arg1: i32, %arg2: i32) -> (i32, i32) {
    %c0_i32 = arith.constant 0 : i32
    %c0_i32_0 = arith.constant 0 : i32
    return %c0_i32, %arg1 : i32, i32
  }
  func.func @transform_3(%arg0: i32, %arg1: i32, %arg2: i32) -> (i32, i32) {
    %c0_i32 = arith.constant 0 : i32
    return %arg0, %arg1 : i32, i32
  }
}

module attributes {stable_mosaic.version = 11 : i64} {
  func.func @_matmul_kernel(%arg0: i32, %arg1: i32, %arg2: i32, %arg3: memref<32x256xbf16, #tpu.memory_space<vmem>>, %arg4: memref<256x128xbf16, #tpu.memory_space<vmem>>, %arg5: memref<1x128xf32, #tpu.memory_space<vmem>>, %arg6: memref<32x128xbf16, #tpu.memory_space<vmem>>, %arg7: memref<32x128xf32, #tpu.memory_space<vmem>>) attributes {dimension_semantics = [#tpu.dimension_semantics<parallel>, #tpu.dimension_semantics<parallel>, #tpu.dimension_semantics<arbitrary>], iteration_bounds = array<i64: 1, 1, 1>, scalar_prefetch = 0 : i64, scratch_operands = 1 : i64, tpu.core_type = #tpu.core_type<tc>, window_params = [{transform_indices = @transform_0, window_bounds = array<i64: 32, 256>}, {transform_indices = @transform_1, window_bounds = array<i64: 256, 128>}, {transform_indices = @transform_2, window_bounds = array<i64: 1, 128>}, {transform_indices = @transform_3, window_bounds = array<i64: 32, 128>}]} {
    %c0_i32 = arith.constant 0 : i32
    %0 = arith.cmpi eq, %arg2, %c0_i32 : i32
    %1 = arith.extui %0 : i1 to i32
    %c0_i32_0 = arith.constant 0 : i32
    %2 = arith.cmpi ne, %1, %c0_i32_0 : i32
    scf.if %2 {
      %cst_10 = arith.constant 0.000000e+00 : f32
      %12 = vector.broadcast %cst_10 : f32 to vector<32x128xf32>
      %c0_11 = arith.constant 0 : index
      %c0_12 = arith.constant 0 : index
      %13 = vector.load %arg7[%c0_11, %c0_12] : memref<32x128xf32, #tpu.memory_space<vmem>>, vector<32x128xf32>
      tpu.vector_store %arg7[%c0_11, %c0_12], %12 {strides = array<i32>} : memref<32x128xf32, #tpu.memory_space<vmem>>, vector<32x128xf32>,
    } else {
    }
    %c0 = arith.constant 0 : index
    %c0_1 = arith.constant 0 : index
    %3 = vector.load %arg3[%c0, %c0_1] : memref<32x256xbf16, #tpu.memory_space<vmem>>, vector<32x256xbf16>
    %c0_2 = arith.constant 0 : index
    %c0_3 = arith.constant 0 : index
    %4 = vector.load %arg7[%c0_2, %c0_3] : memref<32x128xf32, #tpu.memory_space<vmem>>, vector<32x128xf32>
    %c0_4 = arith.constant 0 : index
    %c0_5 = arith.constant 0 : index
    %5 = vector.load %arg4[%c0_4, %c0_5] : memref<256x128xbf16, #tpu.memory_space<vmem>>, vector<256x128xbf16>
    %cst = arith.constant dense<0.000000e+00> : vector<32x128xf32>
    %6 = tpu.matmul %3, %5, %cst {dimension_numbers = #tpu.dot_dimension_numbers<[1], [0], [0], [1], [0, 0, 1, 1], [], []>} : vector<32x256xbf16>, vector<256x128xbf16>, vector<32x128xf32> -> vector<32x128xf32>
    %7 = arith.addf %4, %6 : vector<32x128xf32>
    %c0_6 = arith.constant 0 : index
    %c0_7 = arith.constant 0 : index
    %8 = vector.load %arg7[%c0_6, %c0_7] : memref<32x128xf32, #tpu.memory_space<vmem>>, vector<32x128xf32>
    tpu.vector_store %arg7[%c0_6, %c0_7], %7 {strides = array<i32>} : memref<32x128xf32, #tpu.memory_space<vmem>>, vector<32x128xf32>,
    %c0_i32_8 = arith.constant 0 : i32
    %9 = arith.cmpi eq, %arg2, %c0_i32_8 : i32
    %10 = arith.extui %9 : i1 to i32
    %c0_i32_9 = arith.constant 0 : i32
    %11 = arith.cmpi ne, %10, %c0_i32_9 : i32
    scf.if %11 {
      %c0_10 = arith.constant 0 : index
      %c0_11 = arith.constant 0 : index
      %12 = vector.load %arg7[%c0_10, %c0_11] : memref<32x128xf32, #tpu.memory_space<vmem>>, vector<32x128xf32>
      %c0_12 = arith.constant 0 : index
      %c0_13 = arith.constant 0 : index
      %13 = vector.load %arg5[%c0_12, %c0_13] : memref<1x128xf32, #tpu.memory_space<vmem>>, vector<1x128xf32>
      %14 = vector.broadcast %13 : vector<1x128xf32> to vector<32x128xf32>
      %15 = arith.addf %12, %14 : vector<32x128xf32>
      %cst_14 = arith.constant 0.000000e+00 : f32
      %16 = vector.broadcast %cst_14 : f32 to vector<32x128xf32>
      %17 = arith.maximumf %15, %16 : vector<32x128xf32>
      %18 = arith.truncf %17 : vector<32x128xf32> to vector<32x128xbf16>
      %c0_15 = arith.constant 0 : index
      %c0_16 = arith.constant 0 : index
      %19 = vector.load %arg6[%c0_15, %c0_16] : memref<32x128xbf16, #tpu.memory_space<vmem>>, vector<32x128xbf16>
      tpu.vector_store %arg6[%c0_15, %c0_16], %18 {strides = array<i32>} : memref<32x128xbf16, #tpu.memory_space<vmem>>, vector<32x128xbf16>,
    } else {
    }
    return
  }
  func.func @transform_0(%arg0: i32, %arg1: i32, %arg2: i32) -> (i32, i32) {
    %c0_i32 = arith.constant 0 : i32
    return %arg0, %arg2 : i32, i32
  }
  func.func @transform_1(%arg0: i32, %arg1: i32, %arg2: i32) -> (i32, i32) {
    %c0_i32 = arith.constant 0 : i32
    return %arg2, %arg1 : i32, i32
  }
  func.func @transform_2(%arg0: i32, %arg1: i32, %arg2: i32) -> (i32, i32) {
    %c0_i32 = arith.constant 0 : i32
    %c0_i32_0 = arith.constant 0 : i32
    return %c0_i32, %arg1 : i32, i32
  }
  func.func @transform_3(%arg0: i32, %arg1: i32, %arg2: i32) -> (i32, i32) {
    %c0_i32 = arith.constant 0 : i32
    return %arg0, %arg1 : i32, i32
  }
}

module attributes {stable_mosaic.version = 11 : i64} {
  func.func @_matmul_kernel(%arg0: i32, %arg1: i32, %arg2: i32, %arg3: memref<32x128xbf16, #tpu.memory_space<vmem>>, %arg4: memref<128x128xbf16, #tpu.memory_space<vmem>>, %arg5: memref<1x128xf32, #tpu.memory_space<vmem>>, %arg6: memref<32x128xbf16, #tpu.memory_space<vmem>>, %arg7: memref<32x128xf32, #tpu.memory_space<vmem>>) attributes {dimension_semantics = [#tpu.dimension_semantics<parallel>, #tpu.dimension_semantics<parallel>, #tpu.dimension_semantics<arbitrary>], iteration_bounds = array<i64: 1, 1, 3>, scalar_prefetch = 0 : i64, scratch_operands = 1 : i64, tpu.core_type = #tpu.core_type<tc>, window_params = [{transform_indices = @transform_0, window_bounds = array<i64: 32, 128>}, {transform_indices = @transform_1, window_bounds = array<i64: 128, 128>}, {transform_indices = @transform_2, window_bounds = array<i64: 1, 128>}, {transform_indices = @transform_3, window_bounds = array<i64: 32, 128>}]} {
    %c0_i32 = arith.constant 0 : i32
    %0 = arith.cmpi eq, %arg2, %c0_i32 : i32
    %1 = arith.extui %0 : i1 to i32
    %c0_i32_0 = arith.constant 0 : i32
    %2 = arith.cmpi ne, %1, %c0_i32_0 : i32
    scf.if %2 {
      %cst_9 = arith.constant 0.000000e+00 : f32
      %12 = vector.broadcast %cst_9 : f32 to vector<32x128xf32>
      %c0_10 = arith.constant 0 : index
      %c0_11 = arith.constant 0 : index
      %13 = vector.load %arg7[%c0_10, %c0_11] : memref<32x128xf32, #tpu.memory_space<vmem>>, vector<32x128xf32>
      tpu.vector_store %arg7[%c0_10, %c0_11], %12 {strides = array<i32>} : memref<32x128xf32, #tpu.memory_space<vmem>>, vector<32x128xf32>,
    } else {
    }
    %c0 = arith.constant 0 : index
    %c0_1 = arith.constant 0 : index
    %3 = vector.load %arg3[%c0, %c0_1] : memref<32x128xbf16, #tpu.memory_space<vmem>>, vector<32x128xbf16>
    %c0_2 = arith.constant 0 : index
    %c0_3 = arith.constant 0 : index
    %4 = vector.load %arg7[%c0_2, %c0_3] : memref<32x128xf32, #tpu.memory_space<vmem>>, vector<32x128xf32>
    %c0_4 = arith.constant 0 : index
    %c0_5 = arith.constant 0 : index
    %5 = vector.load %arg4[%c0_4, %c0_5] : memref<128x128xbf16, #tpu.memory_space<vmem>>, vector<128x128xbf16>
    %cst = arith.constant dense<0.000000e+00> : vector<32x128xf32>
    %6 = tpu.matmul %3, %5, %cst {dimension_numbers = #tpu.dot_dimension_numbers<[1], [0], [0], [1], [0, 0, 1, 1], [], []>} : vector<32x128xbf16>, vector<128x128xbf16>, vector<32x128xf32> -> vector<32x128xf32>
    %7 = arith.addf %4, %6 : vector<32x128xf32>
    %c0_6 = arith.constant 0 : index
    %c0_7 = arith.constant 0 : index
    %8 = vector.load %arg7[%c0_6, %c0_7] : memref<32x128xf32, #tpu.memory_space<vmem>>, vector<32x128xf32>
    tpu.vector_store %arg7[%c0_6, %c0_7], %7 {strides = array<i32>} : memref<32x128xf32, #tpu.memory_space<vmem>>, vector<32x128xf32>,
    %c2_i32 = arith.constant 2 : i32
    %9 = arith.cmpi eq, %arg2, %c2_i32 : i32
    %10 = arith.extui %9 : i1 to i32
    %c0_i32_8 = arith.constant 0 : i32
    %11 = arith.cmpi ne, %10, %c0_i32_8 : i32
    scf.if %11 {
      %c0_9 = arith.constant 0 : index
      %c0_10 = arith.constant 0 : index
      %12 = vector.load %arg7[%c0_9, %c0_10] : memref<32x128xf32, #tpu.memory_space<vmem>>, vector<32x128xf32>
      %c0_11 = arith.constant 0 : index
      %c0_12 = arith.constant 0 : index
      %13 = vector.load %arg5[%c0_11, %c0_12] : memref<1x128xf32, #tpu.memory_space<vmem>>, vector<1x128xf32>
      %14 = vector.broadcast %13 : vector<1x128xf32> to vector<32x128xf32>
      %15 = arith.addf %12, %14 : vector<32x128xf32>
      %16 = arith.truncf %15 : vector<32x128xf32> to vector<32x128xbf16>
      %c0_13 = arith.constant 0 : index
      %c0_14 = arith.constant 0 : index
      %17 = vector.load %arg6[%c0_13, %c0_14] : memref<32x128xbf16, #tpu.memory_space<vmem>>, vector<32x128xbf16>
      tpu.vector_store %arg6[%c0_13, %c0_14], %16 {strides = array<i32>} : memref<32x128xbf16, #tpu.memory_space<vmem>>, vector<32x128xbf16>,
    } else {
    }
    return
  }
  func.func @transform_0(%arg0: i32, %arg1: i32, %arg2: i32) -> (i32, i32) {
    %c0_i32 = arith.constant 0 : i32
    return %arg0, %arg2 : i32, i32
  }
  func.func @transform_1(%arg0: i32, %arg1: i32, %arg2: i32) -> (i32, i32) {
    %c0_i32 = arith.constant 0 : i32
    return %arg2, %arg1 : i32, i32
  }
  func.func @transform_2(%arg0: i32, %arg1: i32, %arg2: i32) -> (i32, i32) {
    %c0_i32 = arith.constant 0 : i32
    %c0_i32_0 = arith.constant 0 : i32
    return %c0_i32, %arg1 : i32, i32
  }
  func.func @transform_3(%arg0: i32, %arg1: i32, %arg2: i32) -> (i32, i32) {
    %c0_i32 = arith.constant 0 : i32
    return %arg0, %arg1 : i32, i32
  }
}

module attributes {stable_mosaic.version = 11 : i64} {
  func.func @_matmul_kernel(%arg0: i32, %arg1: i32, %arg2: i32, %arg3: memref<32x128xbf16, #tpu.memory_space<vmem>>, %arg4: memref<128x128xbf16, #tpu.memory_space<vmem>>, %arg5: memref<1x128xf32, #tpu.memory_space<vmem>>, %arg6: memref<32x128xbf16, #tpu.memory_space<vmem>>, %arg7: memref<32x128xf32, #tpu.memory_space<vmem>>) attributes {dimension_semantics = [#tpu.dimension_semantics<parallel>, #tpu.dimension_semantics<parallel>, #tpu.dimension_semantics<arbitrary>], iteration_bounds = array<i64: 1, 1, 1>, scalar_prefetch = 0 : i64, scratch_operands = 1 : i64, tpu.core_type = #tpu.core_type<tc>, window_params = [{transform_indices = @transform_0, window_bounds = array<i64: 32, 128>}, {transform_indices = @transform_1, window_bounds = array<i64: 128, 128>}, {transform_indices = @transform_2, window_bounds = array<i64: 1, 128>}, {transform_indices = @transform_3, window_bounds = array<i64: 32, 128>}]} {
    %c0_i32 = arith.constant 0 : i32
    %0 = arith.cmpi eq, %arg2, %c0_i32 : i32
    %1 = arith.extui %0 : i1 to i32
    %c0_i32_0 = arith.constant 0 : i32
    %2 = arith.cmpi ne, %1, %c0_i32_0 : i32
    scf.if %2 {
      %cst_11 = arith.constant 0.000000e+00 : f32
      %14 = vector.broadcast %cst_11 : f32 to vector<32x128xf32>
      %c0_12 = arith.constant 0 : index
      %c0_13 = arith.constant 0 : index
      %15 = vector.load %arg7[%c0_12, %c0_13] : memref<32x128xf32, #tpu.memory_space<vmem>>, vector<32x128xf32>
      tpu.vector_store %arg7[%c0_12, %c0_13], %14 {strides = array<i32>} : memref<32x128xf32, #tpu.memory_space<vmem>>, vector<32x128xf32>,
    } else {
    }
    %c0 = arith.constant 0 : index
    %c0_1 = arith.constant 0 : index
    %3 = vector.load %arg3[%c0, %c0_1] : memref<32x128xbf16, #tpu.memory_space<vmem>>, vector<32x128xbf16>
    %cst = arith.constant 0.000000e+00 : bf16
    %4 = vector.broadcast %cst : bf16 to vector<32x128xbf16>
    %5 = arith.maximumf %3, %4 : vector<32x128xbf16>
    %c0_2 = arith.constant 0 : index
    %c0_3 = arith.constant 0 : index
    %6 = vector.load %arg7[%c0_2, %c0_3] : memref<32x128xf32, #tpu.memory_space<vmem>>, vector<32x128xf32>
    %c0_4 = arith.constant 0 : index
    %c0_5 = arith.constant 0 : index
    %7 = vector.load %arg4[%c0_4, %c0_5] : memref<128x128xbf16, #tpu.memory_space<vmem>>, vector<128x128xbf16>
    %cst_6 = arith.constant dense<0.000000e+00> : vector<32x128xf32>
    %8 = tpu.matmul %5, %7, %cst_6 {dimension_numbers = #tpu.dot_dimension_numbers<[1], [0], [0], [1], [0, 0, 1, 1], [], []>} : vector<32x128xbf16>, vector<128x128xbf16>, vector<32x128xf32> -> vector<32x128xf32>
    %9 = arith.addf %6, %8 : vector<32x128xf32>
    %c0_7 = arith.constant 0 : index
    %c0_8 = arith.constant 0 : index
    %10 = vector.load %arg7[%c0_7, %c0_8] : memref<32x128xf32, #tpu.memory_space<vmem>>, vector<32x128xf32>
    tpu.vector_store %arg7[%c0_7, %c0_8], %9 {strides = array<i32>} : memref<32x128xf32, #tpu.memory_space<vmem>>, vector<32x128xf32>,
    %c0_i32_9 = arith.constant 0 : i32
    %11 = arith.cmpi eq, %arg2, %c0_i32_9 : i32
    %12 = arith.extui %11 : i1 to i32
    %c0_i32_10 = arith.constant 0 : i32
    %13 = arith.cmpi ne, %12, %c0_i32_10 : i32
    scf.if %13 {
      %c0_11 = arith.constant 0 : index
      %c0_12 = arith.constant 0 : index
      %14 = vector.load %arg7[%c0_11, %c0_12] : memref<32x128xf32, #tpu.memory_space<vmem>>, vector<32x128xf32>
      %c0_13 = arith.constant 0 : index
      %c0_14 = arith.constant 0 : index
      %15 = vector.load %arg5[%c0_13, %c0_14] : memref<1x128xf32, #tpu.memory_space<vmem>>, vector<1x128xf32>
      %16 = vector.broadcast %15 : vector<1x128xf32> to vector<32x128xf32>
      %17 = arith.addf %14, %16 : vector<32x128xf32>
      %18 = arith.truncf %17 : vector<32x128xf32> to vector<32x128xbf16>
      %c0_15 = arith.constant 0 : index
      %c0_16 = arith.constant 0 : index
      %19 = vector.load %arg6[%c0_15, %c0_16] : memref<32x128xbf16, #tpu.memory_space<vmem>>, vector<32x128xbf16>
      tpu.vector_store %arg6[%c0_15, %c0_16], %18 {strides = array<i32>} : memref<32x128xbf16, #tpu.memory_space<vmem>>, vector<32x128xbf16>,
    } else {
    }
    return
  }
  func.func @transform_0(%arg0: i32, %arg1: i32, %arg2: i32) -> (i32, i32) {
    %c0_i32 = arith.constant 0 : i32
    return %arg0, %arg2 : i32, i32
  }
  func.func @transform_1(%arg0: i32, %arg1: i32, %arg2: i32) -> (i32, i32) {
    %c0_i32 = arith.constant 0 : i32
    return %arg2, %arg1 : i32, i32
  }
  func.func @transform_2(%arg0: i32, %arg1: i32, %arg2: i32) -> (i32, i32) {
    %c0_i32 = arith.constant 0 : i32
    %c0_i32_0 = arith.constant 0 : i32
    return %c0_i32, %arg1 : i32, i32
  }
  func.func @transform_3(%arg0: i32, %arg1: i32, %arg2: i32) -> (i32, i32) {
    %c0_i32 = arith.constant 0 : i32
    return %arg0, %arg1 : i32, i32
  }
}

module attributes {stable_mosaic.version = 11 : i64} {
  func.func @_matmul_kernel(%arg0: i32, %arg1: i32, %arg2: i32, %arg3: memref<32x128xbf16, #tpu.memory_space<vmem>>, %arg4: memref<128x128xbf16, #tpu.memory_space<vmem>>, %arg5: memref<1x128xf32, #tpu.memory_space<vmem>>, %arg6: memref<32x128xbf16, #tpu.memory_space<vmem>>, %arg7: memref<32x128xf32, #tpu.memory_space<vmem>>) attributes {dimension_semantics = [#tpu.dimension_semantics<parallel>, #tpu.dimension_semantics<parallel>, #tpu.dimension_semantics<arbitrary>], iteration_bounds = array<i64: 1, 1, 3>, scalar_prefetch = 0 : i64, scratch_operands = 1 : i64, tpu.core_type = #tpu.core_type<tc>, window_params = [{transform_indices = @transform_0, window_bounds = array<i64: 32, 128>}, {transform_indices = @transform_1, window_bounds = array<i64: 128, 128>}, {transform_indices = @transform_2, window_bounds = array<i64: 1, 128>}, {transform_indices = @transform_3, window_bounds = array<i64: 32, 128>}]} {
    %c0_i32 = arith.constant 0 : i32
    %0 = arith.cmpi eq, %arg2, %c0_i32 : i32
    %1 = arith.extui %0 : i1 to i32
    %c0_i32_0 = arith.constant 0 : i32
    %2 = arith.cmpi ne, %1, %c0_i32_0 : i32
    scf.if %2 {
      %cst_10 = arith.constant 0.000000e+00 : f32
      %14 = vector.broadcast %cst_10 : f32 to vector<32x128xf32>
      %c0_11 = arith.constant 0 : index
      %c0_12 = arith.constant 0 : index
      %15 = vector.load %arg7[%c0_11, %c0_12] : memref<32x128xf32, #tpu.memory_space<vmem>>, vector<32x128xf32>
      tpu.vector_store %arg7[%c0_11, %c0_12], %14 {strides = array<i32>} : memref<32x128xf32, #tpu.memory_space<vmem>>, vector<32x128xf32>,
    } else {
    }
    %c0 = arith.constant 0 : index
    %c0_1 = arith.constant 0 : index
    %3 = vector.load %arg3[%c0, %c0_1] : memref<32x128xbf16, #tpu.memory_space<vmem>>, vector<32x128xbf16>
    %cst = arith.constant 0.000000e+00 : bf16
    %4 = vector.broadcast %cst : bf16 to vector<32x128xbf16>
    %5 = arith.maximumf %3, %4 : vector<32x128xbf16>
    %c0_2 = arith.constant 0 : index
    %c0_3 = arith.constant 0 : index
    %6 = vector.load %arg7[%c0_2, %c0_3] : memref<32x128xf32, #tpu.memory_space<vmem>>, vector<32x128xf32>
    %c0_4 = arith.constant 0 : index
    %c0_5 = arith.constant 0 : index
    %7 = vector.load %arg4[%c0_4, %c0_5] : memref<128x128xbf16, #tpu.memory_space<vmem>>, vector<128x128xbf16>
    %cst_6 = arith.constant dense<0.000000e+00> : vector<32x128xf32>
    %8 = tpu.matmul %5, %7, %cst_6 {dimension_numbers = #tpu.dot_dimension_numbers<[1], [0], [0], [1], [0, 0, 1, 1], [], []>} : vector<32x128xbf16>, vector<128x128xbf16>, vector<32x128xf32> -> vector<32x128xf32>
    %9 = arith.addf %6, %8 : vector<32x128xf32>
    %c0_7 = arith.constant 0 : index
    %c0_8 = arith.constant 0 : index
    %10 = vector.load %arg7[%c0_7, %c0_8] : memref<32x128xf32, #tpu.memory_space<vmem>>, vector<32x128xf32>
    tpu.vector_store %arg7[%c0_7, %c0_8], %9 {strides = array<i32>} : memref<32x128xf32, #tpu.memory_space<vmem>>, vector<32x128xf32>,
    %c2_i32 = arith.constant 2 : i32
    %11 = arith.cmpi eq, %arg2, %c2_i32 : i32
    %12 = arith.extui %11 : i1 to i32
    %c0_i32_9 = arith.constant 0 : i32
    %13 = arith.cmpi ne, %12, %c0_i32_9 : i32
    scf.if %13 {
      %c0_10 = arith.constant 0 : index
      %c0_11 = arith.constant 0 : index
      %14 = vector.load %arg7[%c0_10, %c0_11] : memref<32x128xf32, #tpu.memory_space<vmem>>, vector<32x128xf32>
      %c0_12 = arith.constant 0 : index
      %c0_13 = arith.constant 0 : index
      %15 = vector.load %arg5[%c0_12, %c0_13] : memref<1x128xf32, #tpu.memory_space<vmem>>, vector<1x128xf32>
      %16 = vector.broadcast %15 : vector<1x128xf32> to vector<32x128xf32>
      %17 = arith.addf %14, %16 : vector<32x128xf32>
      %18 = arith.truncf %17 : vector<32x128xf32> to vector<32x128xbf16>
      %c0_14 = arith.constant 0 : index
      %c0_15 = arith.constant 0 : index
      %19 = vector.load %arg6[%c0_14, %c0_15] : memref<32x128xbf16, #tpu.memory_space<vmem>>, vector<32x128xbf16>
      tpu.vector_store %arg6[%c0_14, %c0_15], %18 {strides = array<i32>} : memref<32x128xbf16, #tpu.memory_space<vmem>>, vector<32x128xbf16>,
    } else {
    }
    return
  }
  func.func @transform_0(%arg0: i32, %arg1: i32, %arg2: i32) -> (i32, i32) {
    %c0_i32 = arith.constant 0 : i32
    return %arg0, %arg2 : i32, i32
  }
  func.func @transform_1(%arg0: i32, %arg1: i32, %arg2: i32) -> (i32, i32) {
    %c0_i32 = arith.constant 0 : i32
    return %arg2, %arg1 : i32, i32
  }
  func.func @transform_2(%arg0: i32, %arg1: i32, %arg2: i32) -> (i32, i32) {
    %c0_i32 = arith.constant 0 : i32
    %c0_i32_0 = arith.constant 0 : i32
    return %c0_i32, %arg1 : i32, i32
  }
  func.func @transform_3(%arg0: i32, %arg1: i32, %arg2: i32) -> (i32, i32) {
    %c0_i32 = arith.constant 0 : i32
    return %arg0, %arg1 : i32, i32
  }
}

module attributes {stable_mosaic.version = 11 : i64} {
  func.func @_vq_kernel(%arg0: i32, %arg1: i32, %arg2: memref<32x128xbf16, #tpu.memory_space<vmem>>, %arg3: memref<128x128xbf16, #tpu.memory_space<vmem>>, %arg4: memref<128x128xbf16, #tpu.memory_space<vmem>>, %arg5: memref<1x128xf32, #tpu.memory_space<vmem>>, %arg6: memref<32x128xbf16, #tpu.memory_space<vmem>>, %arg7: memref<8x128xf32, #tpu.memory_space<vmem>>, %arg8: memref<8x128xf32, #tpu.memory_space<vmem>>, %arg9: memref<1x1xf32, #tpu.memory_space<vmem>>, %arg10: memref<1x128xf32, #tpu.memory_space<vmem>>) attributes {dimension_semantics = [#tpu.dimension_semantics<parallel>, #tpu.dimension_semantics<arbitrary>], iteration_bounds = array<i64: 1, 1>, scalar_prefetch = 0 : i64, scratch_operands = 2 : i64, tpu.core_type = #tpu.core_type<tc>, window_params = [{transform_indices = @transform_0, window_bounds = array<i64: 32, 128>}, {pipeline_mode = #tpu.pipeline_mode<synchronous>, transform_indices = @transform_1, window_bounds = array<i64: 128, 128>}, {pipeline_mode = #tpu.pipeline_mode<synchronous>, transform_indices = @transform_2, window_bounds = array<i64: 128, 128>}, {pipeline_mode = #tpu.pipeline_mode<synchronous>, transform_indices = @transform_3, window_bounds = array<i64: 1, 128>}, {transform_indices = @transform_4, window_bounds = array<i64: 32, 128>}, {transform_indices = @transform_5, window_bounds = array<i64: 8, 128>}, {transform_indices = @transform_6, window_bounds = array<i64: 8, 128>}]} {
    %c0_i32 = arith.constant 0 : i32
    %0 = arith.cmpi eq, %arg1, %c0_i32 : i32
    %1 = arith.extui %0 : i1 to i32
    %c0_i32_0 = arith.constant 0 : i32
    %2 = arith.cmpi ne, %1, %c0_i32_0 : i32
    scf.if %2 {
      %cst_31 = arith.constant 0.000000e+00 : f32
      %70 = vector.broadcast %cst_31 : f32 to vector<1x1xf32>
      %c0_32 = arith.constant 0 : index
      %c0_33 = arith.constant 0 : index
      %71 = vector.load %arg9[%c0_32, %c0_33] : memref<1x1xf32, #tpu.memory_space<vmem>>, vector<1x1xf32>
      tpu.vector_store %arg9[%c0_32, %c0_33], %70 {strides = array<i32>} : memref<1x1xf32, #tpu.memory_space<vmem>>, vector<1x1xf32>,
      %cst_34 = arith.constant 0.000000e+00 : f32
      %72 = vector.broadcast %cst_34 : f32 to vector<1x128xf32>
      %c0_35 = arith.constant 0 : index
      %c0_36 = arith.constant 0 : index
      %73 = vector.load %arg10[%c0_35, %c0_36] : memref<1x128xf32, #tpu.memory_space<vmem>>, vector<1x128xf32>
      tpu.vector_store %arg10[%c0_35, %c0_36], %72 {strides = array<i32>} : memref<1x128xf32, #tpu.memory_space<vmem>>, vector<1x128xf32>,
    } else {
    }
    %c0 = arith.constant 0 : index
    %c0_1 = arith.constant 0 : index
    %3 = vector.load %arg2[%c0, %c0_1] : memref<32x128xbf16, #tpu.memory_space<vmem>>, vector<32x128xbf16>
    %4 = arith.extf %3 : vector<32x128xbf16> to vector<32x128xf32>
    %5 = arith.mulf %4, %4 : vector<32x128xf32>
    %cst = arith.constant dense<0.000000e+00> : vector<32xf32>
    %6 = vector.multi_reduction <add>, %5, %cst [1] : vector<32x128xf32> to vector<32xf32>
    %7 = vector.shape_cast %6 : vector<32xf32> to vector<32x1xf32>
    %c0_2 = arith.constant 0 : index
    %c0_3 = arith.constant 0 : index
    %8 = vector.load %arg4[%c0_2, %c0_3] : memref<128x128xbf16, #tpu.memory_space<vmem>>, vector<128x128xbf16>
    %cst_4 = arith.constant dense<0.000000e+00> : vector<32x128xf32>
    %9 = tpu.matmul %3, %8, %cst_4 {dimension_numbers = #tpu.dot_dimension_numbers<[1], [0], [0], [1], [0, 0, 1, 1], [], []>} : vector<32x128xbf16>, vector<128x128xbf16>, vector<32x128xf32> -> vector<32x128xf32>
    %c0_5 = arith.constant 0 : index
    %c0_6 = arith.constant 0 : index
    %10 = vector.load %arg5[%c0_5, %c0_6] : memref<1x128xf32, #tpu.memory_space<vmem>>, vector<1x128xf32>
    %11 = vector.broadcast %7 : vector<32x1xf32> to vector<32x128xf32>
    %12 = vector.broadcast %10 : vector<1x128xf32> to vector<32x128xf32>
    %13 = arith.addf %11, %12 : vector<32x128xf32>
    %cst_7 = arith.constant 2.000000e+00 : f32
    %14 = vector.broadcast %cst_7 : f32 to vector<32x128xf32>
    %15 = arith.mulf %14, %9 : vector<32x128xf32>
    %16 = arith.subf %13, %15 : vector<32x128xf32>
    %17 = tpu.iota {dimensions = array<i32: 1>} : vector<32x128xi32>
    %c64_i32 = arith.constant 64 : i32
    %18 = vector.broadcast %c64_i32 : i32 to vector<32x128xi32>
    %19 = arith.cmpi slt, %17, %18 : vector<32x128xi32>
    %cst_8 = arith.constant 1.000000e+30 : f32
    %20 = vector.broadcast %cst_8 : f32 to vector<32x128xf32>
    %21 = arith.select %19, %16, %20 : vector<32x128xi1>, vector<32x128xf32>
    %cst_9 = arith.constant dense<0x7F800000> : vector<32xf32>
    %22 = vector.multi_reduction <minimumf>, %21, %cst_9 [1] : vector<32x128xf32> to vector<32xf32>
    %23 = vector.shape_cast %22 : vector<32xf32> to vector<32x1xf32>
    %24 = vector.broadcast %23 : vector<32x1xf32> to vector<32x128xf32>
    %25 = arith.cmpf oeq, %21, %24 : vector<32x128xf32>
    %c128_i32 = arith.constant 128 : i32
    %26 = vector.broadcast %c128_i32 : i32 to vector<32x128xi32>
    %27 = arith.select %25, %17, %26 : vector<32x128xi1>, vector<32x128xi32>
    %cst_10 = arith.constant dense<2147483647> : vector<32xi32>
    %28 = vector.multi_reduction <minsi>, %27, %cst_10 [1] : vector<32x128xi32> to vector<32xi32>
    %29 = vector.shape_cast %28 : vector<32xi32> to vector<32x1xi32>
    %c1_i32 = arith.constant 1 : i32
    %30 = arith.muli %arg0, %c1_i32 : i32
    %31 = arith.addi %30, %arg1 : i32
    %c32_i32 = arith.constant 32 : i32
    %32 = arith.muli %31, %c32_i32 : i32
    %33 = tpu.iota {dimensions = array<i32: 0>} : vector<32x1xi32>
    %34 = vector.broadcast %32 : i32 to vector<32x1xi32>
    %35 = arith.addi %34, %33 : vector<32x1xi32>
    %c32_i32_11 = arith.constant 32 : i32
    %36 = vector.broadcast %c32_i32_11 : i32 to vector<32x1xi32>
    %37 = arith.cmpi slt, %35, %36 : vector<32x1xi32>
    %38 = arith.extui %37 : vector<32x1xi1> to vector<32x1xi32>
    %39 = arith.sitofp %38 : vector<32x1xi32> to vector<32x1xf32>
    %40 = vector.broadcast %29 : vector<32x1xi32> to vector<32x128xi32>
    %41 = arith.cmpi eq, %17, %40 : vector<32x128xi32>
    %cst_12 = arith.constant 1.000000e+00 : f32
    %cst_13 = arith.constant 0.000000e+00 : f32
    %42 = vector.broadcast %cst_12 : f32 to vector<32x128xf32>
    %43 = vector.broadcast %cst_13 : f32 to vector<32x128xf32>
    %44 = arith.select %41, %42, %43 : vector<32x128xi1>, vector<32x128xf32>
    %45 = vector.broadcast %39 : vector<32x1xf32> to vector<32x128xf32>
    %46 = arith.mulf %44, %45 : vector<32x128xf32>
    %47 = arith.truncf %46 : vector<32x128xf32> to vector<32x128xbf16>
    %c0_14 = arith.constant 0 : index
    %c0_15 = arith.constant 0 : index
    %48 = vector.load %arg3[%c0_14, %c0_15] : memref<128x128xbf16, #tpu.memory_space<vmem>>, vector<128x128xbf16>
    %cst_16 = arith.constant dense<0.000000e+00> : vector<32x128xf32>
    %49 = tpu.matmul %47, %48, %cst_16 {dimension_numbers = #tpu.dot_dimension_numbers<[1], [0], [0], [1], [0, 0, 1, 1], [], []>} : vector<32x128xbf16>, vector<128x128xbf16>, vector<32x128xf32> -> vector<32x128xf32>
    %50 = arith.truncf %49 : vector<32x128xf32> to vector<32x128xbf16>
    %c0_17 = arith.constant 0 : index
    %c0_18 = arith.constant 0 : index
    %51 = vector.load %arg6[%c0_17, %c0_18] : memref<32x128xbf16, #tpu.memory_space<vmem>>, vector<32x128xbf16>
    tpu.vector_store %arg6[%c0_17, %c0_18], %50 {strides = array<i32>} : memref<32x128xbf16, #tpu.memory_space<vmem>>, vector<32x128xbf16>,
    %52 = arith.subf %49, %4 : vector<32x128xf32>
    %c0_19 = arith.constant 0 : index
    %c0_20 = arith.constant 0 : index
    %53 = vector.load %arg9[%c0_19, %c0_20] : memref<1x1xf32, #tpu.memory_space<vmem>>, vector<1x1xf32>
    %54 = arith.mulf %52, %52 : vector<32x128xf32>
    %55 = vector.shape_cast %54 : vector<32x128xf32> to vector<1x32x128xf32>
    %cst_21 = arith.constant dense<0.000000e+00> : vector<1xf32>
    %56 = vector.multi_reduction <add>, %55, %cst_21 [1, 2] : vector<1x32x128xf32> to vector<1xf32>
    %57 = vector.shape_cast %56 : vector<1xf32> to vector<1x1x1xf32>
    %58 = vector.extract %57[0, 0, 0] : f32 from vector<1x1x1xf32>
    %59 = vector.broadcast %58 : f32 to vector<1x1xf32>
    %60 = arith.addf %53, %59 : vector<1x1xf32>
    %c0_22 = arith.constant 0 : index
    %c0_23 = arith.constant 0 : index
    %61 = vector.load %arg9[%c0_22, %c0_23] : memref<1x1xf32, #tpu.memory_space<vmem>>, vector<1x1xf32>
    tpu.vector_store %arg9[%c0_22, %c0_23], %60 {strides = array<i32>} : memref<1x1xf32, #tpu.memory_space<vmem>>, vector<1x1xf32>,
    %c0_24 = arith.constant 0 : index
    %c0_25 = arith.constant 0 : index
    %62 = vector.load %arg10[%c0_24, %c0_25] : memref<1x128xf32, #tpu.memory_space<vmem>>, vector<1x128xf32>
    %cst_26 = arith.constant dense<0.000000e+00> : vector<128xf32>
    %63 = vector.multi_reduction <add>, %46, %cst_26 [0] : vector<32x128xf32> to vector<128xf32>
    %64 = vector.shape_cast %63 : vector<128xf32> to vector<1x128xf32>
    %65 = arith.addf %62, %64 : vector<1x128xf32>
    %c0_27 = arith.constant 0 : index
    %c0_28 = arith.constant 0 : index
    %66 = vector.load %arg10[%c0_27, %c0_28] : memref<1x128xf32, #tpu.memory_space<vmem>>, vector<1x128xf32>
    tpu.vector_store %arg10[%c0_27, %c0_28], %65 {strides = array<i32>} : memref<1x128xf32, #tpu.memory_space<vmem>>, vector<1x128xf32>,
    %c0_i32_29 = arith.constant 0 : i32
    %67 = arith.cmpi eq, %arg1, %c0_i32_29 : i32
    %68 = arith.extui %67 : i1 to i32
    %c0_i32_30 = arith.constant 0 : i32
    %69 = arith.cmpi ne, %68, %c0_i32_30 : i32
    scf.if %69 {
      %c0_31 = arith.constant 0 : index
      %c0_32 = arith.constant 0 : index
      %70 = vector.load %arg9[%c0_31, %c0_32] : memref<1x1xf32, #tpu.memory_space<vmem>>, vector<1x1xf32>
      %71 = vector.shape_cast %70 : vector<1x1xf32> to vector<1x1xf32>
      %72 = vector.broadcast %71 : vector<1x1xf32> to vector<8x128xf32>
      %c0_33 = arith.constant 0 : index
      %c0_34 = arith.constant 0 : index
      %73 = vector.load %arg7[%c0_33, %c0_34] : memref<8x128xf32, #tpu.memory_space<vmem>>, vector<8x128xf32>
      tpu.vector_store %arg7[%c0_33, %c0_34], %72 {strides = array<i32>} : memref<8x128xf32, #tpu.memory_space<vmem>>, vector<8x128xf32>,
      %c0_35 = arith.constant 0 : index
      %c0_36 = arith.constant 0 : index
      %74 = vector.load %arg10[%c0_35, %c0_36] : memref<1x128xf32, #tpu.memory_space<vmem>>, vector<1x128xf32>
      %75 = vector.shape_cast %74 : vector<1x128xf32> to vector<1x128xf32>
      %76 = vector.broadcast %75 : vector<1x128xf32> to vector<8x128xf32>
      %c0_37 = arith.constant 0 : index
      %c0_38 = arith.constant 0 : index
      %77 = vector.load %arg8[%c0_37, %c0_38] : memref<8x128xf32, #tpu.memory_space<vmem>>, vector<8x128xf32>
      tpu.vector_store %arg8[%c0_37, %c0_38], %76 {strides = array<i32>} : memref<8x128xf32, #tpu.memory_space<vmem>>, vector<8x128xf32>,
    } else {
    }
    return
  }
  func.func @transform_0(%arg0: i32, %arg1: i32) -> (i32, i32) {
    %c1_i32 = arith.constant 1 : i32
    %0 = arith.muli %arg0, %c1_i32 : i32
    %1 = arith.addi %0, %arg1 : i32
    %c0_i32 = arith.constant 0 : i32
    %c0_i32_0 = arith.constant 0 : i32
    return %1, %c0_i32 : i32, i32
  }
  func.func @transform_1(%arg0: i32, %arg1: i32) -> (i32, i32) {
    %c0_i32 = arith.constant 0 : i32
    %c0_i32_0 = arith.constant 0 : i32
    %c0_i32_1 = arith.constant 0 : i32
    return %c0_i32, %c0_i32_0 : i32, i32
  }
  func.func @transform_2(%arg0: i32, %arg1: i32) -> (i32, i32) {
    %c0_i32 = arith.constant 0 : i32
    %c0_i32_0 = arith.constant 0 : i32
    %c0_i32_1 = arith.constant 0 : i32
    return %c0_i32, %c0_i32_0 : i32, i32
  }
  func.func @transform_3(%arg0: i32, %arg1: i32) -> (i32, i32) {
    %c0_i32 = arith.constant 0 : i32
    %c0_i32_0 = arith.constant 0 : i32
    %c0_i32_1 = arith.constant 0 : i32
    return %c0_i32, %c0_i32_0 : i32, i32
  }
  func.func @transform_4(%arg0: i32, %arg1: i32) -> (i32, i32) {
    %c1_i32 = arith.constant 1 : i32
    %0 = arith.muli %arg0, %c1_i32 : i32
    %1 = arith.addi %0, %arg1 : i32
    %c0_i32 = arith.constant 0 : i32
    %c0_i32_0 = arith.constant 0 : i32
    return %1, %c0_i32 : i32, i32
  }
  func.func @transform_5(%arg0: i32, %arg1: i32) -> (i32, i32) {
    %c0_i32 = arith.constant 0 : i32
    %c0_i32_0 = arith.constant 0 : i32
    return %arg0, %c0_i32 : i32, i32
  }
  func.func @transform_6(%arg0: i32, %arg1: i32) -> (i32, i32) {
    %c0_i32 = arith.constant 0 : i32
    %c0_i32_0 = arith.constant 0 : i32
    return %arg0, %c0_i32 : i32, i32
  }
}

module attributes {stable_mosaic.version = 11 : i64} {
  func.func @_matmul_kernel(%arg0: i32, %arg1: i32, %arg2: i32, %arg3: memref<32x128xbf16, #tpu.memory_space<vmem>>, %arg4: memref<128x128xbf16, #tpu.memory_space<vmem>>, %arg5: memref<1x128xf32, #tpu.memory_space<vmem>>, %arg6: memref<32x128xbf16, #tpu.memory_space<vmem>>, %arg7: memref<32x128xf32, #tpu.memory_space<vmem>>) attributes {dimension_semantics = [#tpu.dimension_semantics<parallel>, #tpu.dimension_semantics<parallel>, #tpu.dimension_semantics<arbitrary>], iteration_bounds = array<i64: 1, 1, 2>, scalar_prefetch = 0 : i64, scratch_operands = 1 : i64, tpu.core_type = #tpu.core_type<tc>, window_params = [{transform_indices = @transform_0, window_bounds = array<i64: 32, 128>}, {transform_indices = @transform_1, window_bounds = array<i64: 128, 128>}, {transform_indices = @transform_2, window_bounds = array<i64: 1, 128>}, {transform_indices = @transform_3, window_bounds = array<i64: 32, 128>}]} {
    %c0_i32 = arith.constant 0 : i32
    %0 = arith.cmpi eq, %arg2, %c0_i32 : i32
    %1 = arith.extui %0 : i1 to i32
    %c0_i32_0 = arith.constant 0 : i32
    %2 = arith.cmpi ne, %1, %c0_i32_0 : i32
    scf.if %2 {
      %cst_9 = arith.constant 0.000000e+00 : f32
      %12 = vector.broadcast %cst_9 : f32 to vector<32x128xf32>
      %c0_10 = arith.constant 0 : index
      %c0_11 = arith.constant 0 : index
      %13 = vector.load %arg7[%c0_10, %c0_11] : memref<32x128xf32, #tpu.memory_space<vmem>>, vector<32x128xf32>
      tpu.vector_store %arg7[%c0_10, %c0_11], %12 {strides = array<i32>} : memref<32x128xf32, #tpu.memory_space<vmem>>, vector<32x128xf32>,
    } else {
    }
    %c0 = arith.constant 0 : index
    %c0_1 = arith.constant 0 : index
    %3 = vector.load %arg3[%c0, %c0_1] : memref<32x128xbf16, #tpu.memory_space<vmem>>, vector<32x128xbf16>
    %c0_2 = arith.constant 0 : index
    %c0_3 = arith.constant 0 : index
    %4 = vector.load %arg7[%c0_2, %c0_3] : memref<32x128xf32, #tpu.memory_space<vmem>>, vector<32x128xf32>
    %c0_4 = arith.constant 0 : index
    %c0_5 = arith.constant 0 : index
    %5 = vector.load %arg4[%c0_4, %c0_5] : memref<128x128xbf16, #tpu.memory_space<vmem>>, vector<128x128xbf16>
    %cst = arith.constant dense<0.000000e+00> : vector<32x128xf32>
    %6 = tpu.matmul %3, %5, %cst {dimension_numbers = #tpu.dot_dimension_numbers<[1], [0], [0], [1], [0, 0, 1, 1], [], []>} : vector<32x128xbf16>, vector<128x128xbf16>, vector<32x128xf32> -> vector<32x128xf32>
    %7 = arith.addf %4, %6 : vector<32x128xf32>
    %c0_6 = arith.constant 0 : index
    %c0_7 = arith.constant 0 : index
    %8 = vector.load %arg7[%c0_6, %c0_7] : memref<32x128xf32, #tpu.memory_space<vmem>>, vector<32x128xf32>
    tpu.vector_store %arg7[%c0_6, %c0_7], %7 {strides = array<i32>} : memref<32x128xf32, #tpu.memory_space<vmem>>, vector<32x128xf32>,
    %c1_i32 = arith.constant 1 : i32
    %9 = arith.cmpi eq, %arg2, %c1_i32 : i32
    %10 = arith.extui %9 : i1 to i32
    %c0_i32_8 = arith.constant 0 : i32
    %11 = arith.cmpi ne, %10, %c0_i32_8 : i32
    scf.if %11 {
      %c0_9 = arith.constant 0 : index
      %c0_10 = arith.constant 0 : index
      %12 = vector.load %arg7[%c0_9, %c0_10] : memref<32x128xf32, #tpu.memory_space<vmem>>, vector<32x128xf32>
      %c0_11 = arith.constant 0 : index
      %c0_12 = arith.constant 0 : index
      %13 = vector.load %arg5[%c0_11, %c0_12] : memref<1x128xf32, #tpu.memory_space<vmem>>, vector<1x128xf32>
      %14 = vector.broadcast %13 : vector<1x128xf32> to vector<32x128xf32>
      %15 = arith.addf %12, %14 : vector<32x128xf32>
      %16 = arith.truncf %15 : vector<32x128xf32> to vector<32x128xbf16>
      %c0_13 = arith.constant 0 : index
      %c0_14 = arith.constant 0 : index
      %17 = vector.load %arg6[%c0_13, %c0_14] : memref<32x128xbf16, #tpu.memory_space<vmem>>, vector<32x128xbf16>
      tpu.vector_store %arg6[%c0_13, %c0_14], %16 {strides = array<i32>} : memref<32x128xbf16, #tpu.memory_space<vmem>>, vector<32x128xbf16>,
    } else {
    }
    return
  }
  func.func @transform_0(%arg0: i32, %arg1: i32, %arg2: i32) -> (i32, i32) {
    %c0_i32 = arith.constant 0 : i32
    return %arg0, %arg2 : i32, i32
  }
  func.func @transform_1(%arg0: i32, %arg1: i32, %arg2: i32) -> (i32, i32) {
    %c0_i32 = arith.constant 0 : i32
    return %arg2, %arg1 : i32, i32
  }
  func.func @transform_2(%arg0: i32, %arg1: i32, %arg2: i32) -> (i32, i32) {
    %c0_i32 = arith.constant 0 : i32
    %c0_i32_0 = arith.constant 0 : i32
    return %c0_i32, %arg1 : i32, i32
  }
  func.func @transform_3(%arg0: i32, %arg1: i32, %arg2: i32) -> (i32, i32) {
    %c0_i32 = arith.constant 0 : i32
    return %arg0, %arg1 : i32, i32
  }
}

module attributes {stable_mosaic.version = 11 : i64} {
  func.func @_matmul_kernel(%arg0: i32, %arg1: i32, %arg2: i32, %arg3: memref<128x128xbf16, #tpu.memory_space<vmem>>, %arg4: memref<128x128xbf16, #tpu.memory_space<vmem>>, %arg5: memref<1x128xf32, #tpu.memory_space<vmem>>, %arg6: memref<128x128xbf16, #tpu.memory_space<vmem>>, %arg7: memref<128x128xf32, #tpu.memory_space<vmem>>) attributes {dimension_semantics = [#tpu.dimension_semantics<parallel>, #tpu.dimension_semantics<parallel>, #tpu.dimension_semantics<arbitrary>], iteration_bounds = array<i64: 1, 1, 2>, scalar_prefetch = 0 : i64, scratch_operands = 1 : i64, tpu.core_type = #tpu.core_type<tc>, window_params = [{transform_indices = @transform_0, window_bounds = array<i64: 128, 128>}, {transform_indices = @transform_1, window_bounds = array<i64: 128, 128>}, {transform_indices = @transform_2, window_bounds = array<i64: 1, 128>}, {transform_indices = @transform_3, window_bounds = array<i64: 128, 128>}]} {
    %c0_i32 = arith.constant 0 : i32
    %0 = arith.cmpi eq, %arg2, %c0_i32 : i32
    %1 = arith.extui %0 : i1 to i32
    %c0_i32_0 = arith.constant 0 : i32
    %2 = arith.cmpi ne, %1, %c0_i32_0 : i32
    scf.if %2 {
      %cst_10 = arith.constant 0.000000e+00 : f32
      %14 = vector.broadcast %cst_10 : f32 to vector<128x128xf32>
      %c0_11 = arith.constant 0 : index
      %c0_12 = arith.constant 0 : index
      %15 = vector.load %arg7[%c0_11, %c0_12] : memref<128x128xf32, #tpu.memory_space<vmem>>, vector<128x128xf32>
      tpu.vector_store %arg7[%c0_11, %c0_12], %14 {strides = array<i32>} : memref<128x128xf32, #tpu.memory_space<vmem>>, vector<128x128xf32>,
    } else {
    }
    %c0 = arith.constant 0 : index
    %c0_1 = arith.constant 0 : index
    %3 = vector.load %arg3[%c0, %c0_1] : memref<128x128xbf16, #tpu.memory_space<vmem>>, vector<128x128xbf16>
    %cst = arith.constant 0.000000e+00 : bf16
    %4 = vector.broadcast %cst : bf16 to vector<128x128xbf16>
    %5 = arith.maximumf %3, %4 : vector<128x128xbf16>
    %c0_2 = arith.constant 0 : index
    %c0_3 = arith.constant 0 : index
    %6 = vector.load %arg7[%c0_2, %c0_3] : memref<128x128xf32, #tpu.memory_space<vmem>>, vector<128x128xf32>
    %c0_4 = arith.constant 0 : index
    %c0_5 = arith.constant 0 : index
    %7 = vector.load %arg4[%c0_4, %c0_5] : memref<128x128xbf16, #tpu.memory_space<vmem>>, vector<128x128xbf16>
    %cst_6 = arith.constant dense<0.000000e+00> : vector<128x128xf32>
    %8 = tpu.matmul %5, %7, %cst_6 {dimension_numbers = #tpu.dot_dimension_numbers<[1], [0], [0], [1], [0, 0, 1, 1], [], []>} : vector<128x128xbf16>, vector<128x128xbf16>, vector<128x128xf32> -> vector<128x128xf32>
    %9 = arith.addf %6, %8 : vector<128x128xf32>
    %c0_7 = arith.constant 0 : index
    %c0_8 = arith.constant 0 : index
    %10 = vector.load %arg7[%c0_7, %c0_8] : memref<128x128xf32, #tpu.memory_space<vmem>>, vector<128x128xf32>
    tpu.vector_store %arg7[%c0_7, %c0_8], %9 {strides = array<i32>} : memref<128x128xf32, #tpu.memory_space<vmem>>, vector<128x128xf32>,
    %c1_i32 = arith.constant 1 : i32
    %11 = arith.cmpi eq, %arg2, %c1_i32 : i32
    %12 = arith.extui %11 : i1 to i32
    %c0_i32_9 = arith.constant 0 : i32
    %13 = arith.cmpi ne, %12, %c0_i32_9 : i32
    scf.if %13 {
      %c0_10 = arith.constant 0 : index
      %c0_11 = arith.constant 0 : index
      %14 = vector.load %arg7[%c0_10, %c0_11] : memref<128x128xf32, #tpu.memory_space<vmem>>, vector<128x128xf32>
      %c0_12 = arith.constant 0 : index
      %c0_13 = arith.constant 0 : index
      %15 = vector.load %arg5[%c0_12, %c0_13] : memref<1x128xf32, #tpu.memory_space<vmem>>, vector<1x128xf32>
      %16 = vector.broadcast %15 : vector<1x128xf32> to vector<128x128xf32>
      %17 = arith.addf %14, %16 : vector<128x128xf32>
      %18 = arith.truncf %17 : vector<128x128xf32> to vector<128x128xbf16>
      %c0_14 = arith.constant 0 : index
      %c0_15 = arith.constant 0 : index
      %19 = vector.load %arg6[%c0_14, %c0_15] : memref<128x128xbf16, #tpu.memory_space<vmem>>, vector<128x128xbf16>
      tpu.vector_store %arg6[%c0_14, %c0_15], %18 {strides = array<i32>} : memref<128x128xbf16, #tpu.memory_space<vmem>>, vector<128x128xbf16>,
    } else {
    }
    return
  }
  func.func @transform_0(%arg0: i32, %arg1: i32, %arg2: i32) -> (i32, i32) {
    %c0_i32 = arith.constant 0 : i32
    return %arg0, %arg2 : i32, i32
  }
  func.func @transform_1(%arg0: i32, %arg1: i32, %arg2: i32) -> (i32, i32) {
    %c0_i32 = arith.constant 0 : i32
    return %arg2, %arg1 : i32, i32
  }
  func.func @transform_2(%arg0: i32, %arg1: i32, %arg2: i32) -> (i32, i32) {
    %c0_i32 = arith.constant 0 : i32
    %c0_i32_0 = arith.constant 0 : i32
    return %c0_i32, %arg1 : i32, i32
  }
  func.func @transform_3(%arg0: i32, %arg1: i32, %arg2: i32) -> (i32, i32) {
    %c0_i32 = arith.constant 0 : i32
    return %arg0, %arg1 : i32, i32
  }
}

</mosaic_0001>

<llo_original>
// kernel: vq_vae_forward.16
$region0: #{vq_vae_forward.16}
  #allocation0 [shape = 'u32[]', space=smem, size = 0x4, offset = 0x4, fixed_abs, tag = 'smem constant byte address 0x4 - core index']
  #allocation1 [shape = 'u32[144,128]{1,0:T(1,128)}', space=vmem, size = 0x12000, scoped, tag = 'internal scratch']
  #allocation2 [shape = 'f32[128,128]{1,0:T(8,128)}', space=vmem, size = 0x10000, scoped, tag = 'scratch operand']
  %s0 = inlined_call_operand.vmem [shape: bf16[128,128], index: 0, kind: input, shape index: {}]
  %s1 = inlined_call_operand.vmem [shape: bf16[128,128], index: 1, kind: input, shape index: {}]
  %s2 = inlined_call_operand.vmem [shape: f32[1,128], index: 2, kind: input, shape index: {}]
  %s3 = inlined_call_operand.vmem [shape: bf16[128,128], index: 3, kind: output, shape index: {}]
  %s4 = sld [smem:[#allocation0]]
  $region30: #{vq_vae_forward.16} parent=0
    _
  %s6 = ssub.s32 1, %s4
  %s7 = scalar_select 0, %s6, %s4
  // Predicated region
  $region2: #{vq_vae_forward.16} parent=0 // pred_check
    _
  $region3: #{vq_vae_forward.16} parent=0 // pred_check_branch
    %9 = sbr.rel (0) target = $region5
  $region4: #{vq_vae_forward.16} parent=0 // pred_region
    _
  $region5: #{vq_vae_forward.16} parent=0 // pred_fallthru
    _
  // Predicated region
  $region6: #{vq_vae_forward.16} parent=0 // pred_check
    _
  $region7: #{vq_vae_forward.16} parent=0 // pred_check_branch
    %11 = sbr.rel (0) target = $region9
  $region8: #{vq_vae_forward.16} parent=0 // pred_region
    _
  $region9: #{vq_vae_forward.16} parent=0 // pred_fallthru
    _
  // Predicated region
  $region10: #{vq_vae_forward.16} parent=0 // pred_check
    _
  $region11: #{vq_vae_forward.16} parent=0 // pred_check_branch
    %13 = sbr.rel (0) target = $region13
  $region12: #{vq_vae_forward.16} parent=0 // pred_region
    _
  $region13: #{vq_vae_forward.16} parent=0 // pred_fallthru
    _
  %p15 = scmp.eq.s32.totalorder 0, 0
  // Predicated region
  $region14: #{vq_vae_forward.16} parent=0 // pred_check
    %p16 = pneg %p15
  $region15: #{vq_vae_forward.16} parent=0 // pred_check_branch
    %18 = sbr.rel (%p16) target = $region17
  $region16: #{vq_vae_forward.16} parent=0 // pred_region
    %19 = vst [vmem:[#allocation2] sm:$0xff] 0.0
    %20 = vst [vmem:[#allocation2 + $0x8] sm:$0xff] 0.0
    %21 = vst [vmem:[#allocation2 + $0x10] sm:$0xff] 0.0
    %22 = vst [vmem:[#allocation2 + $0x18] sm:$0xff] 0.0
    %23 = vst [vmem:[#allocation2 + $0x20] sm:$0xff] 0.0
    %24 = vst [vmem:[#allocation2 + $0x28] sm:$0xff] 0.0
    %25 = vst [vmem:[#allocation2 + $0x30] sm:$0xff] 0.0
    %26 = vst [vmem:[#allocation2 + $0x38] sm:$0xff] 0.0
    %27 = vst [vmem:[#allocation2 + $0x40] sm:$0xff] 0.0
    %28 = vst [vmem:[#allocation2 + $0x48] sm:$0xff] 0.0
    %29 = vst [vmem:[#allocation2 + $0x50] sm:$0xff] 0.0
    %30 = vst [vmem:[#allocation2 + $0x58] sm:$0xff] 0.0
    %31 = vst [vmem:[#allocation2 + $0x60] sm:$0xff] 0.0
    %32 = vst [vmem:[#allocation2 + $0x68] sm:$0xff] 0.0
    %33 = vst [vmem:[#allocation2 + $0x70] sm:$0xff] 0.0
    %34 = vst [vmem:[#allocation2 + $0x78] sm:$0xff] 0.0
  $region17: #{vq_vae_forward.16} parent=0 // pred_fallthru
    _
  %v35 = vld [vmem:[%s0] sm:$0xf]
  %v36 = vld [vmem:[%s0 + $0x4] sm:$0xf]
  %v37 = vld [vmem:[%s0 + $0x8] sm:$0xf]
  %v38 = vld [vmem:[%s0 + $0xc] sm:$0xf]
  %v39 = vld [vmem:[%s0 + $0x10] sm:$0xf]
  %v40 = vld [vmem:[%s0 + $0x14] sm:$0xf]
  %v41 = vld [vmem:[%s0 + $0x18] sm:$0xf]
  %v42 = vld [vmem:[%s0 + $0x1c] sm:$0xf]
  %v43 = vld [vmem:[%s0 + $0x20] sm:$0xf]
  %v44 = vld [vmem:[%s0 + $0x24] sm:$0xf]
  %v45 = vld [vmem:[%s0 + $0x28] sm:$0xf]
  %v46 = vld [vmem:[%s0 + $0x2c] sm:$0xf]
  %v47 = vld [vmem:[%s0 + $0x30] sm:$0xf]
  %v48 = vld [vmem:[%s0 + $0x34] sm:$0xf]
  %v49 = vld [vmem:[%s0 + $0x38] sm:$0xf]
  %v50 = vld [vmem:[%s0 + $0x3c] sm:$0xf]
  %v51 = vld [vmem:[#allocation2] sm:$0xff]
  %v52 = vld [vmem:[#allocation2 + $0x8] sm:$0xff]
  %v53 = vld [vmem:[#allocation2 + $0x10] sm:$0xff]
  %v54 = vld [vmem:[#allocation2 + $0x18] sm:$0xff]
  %v55 = vld [vmem:[#allocation2 + $0x20] sm:$0xff]
  %v56 = vld [vmem:[#allocation2 + $0x28] sm:$0xff]
  %v57 = vld [vmem:[#allocation2 + $0x30] sm:$0xff]
  %v58 = vld [vmem:[#allocation2 + $0x38] sm:$0xff]
  %v59 = vld [vmem:[#allocation2 + $0x40] sm:$0xff]
  %v60 = vld [vmem:[#allocation2 + $0x48] sm:$0xff]
  %v61 = vld [vmem:[#allocation2 + $0x50] sm:$0xff]
  %v62 = vld [vmem:[#allocation2 + $0x58] sm:$0xff]
  %v63 = vld [vmem:[#allocation2 + $0x60] sm:$0xff]
  %v64 = vld [vmem:[#allocation2 + $0x68] sm:$0xff]
  %v65 = vld [vmem:[#allocation2 + $0x70] sm:$0xff]
  %v66 = vld [vmem:[#allocation2 + $0x78] sm:$0xff]
  %v67 = vld [vmem:[%s1] sm:$0xf]
  %v68 = vld [vmem:[%s1 + $0x4] sm:$0xf]
  %v69 = vld [vmem:[%s1 + $0x8] sm:$0xf]
  %v70 = vld [vmem:[%s1 + $0xc] sm:$0xf]
  %v71 = vld [vmem:[%s1 + $0x10] sm:$0xf]
  %v72 = vld [vmem:[%s1 + $0x14] sm:$0xf]
  %v73 = vld [vmem:[%s1 + $0x18] sm:$0xf]
  %v74 = vld [vmem:[%s1 + $0x1c] sm:$0xf]
  %v75 = vld [vmem:[%s1 + $0x20] sm:$0xf]
  %v76 = vld [vmem:[%s1 + $0x24] sm:$0xf]
  %v77 = vld [vmem:[%s1 + $0x28] sm:$0xf]
  %v78 = vld [vmem:[%s1 + $0x2c] sm:$0xf]
  %v79 = vld [vmem:[%s1 + $0x30] sm:$0xf]
  %v80 = vld [vmem:[%s1 + $0x34] sm:$0xf]
  %v81 = vld [vmem:[%s1 + $0x38] sm:$0xf]
  %v82 = vld [vmem:[%s1 + $0x3c] sm:$0xf]
  %v99 = vunpack.c.l.b16 %v35
  %v100 = vunpack.c.l.b16 %v36
  %v101 = vunpack.c.l.b16 %v37
  %v102 = vunpack.c.l.b16 %v38
  %v103 = vunpack.c.l.b16 %v39
  %v104 = vunpack.c.l.b16 %v40
  %v105 = vunpack.c.l.b16 %v41
  %v106 = vunpack.c.l.b16 %v42
  %v107 = vunpack.c.l.b16 %v43
  %v108 = vunpack.c.l.b16 %v44
  %v109 = vunpack.c.l.b16 %v45
  %v110 = vunpack.c.l.b16 %v46
  %v111 = vunpack.c.l.b16 %v47
  %v112 = vunpack.c.l.b16 %v48
  %v113 = vunpack.c.l.b16 %v49
  %v114 = vunpack.c.l.b16 %v50
  %v115 = vpack.c.b16 %v100, %v99
  %v116 = vpack.c.b16 %v102, %v101
  %v117 = vpack.c.b16 %v104, %v103
  %v118 = vpack.c.b16 %v106, %v105
  %v119 = vpack.c.b16 %v108, %v107
  %v120 = vpack.c.b16 %v110, %v109
  %v121 = vpack.c.b16 %v112, %v111
  %v122 = vpack.c.b16 %v114, %v113
  %v147 = vunpack.c.l.b16 %v67
  %v148 = vunpack.c.l.b16 %v68
  %v149 = vunpack.c.l.b16 %v69
  %v150 = vunpack.c.l.b16 %v70
  %v151 = vunpack.c.l.b16 %v71
  %v152 = vunpack.c.l.b16 %v72
  %v153 = vunpack.c.l.b16 %v73
  %v154 = vunpack.c.l.b16 %v74
  %v155 = vunpack.c.l.b16 %v75
  %v156 = vunpack.c.l.b16 %v76
  %v157 = vunpack.c.l.b16 %v77
  %v158 = vunpack.c.l.b16 %v78
  %v159 = vunpack.c.l.b16 %v79
  %v160 = vunpack.c.l.b16 %v80
  %v161 = vunpack.c.l.b16 %v81
  %v162 = vunpack.c.l.b16 %v82
  %v163 = vpack.c.b16 %v148, %v147
  %v164 = vpack.c.b16 %v150, %v149
  %v165 = vpack.c.b16 %v152, %v151
  %v166 = vpack.c.b16 %v154, %v153
  %v167 = vpack.c.b16 %v156, %v155
  %v168 = vpack.c.b16 %v158, %v157
  %v169 = vpack.c.b16 %v160, %v159
  %v170 = vpack.c.b16 %v162, %v161
  %179 = vmatprep.subr.bf16.mxu0 0
  %180 = vmatpush1.bf16.msra.mxu0 %v163
  %181 = vmatprep.subr.bf16.mxu0 0
  %182 = vmatpush1.bf16.msra.mxu0 %v164
  %183 = vmatprep.subr.bf16.mxu0 0
  %184 = vmatpush1.bf16.msra.mxu0 %v165
  %185 = vmatprep.subr.bf16.mxu0 0
  %186 = vmatpush1.bf16.msra.mxu0 %v166
  %187 = vmatprep.subr.bf16.mxu0 0
  %188 = vmatpush1.bf16.msra.mxu0 %v167
  %189 = vmatprep.subr.bf16.mxu0 0
  %190 = vmatpush1.bf16.msra.mxu0 %v168
  %191 = vmatprep.subr.bf16.mxu0 0
  %192 = vmatpush1.bf16.msra.mxu0 %v169
  %193 = vmatprep.subr.bf16.mxu0 0
  %194 = vmatpush1.bf16.msra.mxu0 %v170
  %195 = vmatprep.subr.bf16.mxu0 0
  %196 = vmatpush1.bf16.msra.mxu0 0
  %197 = vmatprep.subr.bf16.mxu0 0
  %198 = vmatpush1.bf16.msra.mxu0 0
  %199 = vmatprep.subr.bf16.mxu0 0
  %200 = vmatpush1.bf16.msra.mxu0 0
  %201 = vmatprep.subr.bf16.mxu0 0
  %202 = vmatpush1.bf16.msra.mxu0 0
  %203 = vmatprep.subr.bf16.mxu0 0
  %204 = vmatpush1.bf16.msra.mxu0 0
  %205 = vmatprep.subr.bf16.mxu0 0
  %206 = vmatpush1.bf16.msra.mxu0 0
  %207 = vmatprep.subr.bf16.mxu0 0
  %208 = vmatpush1.bf16.msra.mxu0 0
  %209 = vmatprep.subr.bf16.mxu0 0
  %210 = vmatpush1.bf16.msra.mxu0 0
  %211 = vmatprep.mubr.bf16.mxu0 0
  %212 = vmatmul.mubr.bf16.gmra.mrb[0].mxu0 %v115
  %v213 = vpop.f32.mrb[0].mxu0
  %v214 = vadd.f32 0.0, %v213
  %v215 = vpop.f32.mrb[0].mxu0
  %v216 = vpop.f32.mrb[0].mxu0
  %v217 = vadd.f32 0.0, %v216
  %v218 = vpop.f32.mrb[0].mxu0
  %219 = vmatprep.mubr.bf16.mxu0 0
  %220 = vmatmul.mubr.bf16.gmra.mrb[0].mxu0 %v116
  %v221 = vpop.f32.mrb[0].mxu0
  %v222 = vadd.f32 0.0, %v221
  %v223 = vpop.f32.mrb[0].mxu0
  %v224 = vpop.f32.mrb[0].mxu0
  %v225 = vadd.f32 0.0, %v224
  %v226 = vpop.f32.mrb[0].mxu0
  %227 = vmatprep.mubr.bf16.mxu0 0
  %228 = vmatmul.mubr.bf16.gmra.mrb[0].mxu0 %v117
  %v229 = vpop.f32.mrb[0].mxu0
  %v230 = vadd.f32 0.0, %v229
  %v231 = vpop.f32.mrb[0].mxu0
  %v232 = vpop.f32.mrb[0].mxu0
  %v233 = vadd.f32 0.0, %v232
  %v234 = vpop.f32.mrb[0].mxu0
  %235 = vmatprep.mubr.bf16.mxu0 0
  %236 = vmatmul.mubr.bf16.gmra.mrb[0].mxu0 %v118
  %v237 = vpop.f32.mrb[0].mxu0
  %v238 = vadd.f32 0.0, %v237
  %v239 = vpop.f32.mrb[0].mxu0
  %v240 = vpop.f32.mrb[0].mxu0
  %v241 = vadd.f32 0.0, %v240
  %v242 = vpop.f32.mrb[0].mxu0
  %243 = vmatprep.mubr.bf16.mxu0 0
  %244 = vmatmul.mubr.bf16.gmra.mrb[0].mxu0 %v119
  %v245 = vpop.f32.mrb[0].mxu0
  %v246 = vadd.f32 0.0, %v245
  %v247 = vpop.f32.mrb[0].mxu0
  %v248 = vpop.f32.mrb[0].mxu0
  %v249 = vadd.f32 0.0, %v248
  %v250 = vpop.f32.mrb[0].mxu0
  %251 = vmatprep.mubr.bf16.mxu0 0
  %252 = vmatmul.mubr.bf16.gmra.mrb[0].mxu0 %v120
  %v253 = vpop.f32.mrb[0].mxu0
  %v254 = vadd.f32 0.0, %v253
  %v255 = vpop.f32.mrb[0].mxu0
  %v256 = vpop.f32.mrb[0].mxu0
  %v257 = vadd.f32 0.0, %v256
  %v258 = vpop.f32.mrb[0].mxu0
  %259 = vmatprep.mubr.bf16.mxu0 0
  %260 = vmatmul.mubr.bf16.gmra.mrb[0].mxu0 %v121
  %v261 = vpop.f32.mrb[0].mxu0
  %v262 = vadd.f32 0.0, %v261
  %v263 = vpop.f32.mrb[0].mxu0
  %v264 = vpop.f32.mrb[0].mxu0
  %v265 = vadd.f32 0.0, %v264
  %v266 = vpop.f32.mrb[0].mxu0
  %267 = vmatprep.mubr.bf16.mxu0 0
  %268 = vmatmul.mubr.bf16.gmra.mrb[0].mxu0 %v122
  %v269 = vpop.f32.mrb[0].mxu0
  %v270 = vadd.f32 0.0, %v269
  %v271 = vpop.f32.mrb[0].mxu0
  %v272 = vpop.f32.mrb[0].mxu0
  %v273 = vadd.f32 0.0, %v272
  %v274 = vpop.f32.mrb[0].mxu0
  %275 = vdwg.mxu0
  %v276 = vadd.f32 %v51, %v214
  %v277 = vadd.f32 %v52, %v217
  %v278 = vadd.f32 %v53, %v222
  %v279 = vadd.f32 %v54, %v225
  %v280 = vadd.f32 %v55, %v230
  %v281 = vadd.f32 %v56, %v233
  %v282 = vadd.f32 %v57, %v238
  %v283 = vadd.f32 %v58, %v241
  %v284 = vadd.f32 %v59, %v246
  %v285 = vadd.f32 %v60, %v249
  %v286 = vadd.f32 %v61, %v254
  %v287 = vadd.f32 %v62, %v257
  %v288 = vadd.f32 %v63, %v262
  %v289 = vadd.f32 %v64, %v265
  %v290 = vadd.f32 %v65, %v270
  %v291 = vadd.f32 %v66, %v273
  %292 = vst [vmem:[#allocation2] sm:$0xff] %v276
  %293 = vst [vmem:[#allocation2 + $0x8] sm:$0xff] %v277
  %294 = vst [vmem:[#allocation2 + $0x10] sm:$0xff] %v278
  %295 = vst [vmem:[#allocation2 + $0x18] sm:$0xff] %v279
  %296 = vst [vmem:[#allocation2 + $0x20] sm:$0xff] %v280
  %297 = vst [vmem:[#allocation2 + $0x28] sm:$0xff] %v281
  %298 = vst [vmem:[#allocation2 + $0x30] sm:$0xff] %v282
  %299 = vst [vmem:[#allocation2 + $0x38] sm:$0xff] %v283
  %300 = vst [vmem:[#allocation2 + $0x40] sm:$0xff] %v284
  %301 = vst [vmem:[#allocation2 + $0x48] sm:$0xff] %v285
  %302 = vst [vmem:[#allocation2 + $0x50] sm:$0xff] %v286
  %303 = vst [vmem:[#allocation2 + $0x58] sm:$0xff] %v287
  %304 = vst [vmem:[#allocation2 + $0x60] sm:$0xff] %v288
  %305 = vst [vmem:[#allocation2 + $0x68] sm:$0xff] %v289
  %306 = vst [vmem:[#allocation2 + $0x70] sm:$0xff] %v290
  %307 = vst [vmem:[#allocation2 + $0x78] sm:$0xff] %v291
  // Predicated region
  $region18: #{vq_vae_forward.16} parent=0 // pred_check
    %p308 = pneg %p15
  $region19: #{vq_vae_forward.16} parent=0 // pred_check_branch
    %310 = sbr.rel (%p308) target = $region21
  $region20: #{vq_vae_forward.16} parent=0 // pred_region
    %v311 = vld [vmem:[#allocation2] sm:$0xff]
    %v312 = vld [vmem:[#allocation2 + $0x8] sm:$0xff]
    %v313 = vld [vmem:[#allocation2 + $0x10] sm:$0xff]
    %v314 = vld [vmem:[#allocation2 + $0x18] sm:$0xff]
    %v315 = vld [vmem:[#allocation2 + $0x20] sm:$0xff]
    %v316 = vld [vmem:[#allocation2 + $0x28] sm:$0xff]
    %v317 = vld [vmem:[#allocation2 + $0x30] sm:$0xff]
    %v318 = vld [vmem:[#allocation2 + $0x38] sm:$0xff]
    %v319 = vld [vmem:[#allocation2 + $0x40] sm:$0xff]
    %v320 = vld [vmem:[#allocation2 + $0x48] sm:$0xff]
    %v321 = vld [vmem:[#allocation2 + $0x50] sm:$0xff]
    %v322 = vld [vmem:[#allocation2 + $0x58] sm:$0xff]
    %v323 = vld [vmem:[#allocation2 + $0x60] sm:$0xff]
    %v324 = vld [vmem:[#allocation2 + $0x68] sm:$0xff]
    %v325 = vld [vmem:[#allocation2 + $0x70] sm:$0xff]
    %v326 = vld [vmem:[#allocation2 + $0x78] sm:$0xff]
    %v327 = vld [vmem:[%s2] sm:$0x1]
    %v329 = vlaneseq
    %v330 = vshrl.u32 %v329, 7
    %v331 = vsub.s32 0, %v330
    %v332 = vrot.slane %v327, %v331
    %v334 = vadd.f32 %v311, %v332
    %v335 = vadd.f32 %v312, %v332
    %v336 = vadd.f32 %v313, %v332
    %v337 = vadd.f32 %v314, %v332
    %v338 = vadd.f32 %v315, %v332
    %v339 = vadd.f32 %v316, %v332
    %v340 = vadd.f32 %v317, %v332
    %v341 = vadd.f32 %v318, %v332
    %v342 = vadd.f32 %v319, %v332
    %v343 = vadd.f32 %v320, %v332
    %v344 = vadd.f32 %v321, %v332
    %v345 = vadd.f32 %v322, %v332
    %v346 = vadd.f32 %v323, %v332
    %v347 = vadd.f32 %v324, %v332
    %v348 = vadd.f32 %v325, %v332
    %v349 = vadd.f32 %v326, %v332
    %v350 = vmax.f32 %v334, 0.0
    %v351 = vmax.f32 %v335, 0.0
    %v352 = vmax.f32 %v336, 0.0
    %v353 = vmax.f32 %v337, 0.0
    %v354 = vmax.f32 %v338, 0.0
    %v355 = vmax.f32 %v339, 0.0
    %v356 = vmax.f32 %v340, 0.0
    %v357 = vmax.f32 %v341, 0.0
    %v358 = vmax.f32 %v342, 0.0
    %v359 = vmax.f32 %v343, 0.0
    %v360 = vmax.f32 %v344, 0.0
    %v361 = vmax.f32 %v345, 0.0
    %v362 = vmax.f32 %v346, 0.0
    %v363 = vmax.f32 %v347, 0.0
    %v364 = vmax.f32 %v348, 0.0
    %v365 = vmax.f32 %v349, 0.0
    %v366 = vpack.c.bf16 %v351, %v350
    %v367 = vpack.c.bf16 %v353, %v352
    %v368 = vpack.c.bf16 %v355, %v354
    %v369 = vpack.c.bf16 %v357, %v356
    %v370 = vpack.c.bf16 %v359, %v358
    %v371 = vpack.c.bf16 %v361, %v360
    %v372 = vpack.c.bf16 %v363, %v362
    %v373 = vpack.c.bf16 %v365, %v364
    %v382 = vunpack.c.l.b16 %v366
    %v383 = vunpack.c.h.b16 %v366
    %v384 = vunpack.c.l.b16 %v367
    %v385 = vunpack.c.h.b16 %v367
    %v386 = vunpack.c.l.b16 %v368
    %v387 = vunpack.c.h.b16 %v368
    %v388 = vunpack.c.l.b16 %v369
    %v389 = vunpack.c.h.b16 %v369
    %v390 = vunpack.c.l.b16 %v370
    %v391 = vunpack.c.h.b16 %v370
    %v392 = vunpack.c.l.b16 %v371
    %v393 = vunpack.c.h.b16 %v371
    %v394 = vunpack.c.l.b16 %v372
    %v395 = vunpack.c.h.b16 %v372
    %v396 = vunpack.c.l.b16 %v373
    %v397 = vunpack.c.h.b16 %v373
    %v398 = vpack.c.b16 %v382, %v382
    %v399 = vpack.c.b16 %v383, %v383
    %v400 = vpack.c.b16 %v384, %v384
    %v401 = vpack.c.b16 %v385, %v385
    %v402 = vpack.c.b16 %v386, %v386
    %v403 = vpack.c.b16 %v387, %v387
    %v404 = vpack.c.b16 %v388, %v388
    %v405 = vpack.c.b16 %v389, %v389
    %v406 = vpack.c.b16 %v390, %v390
    %v407 = vpack.c.b16 %v391, %v391
    %v408 = vpack.c.b16 %v392, %v392
    %v409 = vpack.c.b16 %v393, %v393
    %v410 = vpack.c.b16 %v394, %v394
    %v411 = vpack.c.b16 %v395, %v395
    %v412 = vpack.c.b16 %v396, %v396
    %v413 = vpack.c.b16 %v397, %v397
    %430 = vst [vmem:[%s3] sm:$0xf] %v398
    %431 = vst [vmem:[%s3 + $0x4] sm:$0xf] %v399
    %432 = vst [vmem:[%s3 + $0x8] sm:$0xf] %v400
    %433 = vst [vmem:[%s3 + $0xc] sm:$0xf] %v401
    %434 = vst [vmem:[%s3 + $0x10] sm:$0xf] %v402
    %435 = vst [vmem:[%s3 + $0x14] sm:$0xf] %v403
    %436 = vst [vmem:[%s3 + $0x18] sm:$0xf] %v404
    %437 = vst [vmem:[%s3 + $0x1c] sm:$0xf] %v405
    %438 = vst [vmem:[%s3 + $0x20] sm:$0xf] %v406
    %439 = vst [vmem:[%s3 + $0x24] sm:$0xf] %v407
    %440 = vst [vmem:[%s3 + $0x28] sm:$0xf] %v408
    %441 = vst [vmem:[%s3 + $0x2c] sm:$0xf] %v409
    %442 = vst [vmem:[%s3 + $0x30] sm:$0xf] %v410
    %443 = vst [vmem:[%s3 + $0x34] sm:$0xf] %v411
    %444 = vst [vmem:[%s3 + $0x38] sm:$0xf] %v412
    %445 = vst [vmem:[%s3 + $0x3c] sm:$0xf] %v413
  $region21: #{vq_vae_forward.16} parent=0 // pred_fallthru
    _
  // Predicated region
  $region22: #{vq_vae_forward.16} parent=0 // pred_check
    _
  $region23: #{vq_vae_forward.16} parent=0 // pred_check_branch
    %447 = sbr.rel (0) target = $region25
  $region24: #{vq_vae_forward.16} parent=0 // pred_region
    _
  $region25: #{vq_vae_forward.16} parent=0 // pred_fallthru
    _
  // Predicated region
  $region26: #{vq_vae_forward.16} parent=0 // pred_check
    _
  $region27: #{vq_vae_forward.16} parent=0 // pred_check_branch
    %449 = sbr.rel (0) target = $region29
  $region28: #{vq_vae_forward.16} parent=0 // pred_region
    _
  $region29: #{vq_vae_forward.16} parent=0 // pred_fallthru
    _

// kernel: vq_vae_forward.17
$region0: #{vq_vae_forward.17}
  #allocation0 [shape = 'u32[]', space=smem, size = 0x4, offset = 0x4, fixed_abs, tag = 'smem constant byte address 0x4 - core index']
  #allocation1 [shape = 'u32[144,128]{1,0:T(1,128)}', space=vmem, size = 0x12000, scoped, tag = 'internal scratch']
  #allocation2 [shape = 'f32[32,128]{1,0:T(8,128)}', space=vmem, size = 0x4000, scoped, tag = 'scratch operand']
  %s0 = inlined_call_operand.vmem [shape: bf16[32,256], index: 0, kind: input, shape index: {}]
  %s1 = inlined_call_operand.vmem [shape: bf16[256,128], index: 1, kind: input, shape index: {}]
  %s2 = inlined_call_operand.vmem [shape: f32[1,128], index: 2, kind: input, shape index: {}]
  %s3 = inlined_call_operand.vmem [shape: bf16[32,128], index: 3, kind: output, shape index: {}]
  %s4 = sld [smem:[#allocation0]]
  $region30: #{vq_vae_forward.17} parent=0
    _
  %s6 = ssub.s32 1, %s4
  %s7 = scalar_select 0, %s6, %s4
  // Predicated region
  $region2: #{vq_vae_forward.17} parent=0 // pred_check
    _
  $region3: #{vq_vae_forward.17} parent=0 // pred_check_branch
    %9 = sbr.rel (0) target = $region5
  $region4: #{vq_vae_forward.17} parent=0 // pred_region
    _
  $region5: #{vq_vae_forward.17} parent=0 // pred_fallthru
    _
  // Predicated region
  $region6: #{vq_vae_forward.17} parent=0 // pred_check
    _
  $region7: #{vq_vae_forward.17} parent=0 // pred_check_branch
    %11 = sbr.rel (0) target = $region9
  $region8: #{vq_vae_forward.17} parent=0 // pred_region
    _
  $region9: #{vq_vae_forward.17} parent=0 // pred_fallthru
    _
  // Predicated region
  $region10: #{vq_vae_forward.17} parent=0 // pred_check
    _
  $region11: #{vq_vae_forward.17} parent=0 // pred_check_branch
    %13 = sbr.rel (0) target = $region13
  $region12: #{vq_vae_forward.17} parent=0 // pred_region
    _
  $region13: #{vq_vae_forward.17} parent=0 // pred_fallthru
    _
  %p15 = scmp.eq.s32.totalorder 0, 0
  // Predicated region
  $region14: #{vq_vae_forward.17} parent=0 // pred_check
    %p16 = pneg %p15
  $region15: #{vq_vae_forward.17} parent=0 // pred_check_branch
    %18 = sbr.rel (%p16) target = $region17
  $region16: #{vq_vae_forward.17} parent=0 // pred_region
    %19 = vst [vmem:[#allocation2] sm:$0xff] 0.0
    %20 = vst [vmem:[#allocation2 + $0x8] sm:$0xff] 0.0
    %21 = vst [vmem:[#allocation2 + $0x10] sm:$0xff] 0.0
    %22 = vst [vmem:[#allocation2 + $0x18] sm:$0xff] 0.0
  $region17: #{vq_vae_forward.17} parent=0 // pred_fallthru
    _
  %v23 = vld [vmem:[%s0] sm:$0xff]
  %v24 = vld [vmem:[%s0 + $0x8] sm:$0xff]
  %v25 = vld [vmem:[%s0 + $0x10] sm:$0xff]
  %v26 = vld [vmem:[%s0 + $0x18] sm:$0xff]
  %v27 = vld [vmem:[#allocation2] sm:$0xff]
  %v28 = vld [vmem:[#allocation2 + $0x8] sm:$0xff]
  %v29 = vld [vmem:[#allocation2 + $0x10] sm:$0xff]
  %v30 = vld [vmem:[#allocation2 + $0x18] sm:$0xff]
  %v31 = vld [vmem:[%s1] sm:$0xf]
  %v32 = vld [vmem:[%s1 + $0x4] sm:$0xf]
  %v33 = vld [vmem:[%s1 + $0x8] sm:$0xf]
  %v34 = vld [vmem:[%s1 + $0xc] sm:$0xf]
  %v35 = vld [vmem:[%s1 + $0x10] sm:$0xf]
  %v36 = vld [vmem:[%s1 + $0x14] sm:$0xf]
  %v37 = vld [vmem:[%s1 + $0x18] sm:$0xf]
  %v38 = vld [vmem:[%s1 + $0x1c] sm:$0xf]
  %v39 = vld [vmem:[%s1 + $0x20] sm:$0xf]
  %v40 = vld [vmem:[%s1 + $0x24] sm:$0xf]
  %v41 = vld [vmem:[%s1 + $0x28] sm:$0xf]
  %v42 = vld [vmem:[%s1 + $0x2c] sm:$0xf]
  %v43 = vld [vmem:[%s1 + $0x30] sm:$0xf]
  %v44 = vld [vmem:[%s1 + $0x34] sm:$0xf]
  %v45 = vld [vmem:[%s1 + $0x38] sm:$0xf]
  %v46 = vld [vmem:[%s1 + $0x3c] sm:$0xf]
  %v47 = vld [vmem:[%s1 + $0x40] sm:$0xf]
  %v48 = vld [vmem:[%s1 + $0x44] sm:$0xf]
  %v49 = vld [vmem:[%s1 + $0x48] sm:$0xf]
  %v50 = vld [vmem:[%s1 + $0x4c] sm:$0xf]
  %v51 = vld [vmem:[%s1 + $0x50] sm:$0xf]
  %v52 = vld [vmem:[%s1 + $0x54] sm:$0xf]
  %v53 = vld [vmem:[%s1 + $0x58] sm:$0xf]
  %v54 = vld [vmem:[%s1 + $0x5c] sm:$0xf]
  %v55 = vld [vmem:[%s1 + $0x60] sm:$0xf]
  %v56 = vld [vmem:[%s1 + $0x64] sm:$0xf]
  %v57 = vld [vmem:[%s1 + $0x68] sm:$0xf]
  %v58 = vld [vmem:[%s1 + $0x6c] sm:$0xf]
  %v59 = vld [vmem:[%s1 + $0x70] sm:$0xf]
  %v60 = vld [vmem:[%s1 + $0x74] sm:$0xf]
  %v61 = vld [vmem:[%s1 + $0x78] sm:$0xf]
  %v62 = vld [vmem:[%s1 + $0x7c] sm:$0xf]
  %v67 = vunpack.c.l.b16 %v23
  %v68 = vunpack.c.h.b16 %v23
  %v69 = vunpack.c.l.b16 %v24
  %v70 = vunpack.c.h.b16 %v24
  %v71 = vunpack.c.l.b16 %v25
  %v72 = vunpack.c.h.b16 %v25
  %v73 = vunpack.c.l.b16 %v26
  %v74 = vunpack.c.h.b16 %v26
  %v75 = vpack.c.b16 %v69, %v67
  %v76 = vpack.c.b16 %v70, %v68
  %v77 = vpack.c.b16 %v73, %v71
  %v78 = vpack.c.b16 %v74, %v72
  %v115 = vunpack.c.l.b16 %v31
  %v116 = vunpack.c.l.b16 %v32
  %v117 = vunpack.c.l.b16 %v33
  %v118 = vunpack.c.l.b16 %v34
  %v119 = vunpack.c.l.b16 %v35
  %v120 = vunpack.c.l.b16 %v36
  %v121 = vunpack.c.l.b16 %v37
  %v122 = vunpack.c.l.b16 %v38
  %v123 = vunpack.c.l.b16 %v39
  %v124 = vunpack.c.l.b16 %v40
  %v125 = vunpack.c.l.b16 %v41
  %v126 = vunpack.c.l.b16 %v42
  %v127 = vunpack.c.l.b16 %v43
  %v128 = vunpack.c.l.b16 %v44
  %v129 = vunpack.c.l.b16 %v45
  %v130 = vunpack.c.l.b16 %v46
  %v131 = vunpack.c.l.b16 %v47
  %v132 = vunpack.c.l.b16 %v48
  %v133 = vunpack.c.l.b16 %v49
  %v134 = vunpack.c.l.b16 %v50
  %v135 = vunpack.c.l.b16 %v51
  %v136 = vunpack.c.l.b16 %v52
  %v137 = vunpack.c.l.b16 %v53
  %v138 = vunpack.c.l.b16 %v54
  %v139 = vunpack.c.l.b16 %v55
  %v140 = vunpack.c.l.b16 %v56
  %v141 = vunpack.c.l.b16 %v57
  %v142 = vunpack.c.l.b16 %v58
  %v143 = vunpack.c.l.b16 %v59
  %v144 = vunpack.c.l.b16 %v60
  %v145 = vunpack.c.l.b16 %v61
  %v146 = vunpack.c.l.b16 %v62
  %v147 = vpack.c.b16 %v116, %v115
  %v148 = vpack.c.b16 %v118, %v117
  %v149 = vpack.c.b16 %v120, %v119
  %v150 = vpack.c.b16 %v122, %v121
  %v151 = vpack.c.b16 %v124, %v123
  %v152 = vpack.c.b16 %v126, %v125
  %v153 = vpack.c.b16 %v128, %v127
  %v154 = vpack.c.b16 %v130, %v129
  %v155 = vpack.c.b16 %v132, %v131
  %v156 = vpack.c.b16 %v134, %v133
  %v157 = vpack.c.b16 %v136, %v135
  %v158 = vpack.c.b16 %v138, %v137
  %v159 = vpack.c.b16 %v140, %v139
  %v160 = vpack.c.b16 %v142, %v141
  %v161 = vpack.c.b16 %v144, %v143
  %v162 = vpack.c.b16 %v146, %v145
  %179 = vmatprep.subr.bf16.mxu0 0
  %180 = vmatpush1.bf16.msra.mxu0 %v147
  %181 = vmatprep.subr.bf16.mxu0 0
  %182 = vmatpush1.bf16.msra.mxu0 %v148
  %183 = vmatprep.subr.bf16.mxu0 0
  %184 = vmatpush1.bf16.msra.mxu0 %v149
  %185 = vmatprep.subr.bf16.mxu0 0
  %186 = vmatpush1.bf16.msra.mxu0 %v150
  %187 = vmatprep.subr.bf16.mxu0 0
  %188 = vmatpush1.bf16.msra.mxu0 %v151
  %189 = vmatprep.subr.bf16.mxu0 0
  %190 = vmatpush1.bf16.msra.mxu0 %v152
  %191 = vmatprep.subr.bf16.mxu0 0
  %192 = vmatpush1.bf16.msra.mxu0 %v153
  %193 = vmatprep.subr.bf16.mxu0 0
  %194 = vmatpush1.bf16.msra.mxu0 %v154
  %195 = vmatprep.subr.bf16.mxu0 0
  %196 = vmatpush1.bf16.msra.mxu0 %v155
  %197 = vmatprep.subr.bf16.mxu0 0
  %198 = vmatpush1.bf16.msra.mxu0 %v156
  %199 = vmatprep.subr.bf16.mxu0 0
  %200 = vmatpush1.bf16.msra.mxu0 %v157
  %201 = vmatprep.subr.bf16.mxu0 0
  %202 = vmatpush1.bf16.msra.mxu0 %v158
  %203 = vmatprep.subr.bf16.mxu0 0
  %204 = vmatpush1.bf16.msra.mxu0 %v159
  %205 = vmatprep.subr.bf16.mxu0 0
  %206 = vmatpush1.bf16.msra.mxu0 %v160
  %207 = vmatprep.subr.bf16.mxu0 0
  %208 = vmatpush1.bf16.msra.mxu0 %v161
  %209 = vmatprep.subr.bf16.mxu0 0
  %210 = vmatpush1.bf16.msra.mxu0 %v162
  %211 = vmatprep.mubr.bf16.mxu0 %v76
  %212 = vmatmul.mubr.bf16.gmra.mrb[0].mxu0 %v75
  %v213 = vpop.f32.mrb[0].mxu0
  %v214 = vadd.f32 0.0, %v213
  %v215 = vpop.f32.mrb[0].mxu0
  %v216 = vpop.f32.mrb[0].mxu0
  %v217 = vadd.f32 0.0, %v216
  %v218 = vpop.f32.mrb[0].mxu0
  %219 = vmatprep.mubr.bf16.mxu0 %v78
  %220 = vmatmul.mubr.bf16.gmra.mrb[0].mxu0 %v77
  %v221 = vpop.f32.mrb[0].mxu0
  %v222 = vadd.f32 0.0, %v221
  %v223 = vpop.f32.mrb[0].mxu0
  %v224 = vpop.f32.mrb[0].mxu0
  %v225 = vadd.f32 0.0, %v224
  %v226 = vpop.f32.mrb[0].mxu0
  %227 = vdwg.mxu0
  %v228 = vadd.f32 %v27, %v214
  %v229 = vadd.f32 %v28, %v217
  %v230 = vadd.f32 %v29, %v222
  %v231 = vadd.f32 %v30, %v225
  %232 = vst [vmem:[#allocation2] sm:$0xff] %v228
  %233 = vst [vmem:[#allocation2 + $0x8] sm:$0xff] %v229
  %234 = vst [vmem:[#allocation2 + $0x10] sm:$0xff] %v230
  %235 = vst [vmem:[#allocation2 + $0x18] sm:$0xff] %v231
  // Predicated region
  $region18: #{vq_vae_forward.17} parent=0 // pred_check
    %p236 = pneg %p15
  $region19: #{vq_vae_forward.17} parent=0 // pred_check_branch
    %238 = sbr.rel (%p236) target = $region21
  $region20: #{vq_vae_forward.17} parent=0 // pred_region
    %v239 = vld [vmem:[#allocation2] sm:$0xff]
    %v240 = vld [vmem:[#allocation2 + $0x8] sm:$0xff]
    %v241 = vld [vmem:[#allocation2 + $0x10] sm:$0xff]
    %v242 = vld [vmem:[#allocation2 + $0x18] sm:$0xff]
    %v243 = vld [vmem:[%s2] sm:$0x1]
    %v245 = vlaneseq
    %v246 = vshrl.u32 %v245, 7
    %v247 = vsub.s32 0, %v246
    %v248 = vrot.slane %v243, %v247
    %v250 = vadd.f32 %v239, %v248
    %v251 = vadd.f32 %v240, %v248
    %v252 = vadd.f32 %v241, %v248
    %v253 = vadd.f32 %v242, %v248
    %v254 = vmax.f32 %v250, 0.0
    %v255 = vmax.f32 %v251, 0.0
    %v256 = vmax.f32 %v252, 0.0
    %v257 = vmax.f32 %v253, 0.0
    %v258 = vpack.c.bf16 %v255, %v254
    %v259 = vpack.c.bf16 %v257, %v256
    %v262 = vunpack.c.l.b16 %v258
    %v263 = vunpack.c.h.b16 %v258
    %v264 = vunpack.c.l.b16 %v259
    %v265 = vunpack.c.h.b16 %v259
    %v266 = vpack.c.b16 %v262, %v262
    %v267 = vpack.c.b16 %v263, %v263
    %v268 = vpack.c.b16 %v264, %v264
    %v269 = vpack.c.b16 %v265, %v265
    %274 = vst [vmem:[%s3] sm:$0xf] %v266
    %275 = vst [vmem:[%s3 + $0x4] sm:$0xf] %v267
    %276 = vst [vmem:[%s3 + $0x8] sm:$0xf] %v268
    %277 = vst [vmem:[%s3 + $0xc] sm:$0xf] %v269
  $region21: #{vq_vae_forward.17} parent=0 // pred_fallthru
    _
  // Predicated region
  $region22: #{vq_vae_forward.17} parent=0 // pred_check
    _
  $region23: #{vq_vae_forward.17} parent=0 // pred_check_branch
    %279 = sbr.rel (0) target = $region25
  $region24: #{vq_vae_forward.17} parent=0 // pred_region
    _
  $region25: #{vq_vae_forward.17} parent=0 // pred_fallthru
    _
  // Predicated region
  $region26: #{vq_vae_forward.17} parent=0 // pred_check
    _
  $region27: #{vq_vae_forward.17} parent=0 // pred_check_branch
    %281 = sbr.rel (0) target = $region29
  $region28: #{vq_vae_forward.17} parent=0 // pred_region
    _
  $region29: #{vq_vae_forward.17} parent=0 // pred_fallthru
    _

// kernel: vq_vae_forward.18
$region0: #{vq_vae_forward.18}
  #allocation0 [shape = 'u32[]', space=smem, size = 0x4, offset = 0x4, fixed_abs, tag = 'smem constant byte address 0x4 - core index']
  #allocation1 [shape = 'u32[144,128]{1,0:T(1,128)}', space=vmem, size = 0x12000, scoped, tag = 'internal scratch']
  #allocation2 [shape = 'f32[32,128]{1,0:T(8,128)}', space=vmem, size = 0x4000, scoped, tag = 'scratch operand']
  %s0 = inlined_call_operand.vmem [shape: bf16[32,384], index: 0, kind: input, shape index: {}]
  %s1 = inlined_call_operand.vmem [shape: bf16[384,128], index: 1, kind: input, shape index: {}]
  %s2 = inlined_call_operand.vmem [shape: f32[1,128], index: 2, kind: input, shape index: {}]
  %s3 = inlined_call_operand.vmem [shape: bf16[32,128], index: 3, kind: output, shape index: {}]
  %s4 = sld [smem:[#allocation0]]
  $region94: #{vq_vae_forward.18} parent=0
    _
  %s6 = ssub.s32 1, %s4
  %s7 = scalar_select 0, %s6, %s4
  $region1: #{vq_vae_forward.18} parent=0
    #allocation3 [shape = 'u8[16384]{0}', space=vmem, size = 0x4000, scoped, tag = 'input window, operand 0']
    loop: start=0, step=1, limit=5
    $region2: #{vq_vae_forward.18} parent=1 // loop_pre_header
      _
    $region3: #{vq_vae_forward.18} parent=1 // loop_header
      %s9 = sphi 0, %s13
      %p10 = scmp.ge.s32.totalorder %s9, 5
      %s16 = sphi 0, %s35
      %s17 = sphi 0, %s31
      %s18 = sphi 0, %s27
      %s19 = sphi 0, %s16
      %s20 = sphi 0, %s17
      %s21 = sphi 0, %s18
      %s22 = sphi 0, %s19
      %s23 = sphi 0, %s20
      %s24 = sphi 0, %s21
      %s40 = sphi 0, %s42
      %s43 = sphi 0, %s40
      %s44 = sphi 0, %s43
      %s60 = sphi 0, %s44
      %s68 = sphi 0, %s70
      %s71 = sphi 0, %s68
      %s72 = sphi 0, %s71
      %s88 = sphi 0, %s72
      %s94 = sphi 0, %s96
      %s97 = sphi 0, %s94
      %s98 = sphi 0, %s97
      %s114 = sphi 0, %s98
      %s122 = sphi 0, %s124
      %s125 = sphi 0, %s122
      %s126 = sphi 0, %s125
      %s142 = sphi 0, %s126
    $region4: #{vq_vae_forward.18} parent=1 // loop_header_branch
      %12 = sbr.rel (%p10) target = $region8
    $region5: #{vq_vae_forward.18} parent=1 // loop_body
      %s14 = ssub.s32 %s9, 1
      %s15 = ssub.s32 %s9, 2
      %s25 = sadd.s32 1, %s18
      %p26 = scmp.ge.s32.totalorder %s25, 3
      %s27 = scalar_select %p26, 0, %s25
      %s28 = sadd.s32 1, %s17
      %s29 = scalar_select %p26, %s28, %s17
      %p30 = scmp.ge.s32.totalorder %s29, 1
      %s31 = scalar_select %p30, 0, %s29
      %s32 = sadd.s32 1, %s16
      %s33 = scalar_select %p30, %s32, %s16
      %p34 = scmp.ge.s32.totalorder %s33, 1
      %s35 = scalar_select %p34, 0, %s33
      %s36 = ssub.s32 %s16, %s35
      %s37 = ssub.s32 %s18, %s27
      %s38 = sor.u32 %s36, %s37
      %p39 = scmp.eq.s32.totalorder %s38, 0
      %s41 = sadd.s32 %s40, 1
      %s42 = scalar_select %p39, %s40, %s41
      %p45 = pneg %p39
      %p46 = scmp.eq.s32.totalorder %s9, 2
      %p47 = por %p45, %p46
      %p48 = scmp.ne.s32.totalorder %s40, %s43
      %p49 = scmp.eq.s32.totalorder %s9, 0
      %p50 = por %p48, %p49
      %p51 = scmp.ne.s32.totalorder %s40, %s43
      %p52 = scmp.eq.s32.totalorder %s14, 2
      %p53 = por %p51, %p52
      %p54 = scmp.ne.s32.totalorder %s43, %s44
      %p55 = scmp.eq.s32.totalorder %s14, 0
      %p56 = por %p54, %p55
      %p57 = scmp.ne.s32.totalorder %s43, %s44
      %p58 = scmp.eq.s32.totalorder %s15, 2
      %p59 = por %p57, %p58
      %p61 = scmp.ne.s32.totalorder %s44, %s60
      %p62 = scmp.eq.s32.totalorder %s15, 0
      %p63 = por %p61, %p62
      %s64 = ssub.s32 %s18, %s27
      %s65 = ssub.s32 %s17, %s31
      %s66 = sor.u32 %s64, %s65
      %p67 = scmp.eq.s32.totalorder %s66, 0
      %s69 = sadd.s32 %s68, 1
      %s70 = scalar_select %p67, %s68, %s69
      %p73 = pneg %p67
      %p74 = scmp.eq.s32.totalorder %s9, 2
      %p75 = por %p73, %p74
      %p76 = scmp.ne.s32.totalorder %s68, %s71
      %p77 = scmp.eq.s32.totalorder %s9, 0
      %p78 = por %p76, %p77
      %p79 = scmp.ne.s32.totalorder %s68, %s71
      %p80 = scmp.eq.s32.totalorder %s14, 2
      %p81 = por %p79, %p80
      %p82 = scmp.ne.s32.totalorder %s71, %s72
      %p83 = scmp.eq.s32.totalorder %s14, 0
      %p84 = por %p82, %p83
      %p85 = scmp.ne.s32.totalorder %s71, %s72
      %p86 = scmp.eq.s32.totalorder %s15, 2
      %p87 = por %p85, %p86
      %p89 = scmp.ne.s32.totalorder %s72, %s88
      %p90 = scmp.eq.s32.totalorder %s15, 0
      %p91 = por %p89, %p90
      %s92 = ssub.s32 %s17, %s31
      %p93 = scmp.eq.s32.totalorder %s92, 0
      %s95 = sadd.s32 %s94, 1
      %s96 = scalar_select %p93, %s94, %s95
      %p99 = pneg %p93
      %p100 = scmp.eq.s32.totalorder %s9, 2
      %p101 = por %p99, %p100
      %p102 = scmp.ne.s32.totalorder %s94, %s97
      %p103 = scmp.eq.s32.totalorder %s9, 0
      %p104 = por %p102, %p103
      %p105 = scmp.ne.s32.totalorder %s94, %s97
      %p106 = scmp.eq.s32.totalorder %s14, 2
      %p107 = por %p105, %p106
      %p108 = scmp.ne.s32.totalorder %s97, %s98
      %p109 = scmp.eq.s32.totalorder %s14, 0
      %p110 = por %p108, %p109
      %p111 = scmp.ne.s32.totalorder %s97, %s98
      %p112 = scmp.eq.s32.totalorder %s15, 2
      %p113 = por %p111, %p112
      %p115 = scmp.ne.s32.totalorder %s98, %s114
      %p116 = scmp.eq.s32.totalorder %s15, 0
      %p117 = por %p115, %p116
      %s118 = ssub.s32 %s16, %s35
      %s119 = ssub.s32 %s17, %s31
      %s120 = sor.u32 %s118, %s119
      %p121 = scmp.eq.s32.totalorder %s120, 0
      %s123 = sadd.s32 %s122, 1
      %s124 = scalar_select %p121, %s122, %s123
      %p127 = pneg %p121
      %p128 = scmp.eq.s32.totalorder %s9, 2
      %p129 = por %p127, %p128
      %p130 = scmp.ne.s32.totalorder %s122, %s125
      %p131 = scmp.eq.s32.totalorder %s9, 0
      %p132 = por %p130, %p131
      %p133 = scmp.ne.s32.totalorder %s122, %s125
      %p134 = scmp.eq.s32.totalorder %s14, 2
      %p135 = por %p133, %p134
      %p136 = scmp.ne.s32.totalorder %s125, %s126
      %p137 = scmp.eq.s32.totalorder %s14, 0
      %p138 = por %p136, %p137
      %p139 = scmp.ne.s32.totalorder %s125, %s126
      %p140 = scmp.eq.s32.totalorder %s15, 2
      %p141 = por %p139, %p140
      %p143 = scmp.ne.s32.totalorder %s126, %s142
      %p144 = scmp.eq.s32.totalorder %s15, 0
      %p145 = por %p143, %p144
      %p146 = scmp.le.s32.totalorder 1, %s9
      %p147 = scmp.lt.s32.totalorder %s9, 4
      %p148 = pnand %p146, %p147
      %p149 = pneg %p148
      // Predicated region
      $region9: #{vq_vae_forward.18} parent=5 // pred_check
        _
      $region10: #{vq_vae_forward.18} parent=5 // pred_check_branch
        %151 = sbr.rel (%p148) target = $region12
      $region11: #{vq_vae_forward.18} parent=5 // pred_region
        %s152 = ssub.s32 %s9, 1
        // Predicated region
        $region13: #{vq_vae_forward.18} parent=11 // pred_check
          %p153 = pneg %p110
        $region14: #{vq_vae_forward.18} parent=11 // pred_check_branch
          %155 = sbr.rel (%p153) target = $region16
        $region15: #{vq_vae_forward.18} parent=11 // pred_region
          %p156 = scmp.lt.s32.totalorder %s20, 0
          %s157 = scalar_select %p156, %s20, 0
          %s158 = scalar_lea.vmem %s2, %s157
        $region16: #{vq_vae_forward.18} parent=11 // pred_fallthru
          _
      $region12: #{vq_vae_forward.18} parent=5 // pred_fallthru
        _
      %p159 = scmp.lt.s32.totalorder %s9, 3
      // Predicated region
      $region17: #{vq_vae_forward.18} parent=5 // pred_check
        %p160 = pneg %p159
      $region18: #{vq_vae_forward.18} parent=5 // pred_check_branch
        %162 = sbr.rel (%p160) target = $region20
      $region19: #{vq_vae_forward.18} parent=5 // pred_region
        // Predicated region
        $region21: #{vq_vae_forward.18} parent=19 // pred_check
          %p163 = pneg %p50
        $region22: #{vq_vae_forward.18} parent=19 // pred_check_branch
          %165 = sbr.rel (%p163) target = $region24
        $region23: #{vq_vae_forward.18} parent=19 // pred_region
          %s166 = sand.u32 %s40, 1
          %s167 = sand.u32 %s40, 1
          %s168 = smul.addr %s167, 16
          %s169 = scalar_lea.vmem [#allocation3], %s168
          %s170 = smul.u32 4, %s16
          %s171 = smul.addr %s170, 3
          %s172 = sadd.s32 %s18, %s171
          %s173 = smul.addr %s172, 4
          %s174 = scalar_lea.vmem %s0, %s173
          // Predicated region
          $region25: #{vq_vae_forward.18} parent=23 // pred_check
            _
          $region26: #{vq_vae_forward.18} parent=23 // pred_check_branch
            %176 = sbr.rel (0) target = $region28
          $region27: #{vq_vae_forward.18} parent=23 // pred_region
            // Predicated region
            $region29: #{vq_vae_forward.18} parent=27 // pred_check
              _
            $region30: #{vq_vae_forward.18} parent=27 // pred_check_branch
              %178 = sbr.rel target = $region32
            $region31: #{vq_vae_forward.18} parent=27 // pred_region
              // Predicated region
              $region44: #{vq_vae_forward.18} parent=31 // pred_check
                _
              $region45: #{vq_vae_forward.18} parent=31 // pred_check_branch
                %199 = sbr.rel (0) target = $region47
              $region46: #{vq_vae_forward.18} parent=31 // pred_region
                loop: start=0, step=1, limit=1
                $region48: #{vq_vae_forward.18} parent=46 // loop_pre_header
                  _
                $region49: #{vq_vae_forward.18} parent=46 // loop_header
                  %s201 = sphi 0, %s205
                  %p202 = scmp.ge.s32.totalorder %s201, 1
                  %s206 = sphi %s174, %s174
                  %s207 = sphi %s169, %s169
                $region50: #{vq_vae_forward.18} parent=46 // loop_header_branch
                  %204 = sbr.rel (%p202) target = $region54
                $region51: #{vq_vae_forward.18} parent=46 // loop_body
                  _
                $region52: #{vq_vae_forward.18} parent=46 // loop_footer
                  %s205 = sadd.s32 1, %s201
                $region53: #{vq_vae_forward.18} parent=46 // loop_footer_branch
                  %200 = sbr.rel target = $region49
                $region54: #{vq_vae_forward.18} parent=46 // loop_exit
                  _
                loop: start=0, step=1, limit=1
                $region55: #{vq_vae_forward.18} parent=46 // loop_pre_header
                  _
                $region56: #{vq_vae_forward.18} parent=46 // loop_header
                  %s210 = sphi 0, %s214
                  %p211 = scmp.ge.s32.totalorder %s210, 1
                  %s215 = sphi %s174, %s174
                  %s216 = sphi %s169, %s169
                $region57: #{vq_vae_forward.18} parent=46 // loop_header_branch
                  %213 = sbr.rel (%p211) target = $region61
                $region58: #{vq_vae_forward.18} parent=46 // loop_body
                  %v217 = vld [vmem:[%s215] sm:$0xf]
                  %218 = vst [vmem:[%s216] sm:$0xf] %v217
                  %v219 = vld [vmem:[%s215 + $0xc] sm:$0xf]
                  %220 = vst [vmem:[%s216 + $0x4] sm:$0xf] %v219
                  %v221 = vld [vmem:[%s215 + $0x18] sm:$0xf]
                  %222 = vst [vmem:[%s216 + $0x8] sm:$0xf] %v221
                  %v223 = vld [vmem:[%s215 + $0x24] sm:$0xf]
                  %224 = vst [vmem:[%s216 + $0xc] sm:$0xf] %v223
                $region59: #{vq_vae_forward.18} parent=46 // loop_footer
                  %s214 = sadd.s32 1, %s210
                $region60: #{vq_vae_forward.18} parent=46 // loop_footer_branch
                  %209 = sbr.rel target = $region56
                $region61: #{vq_vae_forward.18} parent=46 // loop_exit
                  _
              $region47: #{vq_vae_forward.18} parent=31 // pred_fallthru
                _
            $region32: #{vq_vae_forward.18} parent=27 // pred_fallthru
              _
            // Predicated region
            $region33: #{vq_vae_forward.18} parent=27 // pred_check
              _
            $region34: #{vq_vae_forward.18} parent=27 // pred_check_branch
              %180 = sbr.rel (0) target = $region36
            $region35: #{vq_vae_forward.18} parent=27 // pred_region
              loop: start=0, step=1, limit=1
              $region37: #{vq_vae_forward.18} parent=35 // loop_pre_header
                _
              $region38: #{vq_vae_forward.18} parent=35 // loop_header
                %s183 = sphi 0, %s187
                %p184 = scmp.ge.s32.totalorder %s183, 1
                %s188 = sphi %s174, %s174
                %s189 = sphi %s169, %s169
              $region39: #{vq_vae_forward.18} parent=35 // loop_header_branch
                %186 = sbr.rel (%p184) target = $region43
              $region40: #{vq_vae_forward.18} parent=35 // loop_body
                %v190 = vld [vmem:[%s188] sm:$0xf]
                %191 = vst [vmem:[%s189] sm:$0xf] %v190
                %v192 = vld [vmem:[%s188 + $0xc] sm:$0xf]
                %193 = vst [vmem:[%s189 + $0x4] sm:$0xf] %v192
                %v194 = vld [vmem:[%s188 + $0x18] sm:$0xf]
                %195 = vst [vmem:[%s189 + $0x8] sm:$0xf] %v194
                %v196 = vld [vmem:[%s188 + $0x24] sm:$0xf]
                %197 = vst [vmem:[%s189 + $0xc] sm:$0xf] %v196
              $region41: #{vq_vae_forward.18} parent=35 // loop_footer
                %s187 = sadd.s32 1, %s183
              $region42: #{vq_vae_forward.18} parent=35 // loop_footer_branch
                %182 = sbr.rel target = $region38
              $region43: #{vq_vae_forward.18} parent=35 // loop_exit
                _
            $region36: #{vq_vae_forward.18} parent=27 // pred_fallthru
              _
          $region28: #{vq_vae_forward.18} parent=23 // pred_fallthru
            _
          %225 = vnop
        $region24: #{vq_vae_forward.18} parent=19 // pred_fallthru
          _
        // Predicated region
        $region62: #{vq_vae_forward.18} parent=19 // pred_check
          %p226 = pneg %p78
        $region63: #{vq_vae_forward.18} parent=19 // pred_check_branch
          %228 = sbr.rel (%p226) target = $region65
        $region64: #{vq_vae_forward.18} parent=19 // pred_region
          %s229 = smul.u32 16, %s18
          %p230 = scmp.lt.s32.totalorder %s229, 47
          %s231 = scalar_select %p230, %s229, 47
          %p232 = scmp.lt.s32.totalorder %s17, 0
          %s233 = scalar_select %p232, %s17, 0
          %s234 = sadd.s32 %s233, %s231
          %s235 = smul.addr %s234, 4
          %s236 = scalar_lea.vmem %s1, %s235
          %s237 = smul.u32 16, %s18
        $region65: #{vq_vae_forward.18} parent=19 // pred_fallthru
          _
      $region20: #{vq_vae_forward.18} parent=5 // pred_fallthru
        _
      %p238 = scmp.le.s32.totalorder 1, %s9
      %p239 = scmp.lt.s32.totalorder %s9, 4
      %p240 = pnand %p238, %p239
      %p241 = pneg %p240
      // Predicated region
      $region66: #{vq_vae_forward.18} parent=5 // pred_check
        _
      $region67: #{vq_vae_forward.18} parent=5 // pred_check_branch
        %243 = sbr.rel (%p240) target = $region69
      $region68: #{vq_vae_forward.18} parent=5 // pred_region
        %s244 = ssub.s32 %s9, 1
        %s245 = sand.u32 %s43, 1
        %s246 = sand.u32 %s43, 1
        %s247 = smul.addr %s246, 16
        %s248 = scalar_lea.vmem [#allocation3], %s247
        // Predicated region
        $region70: #{vq_vae_forward.18} parent=68 // pred_check
          %p249 = pneg %p56
        $region71: #{vq_vae_forward.18} parent=68 // pred_check_branch
          %251 = sbr.rel (%p249) target = $region73
        $region72: #{vq_vae_forward.18} parent=68 // pred_region
          _
        $region73: #{vq_vae_forward.18} parent=68 // pred_fallthru
          _
        %s252 = sand.u32 %s43, 1
        %s253 = sand.u32 %s43, 1
        %s254 = smul.addr %s253, 16
        %s255 = scalar_lea.vmem [#allocation3], %s254
        %p256 = pneg %p56
        %p257 = pneg %p53
        %s258 = smul.u32 16, %s21
        %p259 = scmp.lt.s32.totalorder %s258, 47
        %s260 = scalar_select %p259, %s258, 47
        %p261 = scmp.lt.s32.totalorder %s20, 0
        %s262 = scalar_select %p261, %s20, 0
        %s263 = sadd.s32 %s262, %s260
        %s264 = smul.addr %s263, 4
        %s265 = scalar_lea.vmem %s1, %s264
        %p266 = pneg %p84
        %p267 = pneg %p81
        %p268 = scmp.lt.s32.totalorder %s20, 0
        %s269 = scalar_select %p268, %s20, 0
        %s270 = scalar_lea.vmem %s2, %s269
        %p271 = pneg %p110
        %p272 = pneg %p107
        %p273 = pneg %p138
        %p274 = pneg %p135
        %s275 = smul.u32 4, %s19
        %p276 = scmp.lt.s32.totalorder %s275, 3
        %s277 = scalar_select %p276, %s275, 3
        %p278 = scmp.lt.s32.totalorder %s20, 0
        %s279 = scalar_select %p278, %s20, 0
        %s280 = sadd.s32 %s279, %s277
        %s281 = smul.addr %s280, 4
        %s282 = scalar_lea.vmem %s3, %s281
        %s283 = smul.u32 4, %s19
        %s284 = smul.u32 16, %s21
        %p285 = scmp.lt.s32.totalorder %s284, 47
        %s286 = scalar_select %p285, %s284, 47
        %p287 = scmp.lt.s32.totalorder %s20, 0
        %s288 = scalar_select %p287, %s20, 0
        %s289 = sadd.s32 %s288, %s286
        %s290 = smul.addr %s289, 4
        %s291 = scalar_lea.vmem %s1, %s290
        %s292 = smul.u32 16, %s21
        %p293 = scmp.lt.s32.totalorder %s20, 0
        %s294 = scalar_select %p293, %s20, 0
        %s295 = scalar_lea.vmem %s2, %s294
        %s296 = smul.u32 4, %s19
        %p297 = scmp.lt.s32.totalorder %s296, 3
        %s298 = scalar_select %p297, %s296, 3
        %p299 = scmp.lt.s32.totalorder %s20, 0
        %s300 = scalar_select %p299, %s20, 0
        %s301 = sadd.s32 %s300, %s298
        %s302 = smul.addr %s301, 4
        %s303 = scalar_lea.vmem %s3, %s302
        %s304 = smul.u32 4, %s19
        %p306 = scmp.eq.s32.totalorder %s21, 0
        // Predicated region
        $region74: #{vq_vae_forward.18} parent=68 // pred_check
          %p307 = pneg %p306
        $region75: #{vq_vae_forward.18} parent=68 // pred_check_branch
          %309 = sbr.rel (%p307) target = $region77
        $region76: #{vq_vae_forward.18} parent=68 // pred_region
          %310 = vst [vmem:[#allocation2] sm:$0xff] 0.0
          %311 = vst [vmem:[#allocation2 + $0x8] sm:$0xff] 0.0
          %312 = vst [vmem:[#allocation2 + $0x10] sm:$0xff] 0.0
          %313 = vst [vmem:[#allocation2 + $0x18] sm:$0xff] 0.0
        $region77: #{vq_vae_forward.18} parent=68 // pred_fallthru
          _
        %v314 = vld [vmem:[%s248] sm:$0xf]
        %v315 = vld [vmem:[%s248 + $0x4] sm:$0xf]
        %v316 = vld [vmem:[%s248 + $0x8] sm:$0xf]
        %v317 = vld [vmem:[%s248 + $0xc] sm:$0xf]
        %v318 = vld [vmem:[#allocation2] sm:$0xff]
        %v319 = vld [vmem:[#allocation2 + $0x8] sm:$0xff]
        %v320 = vld [vmem:[#allocation2 + $0x10] sm:$0xff]
        %v321 = vld [vmem:[#allocation2 + $0x18] sm:$0xff]
        %v322 = vld [vmem:[%s291] sm:$0xf]
        %v323 = vld [vmem:[%s291 + $0x4] sm:$0xf]
        %v324 = vld [vmem:[%s291 + $0x8] sm:$0xf]
        %v325 = vld [vmem:[%s291 + $0xc] sm:$0xf]
        %v326 = vld [vmem:[%s291 + $0x10] sm:$0xf]
        %v327 = vld [vmem:[%s291 + $0x14] sm:$0xf]
        %v328 = vld [vmem:[%s291 + $0x18] sm:$0xf]
        %v329 = vld [vmem:[%s291 + $0x1c] sm:$0xf]
        %v330 = vld [vmem:[%s291 + $0x20] sm:$0xf]
        %v331 = vld [vmem:[%s291 + $0x24] sm:$0xf]
        %v332 = vld [vmem:[%s291 + $0x28] sm:$0xf]
        %v333 = vld [vmem:[%s291 + $0x2c] sm:$0xf]
        %v334 = vld [vmem:[%s291 + $0x30] sm:$0xf]
        %v335 = vld [vmem:[%s291 + $0x34] sm:$0xf]
        %v336 = vld [vmem:[%s291 + $0x38] sm:$0xf]
        %v337 = vld [vmem:[%s291 + $0x3c] sm:$0xf]
        %v342 = vunpack.c.l.b16 %v314
        %v343 = vunpack.c.l.b16 %v315
        %v344 = vunpack.c.l.b16 %v316
        %v345 = vunpack.c.l.b16 %v317
        %v346 = vpack.c.b16 %v343, %v342
        %v347 = vpack.c.b16 %v345, %v344
        %v366 = vunpack.c.l.b16 %v322
        %v367 = vunpack.c.l.b16 %v323
        %v368 = vunpack.c.l.b16 %v324
        %v369 = vunpack.c.l.b16 %v325
        %v370 = vunpack.c.l.b16 %v326
        %v371 = vunpack.c.l.b16 %v327
        %v372 = vunpack.c.l.b16 %v328
        %v373 = vunpack.c.l.b16 %v329
        %v374 = vunpack.c.l.b16 %v330
        %v375 = vunpack.c.l.b16 %v331
        %v376 = vunpack.c.l.b16 %v332
        %v377 = vunpack.c.l.b16 %v333
        %v378 = vunpack.c.l.b16 %v334
        %v379 = vunpack.c.l.b16 %v335
        %v380 = vunpack.c.l.b16 %v336
        %v381 = vunpack.c.l.b16 %v337
        %v382 = vpack.c.b16 %v367, %v366
        %v383 = vpack.c.b16 %v369, %v368
        %v384 = vpack.c.b16 %v371, %v370
        %v385 = vpack.c.b16 %v373, %v372
        %v386 = vpack.c.b16 %v375, %v374
        %v387 = vpack.c.b16 %v377, %v376
        %v388 = vpack.c.b16 %v379, %v378
        %v389 = vpack.c.b16 %v381, %v380
        %398 = vmatprep.subr.bf16.mxu0 0
        %399 = vmatpush1.bf16.msra.mxu0 %v382
        %400 = vmatprep.subr.bf16.mxu0 0
        %401 = vmatpush1.bf16.msra.mxu0 %v383
        %402 = vmatprep.subr.bf16.mxu0 0
        %403 = vmatpush1.bf16.msra.mxu0 %v384
        %404 = vmatprep.subr.bf16.mxu0 0
        %405 = vmatpush1.bf16.msra.mxu0 %v385
        %406 = vmatprep.subr.bf16.mxu0 0
        %407 = vmatpush1.bf16.msra.mxu0 %v386
        %408 = vmatprep.subr.bf16.mxu0 0
        %409 = vmatpush1.bf16.msra.mxu0 %v387
        %410 = vmatprep.subr.bf16.mxu0 0
        %411 = vmatpush1.bf16.msra.mxu0 %v388
        %412 = vmatprep.subr.bf16.mxu0 0
        %413 = vmatpush1.bf16.msra.mxu0 %v389
        %414 = vmatprep.subr.bf16.mxu0 0
        %415 = vmatpush1.bf16.msra.mxu0 0
        %416 = vmatprep.subr.bf16.mxu0 0
        %417 = vmatpush1.bf16.msra.mxu0 0
        %418 = vmatprep.subr.bf16.mxu0 0
        %419 = vmatpush1.bf16.msra.mxu0 0
        %420 = vmatprep.subr.bf16.mxu0 0
        %421 = vmatpush1.bf16.msra.mxu0 0
        %422 = vmatprep.subr.bf16.mxu0 0
        %423 = vmatpush1.bf16.msra.mxu0 0
        %424 = vmatprep.subr.bf16.mxu0 0
        %425 = vmatpush1.bf16.msra.mxu0 0
        %426 = vmatprep.subr.bf16.mxu0 0
        %427 = vmatpush1.bf16.msra.mxu0 0
        %428 = vmatprep.subr.bf16.mxu0 0
        %429 = vmatpush1.bf16.msra.mxu0 0
        %430 = vmatprep.mubr.bf16.mxu0 0
        %431 = vmatmul.mubr.bf16.gmra.mrb[0].mxu0 %v346
        %v432 = vpop.f32.mrb[0].mxu0
        %v433 = vadd.f32 0.0, %v432
        %v434 = vpop.f32.mrb[0].mxu0
        %v435 = vpop.f32.mrb[0].mxu0
        %v436 = vadd.f32 0.0, %v435
        %v437 = vpop.f32.mrb[0].mxu0
        %438 = vmatprep.mubr.bf16.mxu0 0
        %439 = vmatmul.mubr.bf16.gmra.mrb[0].mxu0 %v347
        %v440 = vpop.f32.mrb[0].mxu0
        %v441 = vadd.f32 0.0, %v440
        %v442 = vpop.f32.mrb[0].mxu0
        %v443 = vpop.f32.mrb[0].mxu0
        %v444 = vadd.f32 0.0, %v443
        %v445 = vpop.f32.mrb[0].mxu0
        %446 = vdwg.mxu0
        %v447 = vadd.f32 %v318, %v433
        %v448 = vadd.f32 %v319, %v436
        %v449 = vadd.f32 %v320, %v441
        %v450 = vadd.f32 %v321, %v444
        %451 = vst [vmem:[#allocation2] sm:$0xff] %v447
        %452 = vst [vmem:[#allocation2 + $0x8] sm:$0xff] %v448
        %453 = vst [vmem:[#allocation2 + $0x10] sm:$0xff] %v449
        %454 = vst [vmem:[#allocation2 + $0x18] sm:$0xff] %v450
        %p455 = scmp.eq.s32.totalorder %s21, 2
        // Predicated region
        $region78: #{vq_vae_forward.18} parent=68 // pred_check
          %p456 = pneg %p455
        $region79: #{vq_vae_forward.18} parent=68 // pred_check_branch
          %458 = sbr.rel (%p456) target = $region81
        $region80: #{vq_vae_forward.18} parent=68 // pred_region
          %v459 = vld [vmem:[#allocation2] sm:$0xff]
          %v460 = vld [vmem:[#allocation2 + $0x8] sm:$0xff]
          %v461 = vld [vmem:[#allocation2 + $0x10] sm:$0xff]
          %v462 = vld [vmem:[#allocation2 + $0x18] sm:$0xff]
          %v463 = vld [vmem:[%s295] sm:$0x1]
          %v465 = vlaneseq
          %v466 = vshrl.u32 %v465, 7
          %v467 = vsub.s32 0, %v466
          %v468 = vrot.slane %v463, %v467
          %v470 = vadd.f32 %v459, %v468
          %v471 = vadd.f32 %v460, %v468
          %v472 = vadd.f32 %v461, %v468
          %v473 = vadd.f32 %v462, %v468
          %v474 = vpack.c.bf16 %v471, %v470
          %v475 = vpack.c.bf16 %v473, %v472
          %v478 = vunpack.c.l.b16 %v474
          %v479 = vunpack.c.h.b16 %v474
          %v480 = vunpack.c.l.b16 %v475
          %v481 = vunpack.c.h.b16 %v475
          %v482 = vpack.c.b16 %v478, %v478
          %v483 = vpack.c.b16 %v479, %v479
          %v484 = vpack.c.b16 %v480, %v480
          %v485 = vpack.c.b16 %v481, %v481
          %490 = vst [vmem:[%s303] sm:$0xf] %v482
          %491 = vst [vmem:[%s303 + $0x4] sm:$0xf] %v483
          %492 = vst [vmem:[%s303 + $0x8] sm:$0xf] %v484
          %493 = vst [vmem:[%s303 + $0xc] sm:$0xf] %v485
        $region81: #{vq_vae_forward.18} parent=68 // pred_fallthru
          _
        %s494 = smul.u32 4, %s19
        %p495 = scmp.lt.s32.totalorder %s494, 3
        %s496 = scalar_select %p495, %s494, 3
        %p497 = scmp.lt.s32.totalorder %s20, 0
        %s498 = scalar_select %p497, %s20, 0
        %s499 = sadd.s32 %s498, %s496
        %s500 = smul.addr %s499, 4
        %s501 = scalar_lea.vmem %s3, %s500
        // Predicated region
        $region82: #{vq_vae_forward.18} parent=68 // pred_check
          %p502 = pneg %p135
        $region83: #{vq_vae_forward.18} parent=68 // pred_check_branch
          %504 = sbr.rel (%p502) target = $region85
        $region84: #{vq_vae_forward.18} parent=68 // pred_region
          %s505 = smul.u32 4, %s19
        $region85: #{vq_vae_forward.18} parent=68 // pred_fallthru
          _
        // Predicated region
        $region86: #{vq_vae_forward.18} parent=68 // pred_check
          %p506 = pneg %p135
        $region87: #{vq_vae_forward.18} parent=68 // pred_check_branch
          %508 = sbr.rel (%p506) target = $region89
        $region88: #{vq_vae_forward.18} parent=68 // pred_region
          %s509 = smul.u32 4, %s19
          %p510 = scmp.lt.s32.totalorder %s509, 3
          %s511 = scalar_select %p510, %s509, 3
          %p512 = scmp.lt.s32.totalorder %s20, 0
          %s513 = scalar_select %p512, %s20, 0
          %s514 = sadd.s32 %s513, %s511
          %s515 = smul.addr %s514, 4
          %s516 = scalar_lea.vmem %s3, %s515
        $region89: #{vq_vae_forward.18} parent=68 // pred_fallthru
          _
      $region69: #{vq_vae_forward.18} parent=5 // pred_fallthru
        _
      %p517 = scmp.le.s32.totalorder 2, %s9
      // Predicated region
      $region90: #{vq_vae_forward.18} parent=5 // pred_check
        %p518 = pneg %p517
      $region91: #{vq_vae_forward.18} parent=5 // pred_check_branch
        %520 = sbr.rel (%p518) target = $region93
      $region92: #{vq_vae_forward.18} parent=5 // pred_region
        %s521 = ssub.s32 %s9, 2
      $region93: #{vq_vae_forward.18} parent=5 // pred_fallthru
        _
    $region6: #{vq_vae_forward.18} parent=1 // loop_footer
      %s13 = sadd.s32 1, %s9
    $region7: #{vq_vae_forward.18} parent=1 // loop_footer_branch
      %8 = sbr.rel target = $region3
    $region8: #{vq_vae_forward.18} parent=1 // loop_exit
      _

// kernel: vq_vae_forward.20
$region0: #{vq_vae_forward.20}
  #allocation0 [shape = 'u32[]', space=smem, size = 0x4, offset = 0x4, fixed_abs, tag = 'smem constant byte address 0x4 - core index']
  #allocation1 [shape = 'u32[144,128]{1,0:T(1,128)}', space=vmem, size = 0x12000, scoped, tag = 'internal scratch']
  #allocation2 [shape = 'f32[32,128]{1,0:T(8,128)}', space=vmem, size = 0x4000, scoped, tag = 'scratch operand']
  %s0 = inlined_call_operand.vmem [shape: bf16[32,128], index: 0, kind: input, shape index: {}]
  %s1 = inlined_call_operand.vmem [shape: bf16[128,128], index: 1, kind: input, shape index: {}]
  %s2 = inlined_call_operand.vmem [shape: f32[1,128], index: 2, kind: input, shape index: {}]
  %s3 = inlined_call_operand.vmem [shape: bf16[32,128], index: 3, kind: output, shape index: {}]
  %s4 = sld [smem:[#allocation0]]
  $region30: #{vq_vae_forward.20} parent=0
    _
  %s6 = ssub.s32 1, %s4
  %s7 = scalar_select 0, %s6, %s4
  // Predicated region
  $region2: #{vq_vae_forward.20} parent=0 // pred_check
    _
  $region3: #{vq_vae_forward.20} parent=0 // pred_check_branch
    %9 = sbr.rel (0) target = $region5
  $region4: #{vq_vae_forward.20} parent=0 // pred_region
    _
  $region5: #{vq_vae_forward.20} parent=0 // pred_fallthru
    _
  // Predicated region
  $region6: #{vq_vae_forward.20} parent=0 // pred_check
    _
  $region7: #{vq_vae_forward.20} parent=0 // pred_check_branch
    %11 = sbr.rel (0) target = $region9
  $region8: #{vq_vae_forward.20} parent=0 // pred_region
    _
  $region9: #{vq_vae_forward.20} parent=0 // pred_fallthru
    _
  // Predicated region
  $region10: #{vq_vae_forward.20} parent=0 // pred_check
    _
  $region11: #{vq_vae_forward.20} parent=0 // pred_check_branch
    %13 = sbr.rel (0) target = $region13
  $region12: #{vq_vae_forward.20} parent=0 // pred_region
    _
  $region13: #{vq_vae_forward.20} parent=0 // pred_fallthru
    _
  %p15 = scmp.eq.s32.totalorder 0, 0
  // Predicated region
  $region14: #{vq_vae_forward.20} parent=0 // pred_check
    %p16 = pneg %p15
  $region15: #{vq_vae_forward.20} parent=0 // pred_check_branch
    %18 = sbr.rel (%p16) target = $region17
  $region16: #{vq_vae_forward.20} parent=0 // pred_region
    %19 = vst [vmem:[#allocation2] sm:$0xff] 0.0
    %20 = vst [vmem:[#allocation2 + $0x8] sm:$0xff] 0.0
    %21 = vst [vmem:[#allocation2 + $0x10] sm:$0xff] 0.0
    %22 = vst [vmem:[#allocation2 + $0x18] sm:$0xff] 0.0
  $region17: #{vq_vae_forward.20} parent=0 // pred_fallthru
    _
  %v23 = vld [vmem:[%s0] sm:$0xf]
  %v24 = vld [vmem:[%s0 + $0x4] sm:$0xf]
  %v25 = vld [vmem:[%s0 + $0x8] sm:$0xf]
  %v26 = vld [vmem:[%s0 + $0xc] sm:$0xf]
  %v27 = vmax.bf16 %v23, 0
  %v28 = vmax.bf16 %v24, 0
  %v29 = vmax.bf16 %v25, 0
  %v30 = vmax.bf16 %v26, 0
  %v31 = vld [vmem:[#allocation2] sm:$0xff]
  %v32 = vld [vmem:[#allocation2 + $0x8] sm:$0xff]
  %v33 = vld [vmem:[#allocation2 + $0x10] sm:$0xff]
  %v34 = vld [vmem:[#allocation2 + $0x18] sm:$0xff]
  %v35 = vld [vmem:[%s1] sm:$0xf]
  %v36 = vld [vmem:[%s1 + $0x4] sm:$0xf]
  %v37 = vld [vmem:[%s1 + $0x8] sm:$0xf]
  %v38 = vld [vmem:[%s1 + $0xc] sm:$0xf]
  %v39 = vld [vmem:[%s1 + $0x10] sm:$0xf]
  %v40 = vld [vmem:[%s1 + $0x14] sm:$0xf]
  %v41 = vld [vmem:[%s1 + $0x18] sm:$0xf]
  %v42 = vld [vmem:[%s1 + $0x1c] sm:$0xf]
  %v43 = vld [vmem:[%s1 + $0x20] sm:$0xf]
  %v44 = vld [vmem:[%s1 + $0x24] sm:$0xf]
  %v45 = vld [vmem:[%s1 + $0x28] sm:$0xf]
  %v46 = vld [vmem:[%s1 + $0x2c] sm:$0xf]
  %v47 = vld [vmem:[%s1 + $0x30] sm:$0xf]
  %v48 = vld [vmem:[%s1 + $0x34] sm:$0xf]
  %v49 = vld [vmem:[%s1 + $0x38] sm:$0xf]
  %v50 = vld [vmem:[%s1 + $0x3c] sm:$0xf]
  %v55 = vunpack.c.l.b16 %v27
  %v56 = vunpack.c.l.b16 %v28
  %v57 = vunpack.c.l.b16 %v29
  %v58 = vunpack.c.l.b16 %v30
  %v59 = vpack.c.b16 %v56, %v55
  %v60 = vpack.c.b16 %v58, %v57
  %v79 = vunpack.c.l.b16 %v35
  %v80 = vunpack.c.l.b16 %v36
  %v81 = vunpack.c.l.b16 %v37
  %v82 = vunpack.c.l.b16 %v38
  %v83 = vunpack.c.l.b16 %v39
  %v84 = vunpack.c.l.b16 %v40
  %v85 = vunpack.c.l.b16 %v41
  %v86 = vunpack.c.l.b16 %v42
  %v87 = vunpack.c.l.b16 %v43
  %v88 = vunpack.c.l.b16 %v44
  %v89 = vunpack.c.l.b16 %v45
  %v90 = vunpack.c.l.b16 %v46
  %v91 = vunpack.c.l.b16 %v47
  %v92 = vunpack.c.l.b16 %v48
  %v93 = vunpack.c.l.b16 %v49
  %v94 = vunpack.c.l.b16 %v50
  %v95 = vpack.c.b16 %v80, %v79
  %v96 = vpack.c.b16 %v82, %v81
  %v97 = vpack.c.b16 %v84, %v83
  %v98 = vpack.c.b16 %v86, %v85
  %v99 = vpack.c.b16 %v88, %v87
  %v100 = vpack.c.b16 %v90, %v89
  %v101 = vpack.c.b16 %v92, %v91
  %v102 = vpack.c.b16 %v94, %v93
  %111 = vmatprep.subr.bf16.mxu0 0
  %112 = vmatpush1.bf16.msra.mxu0 %v95
  %113 = vmatprep.subr.bf16.mxu0 0
  %114 = vmatpush1.bf16.msra.mxu0 %v96
  %115 = vmatprep.subr.bf16.mxu0 0
  %116 = vmatpush1.bf16.msra.mxu0 %v97
  %117 = vmatprep.subr.bf16.mxu0 0
  %118 = vmatpush1.bf16.msra.mxu0 %v98
  %119 = vmatprep.subr.bf16.mxu0 0
  %120 = vmatpush1.bf16.msra.mxu0 %v99
  %121 = vmatprep.subr.bf16.mxu0 0
  %122 = vmatpush1.bf16.msra.mxu0 %v100
  %123 = vmatprep.subr.bf16.mxu0 0
  %124 = vmatpush1.bf16.msra.mxu0 %v101
  %125 = vmatprep.subr.bf16.mxu0 0
  %126 = vmatpush1.bf16.msra.mxu0 %v102
  %127 = vmatprep.subr.bf16.mxu0 0
  %128 = vmatpush1.bf16.msra.mxu0 0
  %129 = vmatprep.subr.bf16.mxu0 0
  %130 = vmatpush1.bf16.msra.mxu0 0
  %131 = vmatprep.subr.bf16.mxu0 0
  %132 = vmatpush1.bf16.msra.mxu0 0
  %133 = vmatprep.subr.bf16.mxu0 0
  %134 = vmatpush1.bf16.msra.mxu0 0
  %135 = vmatprep.subr.bf16.mxu0 0
  %136 = vmatpush1.bf16.msra.mxu0 0
  %137 = vmatprep.subr.bf16.mxu0 0
  %138 = vmatpush1.bf16.msra.mxu0 0
  %139 = vmatprep.subr.bf16.mxu0 0
  %140 = vmatpush1.bf16.msra.mxu0 0
  %141 = vmatprep.subr.bf16.mxu0 0
  %142 = vmatpush1.bf16.msra.mxu0 0
  %143 = vmatprep.mubr.bf16.mxu0 0
  %144 = vmatmul.mubr.bf16.gmra.mrb[0].mxu0 %v59
  %v145 = vpop.f32.mrb[0].mxu0
  %v146 = vadd.f32 0.0, %v145
  %v147 = vpop.f32.mrb[0].mxu0
  %v148 = vpop.f32.mrb[0].mxu0
  %v149 = vadd.f32 0.0, %v148
  %v150 = vpop.f32.mrb[0].mxu0
  %151 = vmatprep.mubr.bf16.mxu0 0
  %152 = vmatmul.mubr.bf16.gmra.mrb[0].mxu0 %v60
  %v153 = vpop.f32.mrb[0].mxu0
  %v154 = vadd.f32 0.0, %v153
  %v155 = vpop.f32.mrb[0].mxu0
  %v156 = vpop.f32.mrb[0].mxu0
  %v157 = vadd.f32 0.0, %v156
  %v158 = vpop.f32.mrb[0].mxu0
  %159 = vdwg.mxu0
  %v160 = vadd.f32 %v31, %v146
  %v161 = vadd.f32 %v32, %v149
  %v162 = vadd.f32 %v33, %v154
  %v163 = vadd.f32 %v34, %v157
  %164 = vst [vmem:[#allocation2] sm:$0xff] %v160
  %165 = vst [vmem:[#allocation2 + $0x8] sm:$0xff] %v161
  %166 = vst [vmem:[#allocation2 + $0x10] sm:$0xff] %v162
  %167 = vst [vmem:[#allocation2 + $0x18] sm:$0xff] %v163
  // Predicated region
  $region18: #{vq_vae_forward.20} parent=0 // pred_check
    %p168 = pneg %p15
  $region19: #{vq_vae_forward.20} parent=0 // pred_check_branch
    %170 = sbr.rel (%p168) target = $region21
  $region20: #{vq_vae_forward.20} parent=0 // pred_region
    %v171 = vld [vmem:[#allocation2] sm:$0xff]
    %v172 = vld [vmem:[#allocation2 + $0x8] sm:$0xff]
    %v173 = vld [vmem:[#allocation2 + $0x10] sm:$0xff]
    %v174 = vld [vmem:[#allocation2 + $0x18] sm:$0xff]
    %v175 = vld [vmem:[%s2] sm:$0x1]
    %v177 = vlaneseq
    %v178 = vshrl.u32 %v177, 7
    %v179 = vsub.s32 0, %v178
    %v180 = vrot.slane %v175, %v179
    %v182 = vadd.f32 %v171, %v180
    %v183 = vadd.f32 %v172, %v180
    %v184 = vadd.f32 %v173, %v180
    %v185 = vadd.f32 %v174, %v180
    %v186 = vpack.c.bf16 %v183, %v182
    %v187 = vpack.c.bf16 %v185, %v184
    %v190 = vunpack.c.l.b16 %v186
    %v191 = vunpack.c.h.b16 %v186
    %v192 = vunpack.c.l.b16 %v187
    %v193 = vunpack.c.h.b16 %v187
    %v194 = vpack.c.b16 %v190, %v190
    %v195 = vpack.c.b16 %v191, %v191
    %v196 = vpack.c.b16 %v192, %v192
    %v197 = vpack.c.b16 %v193, %v193
    %202 = vst [vmem:[%s3] sm:$0xf] %v194
    %203 = vst [vmem:[%s3 + $0x4] sm:$0xf] %v195
    %204 = vst [vmem:[%s3 + $0x8] sm:$0xf] %v196
    %205 = vst [vmem:[%s3 + $0xc] sm:$0xf] %v197
  $region21: #{vq_vae_forward.20} parent=0 // pred_fallthru
    _
  // Predicated region
  $region22: #{vq_vae_forward.20} parent=0 // pred_check
    _
  $region23: #{vq_vae_forward.20} parent=0 // pred_check_branch
    %207 = sbr.rel (0) target = $region25
  $region24: #{vq_vae_forward.20} parent=0 // pred_region
    _
  $region25: #{vq_vae_forward.20} parent=0 // pred_fallthru
    _
  // Predicated region
  $region26: #{vq_vae_forward.20} parent=0 // pred_check
    _
  $region27: #{vq_vae_forward.20} parent=0 // pred_check_branch
    %209 = sbr.rel (0) target = $region29
  $region28: #{vq_vae_forward.20} parent=0 // pred_region
    _
  $region29: #{vq_vae_forward.20} parent=0 // pred_fallthru
    _

// kernel: vq_vae_forward.19
$region0: #{vq_vae_forward.19}
  #allocation0 [shape = 'u32[]', space=smem, size = 0x4, offset = 0x4, fixed_abs, tag = 'smem constant byte address 0x4 - core index']
  #allocation1 [shape = 'u32[144,128]{1,0:T(1,128)}', space=vmem, size = 0x12000, scoped, tag = 'internal scratch']
  #allocation2 [shape = 'f32[32,128]{1,0:T(8,128)}', space=vmem, size = 0x4000, scoped, tag = 'scratch operand']
  %s0 = inlined_call_operand.vmem [shape: bf16[32,384], index: 0, kind: input, shape index: {}]
  %s1 = inlined_call_operand.vmem [shape: bf16[384,128], index: 1, kind: input, shape index: {}]
  %s2 = inlined_call_operand.vmem [shape: f32[1,128], index: 2, kind: input, shape index: {}]
  %s3 = inlined_call_operand.vmem [shape: bf16[32,128], index: 3, kind: output, shape index: {}]
  %s4 = sld [smem:[#allocation0]]
  $region94: #{vq_vae_forward.19} parent=0
    _
  %s6 = ssub.s32 1, %s4
  %s7 = scalar_select 0, %s6, %s4
  $region1: #{vq_vae_forward.19} parent=0
    #allocation3 [shape = 'u8[16384]{0}', space=vmem, size = 0x4000, scoped, tag = 'input window, operand 0']
    loop: start=0, step=1, limit=5
    $region2: #{vq_vae_forward.19} parent=1 // loop_pre_header
      _
    $region3: #{vq_vae_forward.19} parent=1 // loop_header
      %s9 = sphi 0, %s13
      %p10 = scmp.ge.s32.totalorder %s9, 5
      %s16 = sphi 0, %s35
      %s17 = sphi 0, %s31
      %s18 = sphi 0, %s27
      %s19 = sphi 0, %s16
      %s20 = sphi 0, %s17
      %s21 = sphi 0, %s18
      %s22 = sphi 0, %s19
      %s23 = sphi 0, %s20
      %s24 = sphi 0, %s21
      %s40 = sphi 0, %s42
      %s43 = sphi 0, %s40
      %s44 = sphi 0, %s43
      %s60 = sphi 0, %s44
      %s68 = sphi 0, %s70
      %s71 = sphi 0, %s68
      %s72 = sphi 0, %s71
      %s88 = sphi 0, %s72
      %s94 = sphi 0, %s96
      %s97 = sphi 0, %s94
      %s98 = sphi 0, %s97
      %s114 = sphi 0, %s98
      %s122 = sphi 0, %s124
      %s125 = sphi 0, %s122
      %s126 = sphi 0, %s125
      %s142 = sphi 0, %s126
    $region4: #{vq_vae_forward.19} parent=1 // loop_header_branch
      %12 = sbr.rel (%p10) target = $region8
    $region5: #{vq_vae_forward.19} parent=1 // loop_body
      %s14 = ssub.s32 %s9, 1
      %s15 = ssub.s32 %s9, 2
      %s25 = sadd.s32 1, %s18
      %p26 = scmp.ge.s32.totalorder %s25, 3
      %s27 = scalar_select %p26, 0, %s25
      %s28 = sadd.s32 1, %s17
      %s29 = scalar_select %p26, %s28, %s17
      %p30 = scmp.ge.s32.totalorder %s29, 1
      %s31 = scalar_select %p30, 0, %s29
      %s32 = sadd.s32 1, %s16
      %s33 = scalar_select %p30, %s32, %s16
      %p34 = scmp.ge.s32.totalorder %s33, 1
      %s35 = scalar_select %p34, 0, %s33
      %s36 = ssub.s32 %s16, %s35
      %s37 = ssub.s32 %s18, %s27
      %s38 = sor.u32 %s36, %s37
      %p39 = scmp.eq.s32.totalorder %s38, 0
      %s41 = sadd.s32 %s40, 1
      %s42 = scalar_select %p39, %s40, %s41
      %p45 = pneg %p39
      %p46 = scmp.eq.s32.totalorder %s9, 2
      %p47 = por %p45, %p46
      %p48 = scmp.ne.s32.totalorder %s40, %s43
      %p49 = scmp.eq.s32.totalorder %s9, 0
      %p50 = por %p48, %p49
      %p51 = scmp.ne.s32.totalorder %s40, %s43
      %p52 = scmp.eq.s32.totalorder %s14, 2
      %p53 = por %p51, %p52
      %p54 = scmp.ne.s32.totalorder %s43, %s44
      %p55 = scmp.eq.s32.totalorder %s14, 0
      %p56 = por %p54, %p55
      %p57 = scmp.ne.s32.totalorder %s43, %s44
      %p58 = scmp.eq.s32.totalorder %s15, 2
      %p59 = por %p57, %p58
      %p61 = scmp.ne.s32.totalorder %s44, %s60
      %p62 = scmp.eq.s32.totalorder %s15, 0
      %p63 = por %p61, %p62
      %s64 = ssub.s32 %s18, %s27
      %s65 = ssub.s32 %s17, %s31
      %s66 = sor.u32 %s64, %s65
      %p67 = scmp.eq.s32.totalorder %s66, 0
      %s69 = sadd.s32 %s68, 1
      %s70 = scalar_select %p67, %s68, %s69
      %p73 = pneg %p67
      %p74 = scmp.eq.s32.totalorder %s9, 2
      %p75 = por %p73, %p74
      %p76 = scmp.ne.s32.totalorder %s68, %s71
      %p77 = scmp.eq.s32.totalorder %s9, 0
      %p78 = por %p76, %p77
      %p79 = scmp.ne.s32.totalorder %s68, %s71
      %p80 = scmp.eq.s32.totalorder %s14, 2
      %p81 = por %p79, %p80
      %p82 = scmp.ne.s32.totalorder %s71, %s72
      %p83 = scmp.eq.s32.totalorder %s14, 0
      %p84 = por %p82, %p83
      %p85 = scmp.ne.s32.totalorder %s71, %s72
      %p86 = scmp.eq.s32.totalorder %s15, 2
      %p87 = por %p85, %p86
      %p89 = scmp.ne.s32.totalorder %s72, %s88
      %p90 = scmp.eq.s32.totalorder %s15, 0
      %p91 = por %p89, %p90
      %s92 = ssub.s32 %s17, %s31
      %p93 = scmp.eq.s32.totalorder %s92, 0
      %s95 = sadd.s32 %s94, 1
      %s96 = scalar_select %p93, %s94, %s95
      %p99 = pneg %p93
      %p100 = scmp.eq.s32.totalorder %s9, 2
      %p101 = por %p99, %p100
      %p102 = scmp.ne.s32.totalorder %s94, %s97
      %p103 = scmp.eq.s32.totalorder %s9, 0
      %p104 = por %p102, %p103
      %p105 = scmp.ne.s32.totalorder %s94, %s97
      %p106 = scmp.eq.s32.totalorder %s14, 2
      %p107 = por %p105, %p106
      %p108 = scmp.ne.s32.totalorder %s97, %s98
      %p109 = scmp.eq.s32.totalorder %s14, 0
      %p110 = por %p108, %p109
      %p111 = scmp.ne.s32.totalorder %s97, %s98
      %p112 = scmp.eq.s32.totalorder %s15, 2
      %p113 = por %p111, %p112
      %p115 = scmp.ne.s32.totalorder %s98, %s114
      %p116 = scmp.eq.s32.totalorder %s15, 0
      %p117 = por %p115, %p116
      %s118 = ssub.s32 %s16, %s35
      %s119 = ssub.s32 %s17, %s31
      %s120 = sor.u32 %s118, %s119
      %p121 = scmp.eq.s32.totalorder %s120, 0
      %s123 = sadd.s32 %s122, 1
      %s124 = scalar_select %p121, %s122, %s123
      %p127 = pneg %p121
      %p128 = scmp.eq.s32.totalorder %s9, 2
      %p129 = por %p127, %p128
      %p130 = scmp.ne.s32.totalorder %s122, %s125
      %p131 = scmp.eq.s32.totalorder %s9, 0
      %p132 = por %p130, %p131
      %p133 = scmp.ne.s32.totalorder %s122, %s125
      %p134 = scmp.eq.s32.totalorder %s14, 2
      %p135 = por %p133, %p134
      %p136 = scmp.ne.s32.totalorder %s125, %s126
      %p137 = scmp.eq.s32.totalorder %s14, 0
      %p138 = por %p136, %p137
      %p139 = scmp.ne.s32.totalorder %s125, %s126
      %p140 = scmp.eq.s32.totalorder %s15, 2
      %p141 = por %p139, %p140
      %p143 = scmp.ne.s32.totalorder %s126, %s142
      %p144 = scmp.eq.s32.totalorder %s15, 0
      %p145 = por %p143, %p144
      %p146 = scmp.le.s32.totalorder 1, %s9
      %p147 = scmp.lt.s32.totalorder %s9, 4
      %p148 = pnand %p146, %p147
      %p149 = pneg %p148
      // Predicated region
      $region9: #{vq_vae_forward.19} parent=5 // pred_check
        _
      $region10: #{vq_vae_forward.19} parent=5 // pred_check_branch
        %151 = sbr.rel (%p148) target = $region12
      $region11: #{vq_vae_forward.19} parent=5 // pred_region
        %s152 = ssub.s32 %s9, 1
        // Predicated region
        $region13: #{vq_vae_forward.19} parent=11 // pred_check
          %p153 = pneg %p110
        $region14: #{vq_vae_forward.19} parent=11 // pred_check_branch
          %155 = sbr.rel (%p153) target = $region16
        $region15: #{vq_vae_forward.19} parent=11 // pred_region
          %p156 = scmp.lt.s32.totalorder %s20, 0
          %s157 = scalar_select %p156, %s20, 0
          %s158 = scalar_lea.vmem %s2, %s157
        $region16: #{vq_vae_forward.19} parent=11 // pred_fallthru
          _
      $region12: #{vq_vae_forward.19} parent=5 // pred_fallthru
        _
      %p159 = scmp.lt.s32.totalorder %s9, 3
      // Predicated region
      $region17: #{vq_vae_forward.19} parent=5 // pred_check
        %p160 = pneg %p159
      $region18: #{vq_vae_forward.19} parent=5 // pred_check_branch
        %162 = sbr.rel (%p160) target = $region20
      $region19: #{vq_vae_forward.19} parent=5 // pred_region
        // Predicated region
        $region21: #{vq_vae_forward.19} parent=19 // pred_check
          %p163 = pneg %p50
        $region22: #{vq_vae_forward.19} parent=19 // pred_check_branch
          %165 = sbr.rel (%p163) target = $region24
        $region23: #{vq_vae_forward.19} parent=19 // pred_region
          %s166 = sand.u32 %s40, 1
          %s167 = sand.u32 %s40, 1
          %s168 = smul.addr %s167, 16
          %s169 = scalar_lea.vmem [#allocation3], %s168
          %s170 = smul.u32 4, %s16
          %s171 = smul.addr %s170, 3
          %s172 = sadd.s32 %s18, %s171
          %s173 = smul.addr %s172, 4
          %s174 = scalar_lea.vmem %s0, %s173
          // Predicated region
          $region25: #{vq_vae_forward.19} parent=23 // pred_check
            _
          $region26: #{vq_vae_forward.19} parent=23 // pred_check_branch
            %176 = sbr.rel (0) target = $region28
          $region27: #{vq_vae_forward.19} parent=23 // pred_region
            // Predicated region
            $region29: #{vq_vae_forward.19} parent=27 // pred_check
              _
            $region30: #{vq_vae_forward.19} parent=27 // pred_check_branch
              %178 = sbr.rel target = $region32
            $region31: #{vq_vae_forward.19} parent=27 // pred_region
              // Predicated region
              $region44: #{vq_vae_forward.19} parent=31 // pred_check
                _
              $region45: #{vq_vae_forward.19} parent=31 // pred_check_branch
                %199 = sbr.rel (0) target = $region47
              $region46: #{vq_vae_forward.19} parent=31 // pred_region
                loop: start=0, step=1, limit=1
                $region48: #{vq_vae_forward.19} parent=46 // loop_pre_header
                  _
                $region49: #{vq_vae_forward.19} parent=46 // loop_header
                  %s201 = sphi 0, %s205
                  %p202 = scmp.ge.s32.totalorder %s201, 1
                  %s206 = sphi %s174, %s174
                  %s207 = sphi %s169, %s169
                $region50: #{vq_vae_forward.19} parent=46 // loop_header_branch
                  %204 = sbr.rel (%p202) target = $region54
                $region51: #{vq_vae_forward.19} parent=46 // loop_body
                  _
                $region52: #{vq_vae_forward.19} parent=46 // loop_footer
                  %s205 = sadd.s32 1, %s201
                $region53: #{vq_vae_forward.19} parent=46 // loop_footer_branch
                  %200 = sbr.rel target = $region49
                $region54: #{vq_vae_forward.19} parent=46 // loop_exit
                  _
                loop: start=0, step=1, limit=1
                $region55: #{vq_vae_forward.19} parent=46 // loop_pre_header
                  _
                $region56: #{vq_vae_forward.19} parent=46 // loop_header
                  %s210 = sphi 0, %s214
                  %p211 = scmp.ge.s32.totalorder %s210, 1
                  %s215 = sphi %s174, %s174
                  %s216 = sphi %s169, %s169
                $region57: #{vq_vae_forward.19} parent=46 // loop_header_branch
                  %213 = sbr.rel (%p211) target = $region61
                $region58: #{vq_vae_forward.19} parent=46 // loop_body
                  %v217 = vld [vmem:[%s215] sm:$0xf]
                  %218 = vst [vmem:[%s216] sm:$0xf] %v217
                  %v219 = vld [vmem:[%s215 + $0xc] sm:$0xf]
                  %220 = vst [vmem:[%s216 + $0x4] sm:$0xf] %v219
                  %v221 = vld [vmem:[%s215 + $0x18] sm:$0xf]
                  %222 = vst [vmem:[%s216 + $0x8] sm:$0xf] %v221
                  %v223 = vld [vmem:[%s215 + $0x24] sm:$0xf]
                  %224 = vst [vmem:[%s216 + $0xc] sm:$0xf] %v223
                $region59: #{vq_vae_forward.19} parent=46 // loop_footer
                  %s214 = sadd.s32 1, %s210
                $region60: #{vq_vae_forward.19} parent=46 // loop_footer_branch
                  %209 = sbr.rel target = $region56
                $region61: #{vq_vae_forward.19} parent=46 // loop_exit
                  _
              $region47: #{vq_vae_forward.19} parent=31 // pred_fallthru
                _
            $region32: #{vq_vae_forward.19} parent=27 // pred_fallthru
              _
            // Predicated region
            $region33: #{vq_vae_forward.19} parent=27 // pred_check
              _
            $region34: #{vq_vae_forward.19} parent=27 // pred_check_branch
              %180 = sbr.rel (0) target = $region36
            $region35: #{vq_vae_forward.19} parent=27 // pred_region
              loop: start=0, step=1, limit=1
              $region37: #{vq_vae_forward.19} parent=35 // loop_pre_header
                _
              $region38: #{vq_vae_forward.19} parent=35 // loop_header
                %s183 = sphi 0, %s187
                %p184 = scmp.ge.s32.totalorder %s183, 1
                %s188 = sphi %s174, %s174
                %s189 = sphi %s169, %s169
              $region39: #{vq_vae_forward.19} parent=35 // loop_header_branch
                %186 = sbr.rel (%p184) target = $region43
              $region40: #{vq_vae_forward.19} parent=35 // loop_body
                %v190 = vld [vmem:[%s188] sm:$0xf]
                %191 = vst [vmem:[%s189] sm:$0xf] %v190
                %v192 = vld [vmem:[%s188 + $0xc] sm:$0xf]
                %193 = vst [vmem:[%s189 + $0x4] sm:$0xf] %v192
                %v194 = vld [vmem:[%s188 + $0x18] sm:$0xf]
                %195 = vst [vmem:[%s189 + $0x8] sm:$0xf] %v194
                %v196 = vld [vmem:[%s188 + $0x24] sm:$0xf]
                %197 = vst [vmem:[%s189 + $0xc] sm:$0xf] %v196
              $region41: #{vq_vae_forward.19} parent=35 // loop_footer
                %s187 = sadd.s32 1, %s183
              $region42: #{vq_vae_forward.19} parent=35 // loop_footer_branch
                %182 = sbr.rel target = $region38
              $region43: #{vq_vae_forward.19} parent=35 // loop_exit
                _
            $region36: #{vq_vae_forward.19} parent=27 // pred_fallthru
              _
          $region28: #{vq_vae_forward.19} parent=23 // pred_fallthru
            _
          %225 = vnop
        $region24: #{vq_vae_forward.19} parent=19 // pred_fallthru
          _
        // Predicated region
        $region62: #{vq_vae_forward.19} parent=19 // pred_check
          %p226 = pneg %p78
        $region63: #{vq_vae_forward.19} parent=19 // pred_check_branch
          %228 = sbr.rel (%p226) target = $region65
        $region64: #{vq_vae_forward.19} parent=19 // pred_region
          %s229 = smul.u32 16, %s18
          %p230 = scmp.lt.s32.totalorder %s229, 47
          %s231 = scalar_select %p230, %s229, 47
          %p232 = scmp.lt.s32.totalorder %s17, 0
          %s233 = scalar_select %p232, %s17, 0
          %s234 = sadd.s32 %s233, %s231
          %s235 = smul.addr %s234, 4
          %s236 = scalar_lea.vmem %s1, %s235
          %s237 = smul.u32 16, %s18
        $region65: #{vq_vae_forward.19} parent=19 // pred_fallthru
          _
      $region20: #{vq_vae_forward.19} parent=5 // pred_fallthru
        _
      %p238 = scmp.le.s32.totalorder 1, %s9
      %p239 = scmp.lt.s32.totalorder %s9, 4
      %p240 = pnand %p238, %p239
      %p241 = pneg %p240
      // Predicated region
      $region66: #{vq_vae_forward.19} parent=5 // pred_check
        _
      $region67: #{vq_vae_forward.19} parent=5 // pred_check_branch
        %243 = sbr.rel (%p240) target = $region69
      $region68: #{vq_vae_forward.19} parent=5 // pred_region
        %s244 = ssub.s32 %s9, 1
        %s245 = sand.u32 %s43, 1
        %s246 = sand.u32 %s43, 1
        %s247 = smul.addr %s246, 16
        %s248 = scalar_lea.vmem [#allocation3], %s247
        // Predicated region
        $region70: #{vq_vae_forward.19} parent=68 // pred_check
          %p249 = pneg %p56
        $region71: #{vq_vae_forward.19} parent=68 // pred_check_branch
          %251 = sbr.rel (%p249) target = $region73
        $region72: #{vq_vae_forward.19} parent=68 // pred_region
          _
        $region73: #{vq_vae_forward.19} parent=68 // pred_fallthru
          _
        %s252 = sand.u32 %s43, 1
        %s253 = sand.u32 %s43, 1
        %s254 = smul.addr %s253, 16
        %s255 = scalar_lea.vmem [#allocation3], %s254
        %p256 = pneg %p56
        %p257 = pneg %p53
        %s258 = smul.u32 16, %s21
        %p259 = scmp.lt.s32.totalorder %s258, 47
        %s260 = scalar_select %p259, %s258, 47
        %p261 = scmp.lt.s32.totalorder %s20, 0
        %s262 = scalar_select %p261, %s20, 0
        %s263 = sadd.s32 %s262, %s260
        %s264 = smul.addr %s263, 4
        %s265 = scalar_lea.vmem %s1, %s264
        %p266 = pneg %p84
        %p267 = pneg %p81
        %p268 = scmp.lt.s32.totalorder %s20, 0
        %s269 = scalar_select %p268, %s20, 0
        %s270 = scalar_lea.vmem %s2, %s269
        %p271 = pneg %p110
        %p272 = pneg %p107
        %p273 = pneg %p138
        %p274 = pneg %p135
        %s275 = smul.u32 4, %s19
        %p276 = scmp.lt.s32.totalorder %s275, 3
        %s277 = scalar_select %p276, %s275, 3
        %p278 = scmp.lt.s32.totalorder %s20, 0
        %s279 = scalar_select %p278, %s20, 0
        %s280 = sadd.s32 %s279, %s277
        %s281 = smul.addr %s280, 4
        %s282 = scalar_lea.vmem %s3, %s281
        %s283 = smul.u32 4, %s19
        %s284 = smul.u32 16, %s21
        %p285 = scmp.lt.s32.totalorder %s284, 47
        %s286 = scalar_select %p285, %s284, 47
        %p287 = scmp.lt.s32.totalorder %s20, 0
        %s288 = scalar_select %p287, %s20, 0
        %s289 = sadd.s32 %s288, %s286
        %s290 = smul.addr %s289, 4
        %s291 = scalar_lea.vmem %s1, %s290
        %s292 = smul.u32 16, %s21
        %p293 = scmp.lt.s32.totalorder %s20, 0
        %s294 = scalar_select %p293, %s20, 0
        %s295 = scalar_lea.vmem %s2, %s294
        %s296 = smul.u32 4, %s19
        %p297 = scmp.lt.s32.totalorder %s296, 3
        %s298 = scalar_select %p297, %s296, 3
        %p299 = scmp.lt.s32.totalorder %s20, 0
        %s300 = scalar_select %p299, %s20, 0
        %s301 = sadd.s32 %s300, %s298
        %s302 = smul.addr %s301, 4
        %s303 = scalar_lea.vmem %s3, %s302
        %s304 = smul.u32 4, %s19
        %p306 = scmp.eq.s32.totalorder %s21, 0
        // Predicated region
        $region74: #{vq_vae_forward.19} parent=68 // pred_check
          %p307 = pneg %p306
        $region75: #{vq_vae_forward.19} parent=68 // pred_check_branch
          %309 = sbr.rel (%p307) target = $region77
        $region76: #{vq_vae_forward.19} parent=68 // pred_region
          %310 = vst [vmem:[#allocation2] sm:$0xff] 0.0
          %311 = vst [vmem:[#allocation2 + $0x8] sm:$0xff] 0.0
          %312 = vst [vmem:[#allocation2 + $0x10] sm:$0xff] 0.0
          %313 = vst [vmem:[#allocation2 + $0x18] sm:$0xff] 0.0
        $region77: #{vq_vae_forward.19} parent=68 // pred_fallthru
          _
        %v314 = vld [vmem:[%s248] sm:$0xf]
        %v315 = vld [vmem:[%s248 + $0x4] sm:$0xf]
        %v316 = vld [vmem:[%s248 + $0x8] sm:$0xf]
        %v317 = vld [vmem:[%s248 + $0xc] sm:$0xf]
        %v318 = vmax.bf16 %v314, 0
        %v319 = vmax.bf16 %v315, 0
        %v320 = vmax.bf16 %v316, 0
        %v321 = vmax.bf16 %v317, 0
        %v322 = vld [vmem:[#allocation2] sm:$0xff]
        %v323 = vld [vmem:[#allocation2 + $0x8] sm:$0xff]
        %v324 = vld [vmem:[#allocation2 + $0x10] sm:$0xff]
        %v325 = vld [vmem:[#allocation2 + $0x18] sm:$0xff]
        %v326 = vld [vmem:[%s291] sm:$0xf]
        %v327 = vld [vmem:[%s291 + $0x4] sm:$0xf]
        %v328 = vld [vmem:[%s291 + $0x8] sm:$0xf]
        %v329 = vld [vmem:[%s291 + $0xc] sm:$0xf]
        %v330 = vld [vmem:[%s291 + $0x10] sm:$0xf]
        %v331 = vld [vmem:[%s291 + $0x14] sm:$0xf]
        %v332 = vld [vmem:[%s291 + $0x18] sm:$0xf]
        %v333 = vld [vmem:[%s291 + $0x1c] sm:$0xf]
        %v334 = vld [vmem:[%s291 + $0x20] sm:$0xf]
        %v335 = vld [vmem:[%s291 + $0x24] sm:$0xf]
        %v336 = vld [vmem:[%s291 + $0x28] sm:$0xf]
        %v337 = vld [vmem:[%s291 + $0x2c] sm:$0xf]
        %v338 = vld [vmem:[%s291 + $0x30] sm:$0xf]
        %v339 = vld [vmem:[%s291 + $0x34] sm:$0xf]
        %v340 = vld [vmem:[%s291 + $0x38] sm:$0xf]
        %v341 = vld [vmem:[%s291 + $0x3c] sm:$0xf]
        %v346 = vunpack.c.l.b16 %v318
        %v347 = vunpack.c.l.b16 %v319
        %v348 = vunpack.c.l.b16 %v320
        %v349 = vunpack.c.l.b16 %v321
        %v350 = vpack.c.b16 %v347, %v346
        %v351 = vpack.c.b16 %v349, %v348
        %v370 = vunpack.c.l.b16 %v326
        %v371 = vunpack.c.l.b16 %v327
        %v372 = vunpack.c.l.b16 %v328
        %v373 = vunpack.c.l.b16 %v329
        %v374 = vunpack.c.l.b16 %v330
        %v375 = vunpack.c.l.b16 %v331
        %v376 = vunpack.c.l.b16 %v332
        %v377 = vunpack.c.l.b16 %v333
        %v378 = vunpack.c.l.b16 %v334
        %v379 = vunpack.c.l.b16 %v335
        %v380 = vunpack.c.l.b16 %v336
        %v381 = vunpack.c.l.b16 %v337
        %v382 = vunpack.c.l.b16 %v338
        %v383 = vunpack.c.l.b16 %v339
        %v384 = vunpack.c.l.b16 %v340
        %v385 = vunpack.c.l.b16 %v341
        %v386 = vpack.c.b16 %v371, %v370
        %v387 = vpack.c.b16 %v373, %v372
        %v388 = vpack.c.b16 %v375, %v374
        %v389 = vpack.c.b16 %v377, %v376
        %v390 = vpack.c.b16 %v379, %v378
        %v391 = vpack.c.b16 %v381, %v380
        %v392 = vpack.c.b16 %v383, %v382
        %v393 = vpack.c.b16 %v385, %v384
        %402 = vmatprep.subr.bf16.mxu0 0
        %403 = vmatpush1.bf16.msra.mxu0 %v386
        %404 = vmatprep.subr.bf16.mxu0 0
        %405 = vmatpush1.bf16.msra.mxu0 %v387
        %406 = vmatprep.subr.bf16.mxu0 0
        %407 = vmatpush1.bf16.msra.mxu0 %v388
        %408 = vmatprep.subr.bf16.mxu0 0
        %409 = vmatpush1.bf16.msra.mxu0 %v389
        %410 = vmatprep.subr.bf16.mxu0 0
        %411 = vmatpush1.bf16.msra.mxu0 %v390
        %412 = vmatprep.subr.bf16.mxu0 0
        %413 = vmatpush1.bf16.msra.mxu0 %v391
        %414 = vmatprep.subr.bf16.mxu0 0
        %415 = vmatpush1.bf16.msra.mxu0 %v392
        %416 = vmatprep.subr.bf16.mxu0 0
        %417 = vmatpush1.bf16.msra.mxu0 %v393
        %418 = vmatprep.subr.bf16.mxu0 0
        %419 = vmatpush1.bf16.msra.mxu0 0
        %420 = vmatprep.subr.bf16.mxu0 0
        %421 = vmatpush1.bf16.msra.mxu0 0
        %422 = vmatprep.subr.bf16.mxu0 0
        %423 = vmatpush1.bf16.msra.mxu0 0
        %424 = vmatprep.subr.bf16.mxu0 0
        %425 = vmatpush1.bf16.msra.mxu0 0
        %426 = vmatprep.subr.bf16.mxu0 0
        %427 = vmatpush1.bf16.msra.mxu0 0
        %428 = vmatprep.subr.bf16.mxu0 0
        %429 = vmatpush1.bf16.msra.mxu0 0
        %430 = vmatprep.subr.bf16.mxu0 0
        %431 = vmatpush1.bf16.msra.mxu0 0
        %432 = vmatprep.subr.bf16.mxu0 0
        %433 = vmatpush1.bf16.msra.mxu0 0
        %434 = vmatprep.mubr.bf16.mxu0 0
        %435 = vmatmul.mubr.bf16.gmra.mrb[0].mxu0 %v350
        %v436 = vpop.f32.mrb[0].mxu0
        %v437 = vadd.f32 0.0, %v436
        %v438 = vpop.f32.mrb[0].mxu0
        %v439 = vpop.f32.mrb[0].mxu0
        %v440 = vadd.f32 0.0, %v439
        %v441 = vpop.f32.mrb[0].mxu0
        %442 = vmatprep.mubr.bf16.mxu0 0
        %443 = vmatmul.mubr.bf16.gmra.mrb[0].mxu0 %v351
        %v444 = vpop.f32.mrb[0].mxu0
        %v445 = vadd.f32 0.0, %v444
        %v446 = vpop.f32.mrb[0].mxu0
        %v447 = vpop.f32.mrb[0].mxu0
        %v448 = vadd.f32 0.0, %v447
        %v449 = vpop.f32.mrb[0].mxu0
        %450 = vdwg.mxu0
        %v451 = vadd.f32 %v322, %v437
        %v452 = vadd.f32 %v323, %v440
        %v453 = vadd.f32 %v324, %v445
        %v454 = vadd.f32 %v325, %v448
        %455 = vst [vmem:[#allocation2] sm:$0xff] %v451
        %456 = vst [vmem:[#allocation2 + $0x8] sm:$0xff] %v452
        %457 = vst [vmem:[#allocation2 + $0x10] sm:$0xff] %v453
        %458 = vst [vmem:[#allocation2 + $0x18] sm:$0xff] %v454
        %p459 = scmp.eq.s32.totalorder %s21, 2
        // Predicated region
        $region78: #{vq_vae_forward.19} parent=68 // pred_check
          %p460 = pneg %p459
        $region79: #{vq_vae_forward.19} parent=68 // pred_check_branch
          %462 = sbr.rel (%p460) target = $region81
        $region80: #{vq_vae_forward.19} parent=68 // pred_region
          %v463 = vld [vmem:[#allocation2] sm:$0xff]
          %v464 = vld [vmem:[#allocation2 + $0x8] sm:$0xff]
          %v465 = vld [vmem:[#allocation2 + $0x10] sm:$0xff]
          %v466 = vld [vmem:[#allocation2 + $0x18] sm:$0xff]
          %v467 = vld [vmem:[%s295] sm:$0x1]
          %v469 = vlaneseq
          %v470 = vshrl.u32 %v469, 7
          %v471 = vsub.s32 0, %v470
          %v472 = vrot.slane %v467, %v471
          %v474 = vadd.f32 %v463, %v472
          %v475 = vadd.f32 %v464, %v472
          %v476 = vadd.f32 %v465, %v472
          %v477 = vadd.f32 %v466, %v472
          %v478 = vpack.c.bf16 %v475, %v474
          %v479 = vpack.c.bf16 %v477, %v476
          %v482 = vunpack.c.l.b16 %v478
          %v483 = vunpack.c.h.b16 %v478
          %v484 = vunpack.c.l.b16 %v479
          %v485 = vunpack.c.h.b16 %v479
          %v486 = vpack.c.b16 %v482, %v482
          %v487 = vpack.c.b16 %v483, %v483
          %v488 = vpack.c.b16 %v484, %v484
          %v489 = vpack.c.b16 %v485, %v485
          %494 = vst [vmem:[%s303] sm:$0xf] %v486
          %495 = vst [vmem:[%s303 + $0x4] sm:$0xf] %v487
          %496 = vst [vmem:[%s303 + $0x8] sm:$0xf] %v488
          %497 = vst [vmem:[%s303 + $0xc] sm:$0xf] %v489
        $region81: #{vq_vae_forward.19} parent=68 // pred_fallthru
          _
        %s498 = smul.u32 4, %s19
        %p499 = scmp.lt.s32.totalorder %s498, 3
        %s500 = scalar_select %p499, %s498, 3
        %p501 = scmp.lt.s32.totalorder %s20, 0
        %s502 = scalar_select %p501, %s20, 0
        %s503 = sadd.s32 %s502, %s500
        %s504 = smul.addr %s503, 4
        %s505 = scalar_lea.vmem %s3, %s504
        // Predicated region
        $region82: #{vq_vae_forward.19} parent=68 // pred_check
          %p506 = pneg %p135
        $region83: #{vq_vae_forward.19} parent=68 // pred_check_branch
          %508 = sbr.rel (%p506) target = $region85
        $region84: #{vq_vae_forward.19} parent=68 // pred_region
          %s509 = smul.u32 4, %s19
        $region85: #{vq_vae_forward.19} parent=68 // pred_fallthru
          _
        // Predicated region
        $region86: #{vq_vae_forward.19} parent=68 // pred_check
          %p510 = pneg %p135
        $region87: #{vq_vae_forward.19} parent=68 // pred_check_branch
          %512 = sbr.rel (%p510) target = $region89
        $region88: #{vq_vae_forward.19} parent=68 // pred_region
          %s513 = smul.u32 4, %s19
          %p514 = scmp.lt.s32.totalorder %s513, 3
          %s515 = scalar_select %p514, %s513, 3
          %p516 = scmp.lt.s32.totalorder %s20, 0
          %s517 = scalar_select %p516, %s20, 0
          %s518 = sadd.s32 %s517, %s515
          %s519 = smul.addr %s518, 4
          %s520 = scalar_lea.vmem %s3, %s519
        $region89: #{vq_vae_forward.19} parent=68 // pred_fallthru
          _
      $region69: #{vq_vae_forward.19} parent=5 // pred_fallthru
        _
      %p521 = scmp.le.s32.totalorder 2, %s9
      // Predicated region
      $region90: #{vq_vae_forward.19} parent=5 // pred_check
        %p522 = pneg %p521
      $region91: #{vq_vae_forward.19} parent=5 // pred_check_branch
        %524 = sbr.rel (%p522) target = $region93
      $region92: #{vq_vae_forward.19} parent=5 // pred_region
        %s525 = ssub.s32 %s9, 2
      $region93: #{vq_vae_forward.19} parent=5 // pred_fallthru
        _
    $region6: #{vq_vae_forward.19} parent=1 // loop_footer
      %s13 = sadd.s32 1, %s9
    $region7: #{vq_vae_forward.19} parent=1 // loop_footer_branch
      %8 = sbr.rel target = $region3
    $region8: #{vq_vae_forward.19} parent=1 // loop_exit
      _

// kernel: tile.13
$region0: #{tile.13}
  #allocation0 [shape = 's32[1]{0}', space=sflag, size = 0x4, scoped, tag = 'scoped memory for tile.13']
  %s0 = inlined_call_operand.vmem [shape: f32[16], index: 0, kind: input, shape index: {}]
  %s1 = inlined_call_operand.vmem [shape: f32[4,16], index: 1, kind: output, shape index: {}]
  // Predicated region
  $region2: #{tile.13} parent=0 // pred_check
    _
  $region3: #{tile.13} parent=0 // pred_check_branch
    %3 = sbr.rel (0) target = $region5
  $region4: #{tile.13} parent=0 // pred_region
    _
  $region5: #{tile.13} parent=0 // pred_fallthru
    _
  %v4 = vld [vmem:[%s0] ss:$0 sm:$0xff]
  %5 = vst [vmem:[%s1] sm:$0xf] %v4

// kernel: tile.14
$region0: #{tile.14}
  %s0 = inlined_call_operand.vmem [shape: f32[4,16], index: 0, kind: input, shape index: {}]
  %s1 = inlined_call_operand.vmem [shape: f32[64], index: 1, kind: output, shape index: {}]
  $region1: #{tile.14} parent=0
    #allocation0 [shape = 'u8[4096]{0}', space=vmem, size = 0x1000, scoped, tag = 'scoped mem for output reshape']
    #allocation1 [shape = 'u8[4096]{0}', space=vmem, size = 0x1000, scoped, tag = 'scoped mem for input reshape']
    %s3 = sshllo.u32 0, 4
    %v4 = vld [vmem:[%s0] sm:%s3]
    %5 = vst [vmem:[#allocation1] sm:%s3] %v4
    %v6 = vld [vmem:[#allocation1] sm:$0x1]
    %vm7 = vcmask 130048
    %8 = vst.msk [vmem:[#allocation0] sm:$0x1] %vm7, %v6
    %s9 = scalar_lea.vmem [#allocation1], 3
    %v10 = vld [vmem:[%s9] sm:$0x1]
    %11 = vrot.lane.b32.xlu0 %v10, 48
    %v12 = vpop.permute.xlu0 %11
    %vm13 = vcmask 523648
    %14 = vst.msk [vmem:[#allocation0] sm:$0x1] %vm13, %v12
    %s15 = scalar_lea.vmem [#allocation1], 2
    %v16 = vld [vmem:[%s15] sm:$0x1]
    %17 = vrot.lane.b32.xlu0 %v16, 32
    %v18 = vpop.permute.xlu0 %17
    %vm19 = vcmask 392448
    %20 = vst.msk [vmem:[#allocation0] sm:$0x1] %vm19, %v18
    %s21 = scalar_lea.vmem [#allocation1], 1
    %v22 = vld [vmem:[%s21] sm:$0x1]
    %23 = vrot.lane.b32.xlu0 %v22, 16
    %v24 = vpop.permute.xlu0 %23
    %vm25 = vcmask 261248
    %26 = vst.msk [vmem:[#allocation0] sm:$0x1] %vm25, %v24
    %s28 = sshllo.u32 0, 1
    %v30 = vld [vmem:[#allocation0] sm:%s28]
    %s31 = sshllo.u32 0, 1
    %32 = vst [vmem:[%s1] sm:%s31] %v30

// kernel: vq_vae_forward.24
$region0: #{vq_vae_forward.24}
  #allocation0 [shape = 'u32[]', space=smem, size = 0x4, offset = 0x4, fixed_abs, tag = 'smem constant byte address 0x4 - core index']
  #allocation1 [shape = 'u32[144,128]{1,0:T(1,128)}', space=vmem, size = 0x12000, scoped, tag = 'internal scratch']
  #allocation2 [shape = 'f32[1,1]{1,0:T(1,128)}', space=vmem, size = 0x200, scoped, tag = 'scratch operand']
  #allocation3 [shape = 'f32[1,128]{1,0:T(1,128)}', space=vmem, size = 0x200, scoped, tag = 'scratch operand']
  %s0 = inlined_call_operand.vmem [shape: bf16[32,128], index: 0, kind: input, shape index: {}]
  %s1 = inlined_call_operand.vmem [shape: bf16[128,128], index: 1, kind: input, shape index: {}]
  %s2 = inlined_call_operand.vmem [shape: bf16[128,128], index: 2, kind: input, shape index: {}]
  %s3 = inlined_call_operand.vmem [shape: f32[1,128], index: 3, kind: input, shape index: {}]
  %s4 = inlined_call_operand.vmem [shape: bf16[32,128], index: 4, kind: output, shape index: {0}]
  %s5 = inlined_call_operand.vmem [shape: f32[8,128], index: 5, kind: output, shape index: {1}]
  %s6 = inlined_call_operand.hbm [shape: f32[8,128], index: 6, kind: output, shape index: {2}]
  %7 = xla_tuple %s4, %s5, %s6
  %s8 = sld [smem:[#allocation0]]
  $region50: #{vq_vae_forward.24} parent=0
    _
  %s10 = ssub.s32 1, %s8
  %s11 = scalar_select 0, %s10, %s8
  $region1: #{vq_vae_forward.24} parent=0
    #allocation4 [shape = 'u8[4096]{0}', space=vmem, size = 0x1000, scoped, tag = 'output window, operand 2, single buffered']
    #allocation5 [shape = 's32[1]{0}', space=sflag, size = 0x4, scoped, tag = 'scoped memory for vq_vae_forward.24']
    %12 = vsyncpa [#allocation5], 0
    // Predicated region
    $region2: #{vq_vae_forward.24} parent=1 // pred_check
      _
    $region3: #{vq_vae_forward.24} parent=1 // pred_check_branch
      %14 = sbr.rel (0) target = $region5
    $region4: #{vq_vae_forward.24} parent=1 // pred_region
      %s15 = sadd.s32 0, 0
      %s16 = smul.u32 4, %s15
      %p17 = scmp.lt.s32.totalorder %s16, 3
      %s18 = scalar_select %p17, %s16, 3
      %s19 = smul.addr %s18, 4
      %s20 = scalar_lea.vmem %s0, %s19
      %s21 = sadd.s32 0, 0
      %s22 = smul.u32 4, %s21
    $region5: #{vq_vae_forward.24} parent=1 // pred_fallthru
      _
    // Predicated region
    $region6: #{vq_vae_forward.24} parent=1 // pred_check
      _
    $region7: #{vq_vae_forward.24} parent=1 // pred_check_branch
      %24 = sbr.rel (0) target = $region9
    $region8: #{vq_vae_forward.24} parent=1 // pred_region
      _
    $region9: #{vq_vae_forward.24} parent=1 // pred_fallthru
      _
    // Predicated region
    $region10: #{vq_vae_forward.24} parent=1 // pred_check
      _
    $region11: #{vq_vae_forward.24} parent=1 // pred_check_branch
      %26 = sbr.rel (0) target = $region13
    $region12: #{vq_vae_forward.24} parent=1 // pred_region
      _
    $region13: #{vq_vae_forward.24} parent=1 // pred_fallthru
      _
    // Predicated region
    $region14: #{vq_vae_forward.24} parent=1 // pred_check
      _
    $region15: #{vq_vae_forward.24} parent=1 // pred_check_branch
      %28 = sbr.rel (0) target = $region17
    $region16: #{vq_vae_forward.24} parent=1 // pred_region
      _
    $region17: #{vq_vae_forward.24} parent=1 // pred_fallthru
      _
    %s29 = sadd.s32 0, 0
    %s30 = smul.u32 4, %s29
    %p31 = scmp.lt.s32.totalorder %s30, 3
    %s32 = scalar_select %p31, %s30, 3
    %s33 = smul.addr %s32, 4
    %s34 = scalar_lea.vmem %s0, %s33
    %s35 = sadd.s32 0, 0
    %s36 = smul.u32 4, %s35
    %p37 = scmp.lt.s32.totalorder %s36, 3
    %s38 = scalar_select %p37, %s36, 3
    %s39 = smul.addr %s38, 4
    %s40 = scalar_lea.vmem %s4, %s39
    %s41 = sadd.s32 0, 0
    %s42 = smul.u32 4, %s41
    %p43 = scmp.lt.s32.totalorder %s42, 3
    %s44 = scalar_select %p43, %s42, 3
    %s45 = smul.addr %s44, 4
    %s46 = scalar_lea.vmem %s0, %s45
    %s47 = sadd.s32 0, 0
    %s48 = smul.u32 4, %s47
    %s49 = sadd.s32 0, 0
    %s50 = smul.u32 4, %s49
    %p51 = scmp.lt.s32.totalorder %s50, 3
    %s52 = scalar_select %p51, %s50, 3
    %s53 = smul.addr %s52, 4
    %s54 = scalar_lea.vmem %s4, %s53
    %s55 = sadd.s32 0, 0
    %s56 = smul.u32 4, %s55
    %p58 = scmp.eq.s32.totalorder 0, 0
    // Predicated region
    $region18: #{vq_vae_forward.24} parent=1 // pred_check
      %p59 = pneg %p58
    $region19: #{vq_vae_forward.24} parent=1 // pred_check_branch
      %61 = sbr.rel (%p59) target = $region21
    $region20: #{vq_vae_forward.24} parent=1 // pred_region
      %vm62 = vcmask 0
      %63 = vst.msk [vmem:[#allocation2] sm:$0x1] %vm62, 0.0
      %64 = vst [vmem:[#allocation3] sm:$0x1] 0.0
    $region21: #{vq_vae_forward.24} parent=1 // pred_fallthru
      _
    %v65 = vld [vmem:[%s46] sm:$0xf]
    %v66 = vld [vmem:[%s46 + $0x4] sm:$0xf]
    %v67 = vld [vmem:[%s46 + $0x8] sm:$0xf]
    %v68 = vld [vmem:[%s46 + $0xc] sm:$0xf]
    %v69 = vunpack.c.l.bf16 %v65
    %v70 = vunpack.c.l.bf16 %v66
    %v71 = vunpack.c.l.bf16 %v67
    %v72 = vunpack.c.l.bf16 %v68
    %v73 = vmul.f32 %v69, %v69
    %v74 = vmul.f32 %v70, %v70
    %v75 = vmul.f32 %v71, %v71
    %v76 = vmul.f32 %v72, %v72
    %77 = vadd.xlane.f32.xlu0 %v73
    %v78 = vpop.xlane.xlu0 %77
    %79 = vadd.xlane.f32.xlu0 %v74
    %v80 = vpop.xlane.xlu0 %79
    %81 = vadd.xlane.f32.xlu0 %v75
    %v82 = vpop.xlane.xlu0 %81
    %83 = vadd.xlane.f32.xlu0 %v76
    %v84 = vpop.xlane.xlu0 %83
    %v85 = vld [vmem:[%s2] sm:$0xf]
    %v86 = vld [vmem:[%s2 + $0x4] sm:$0xf]
    %v87 = vld [vmem:[%s2 + $0x8] sm:$0xf]
    %v88 = vld [vmem:[%s2 + $0xc] sm:$0xf]
    %v89 = vld [vmem:[%s2 + $0x10] sm:$0xf]
    %v90 = vld [vmem:[%s2 + $0x14] sm:$0xf]
    %v91 = vld [vmem:[%s2 + $0x18] sm:$0xf]
    %v92 = vld [vmem:[%s2 + $0x1c] sm:$0xf]
    %v93 = vld [vmem:[%s2 + $0x20] sm:$0xf]
    %v94 = vld [vmem:[%s2 + $0x24] sm:$0xf]
    %v95 = vld [vmem:[%s2 + $0x28] sm:$0xf]
    %v96 = vld [vmem:[%s2 + $0x2c] sm:$0xf]
    %v97 = vld [vmem:[%s2 + $0x30] sm:$0xf]
    %v98 = vld [vmem:[%s2 + $0x34] sm:$0xf]
    %v99 = vld [vmem:[%s2 + $0x38] sm:$0xf]
    %v100 = vld [vmem:[%s2 + $0x3c] sm:$0xf]
    %v105 = vunpack.c.l.b16 %v65
    %v106 = vunpack.c.l.b16 %v66
    %v107 = vunpack.c.l.b16 %v67
    %v108 = vunpack.c.l.b16 %v68
    %v109 = vpack.c.b16 %v106, %v105
    %v110 = vpack.c.b16 %v108, %v107
    %v129 = vunpack.c.l.b16 %v85
    %v130 = vunpack.c.l.b16 %v86
    %v131 = vunpack.c.l.b16 %v87
    %v132 = vunpack.c.l.b16 %v88
    %v133 = vunpack.c.l.b16 %v89
    %v134 = vunpack.c.l.b16 %v90
    %v135 = vunpack.c.l.b16 %v91
    %v136 = vunpack.c.l.b16 %v92
    %v137 = vunpack.c.l.b16 %v93
    %v138 = vunpack.c.l.b16 %v94
    %v139 = vunpack.c.l.b16 %v95
    %v140 = vunpack.c.l.b16 %v96
    %v141 = vunpack.c.l.b16 %v97
    %v142 = vunpack.c.l.b16 %v98
    %v143 = vunpack.c.l.b16 %v99
    %v144 = vunpack.c.l.b16 %v100
    %v145 = vpack.c.b16 %v130, %v129
    %v146 = vpack.c.b16 %v132, %v131
    %v147 = vpack.c.b16 %v134, %v133
    %v148 = vpack.c.b16 %v136, %v135
    %v149 = vpack.c.b16 %v138, %v137
    %v150 = vpack.c.b16 %v140, %v139
    %v151 = vpack.c.b16 %v142, %v141
    %v152 = vpack.c.b16 %v144, %v143
    %161 = vmatprep.subr.bf16.mxu0 0
    %162 = vmatpush1.bf16.msra.mxu0 %v145
    %163 = vmatprep.subr.bf16.mxu0 0
    %164 = vmatpush1.bf16.msra.mxu0 %v146
    %165 = vmatprep.subr.bf16.mxu0 0
    %166 = vmatpush1.bf16.msra.mxu0 %v147
    %167 = vmatprep.subr.bf16.mxu0 0
    %168 = vmatpush1.bf16.msra.mxu0 %v148
    %169 = vmatprep.subr.bf16.mxu0 0
    %170 = vmatpush1.bf16.msra.mxu0 %v149
    %171 = vmatprep.subr.bf16.mxu0 0
    %172 = vmatpush1.bf16.msra.mxu0 %v150
    %173 = vmatprep.subr.bf16.mxu0 0
    %174 = vmatpush1.bf16.msra.mxu0 %v151
    %175 = vmatprep.subr.bf16.mxu0 0
    %176 = vmatpush1.bf16.msra.mxu0 %v152
    %177 = vmatprep.subr.bf16.mxu0 0
    %178 = vmatpush1.bf16.msra.mxu0 0
    %179 = vmatprep.subr.bf16.mxu0 0
    %180 = vmatpush1.bf16.msra.mxu0 0
    %181 = vmatprep.subr.bf16.mxu0 0
    %182 = vmatpush1.bf16.msra.mxu0 0
    %183 = vmatprep.subr.bf16.mxu0 0
    %184 = vmatpush1.bf16.msra.mxu0 0
    %185 = vmatprep.subr.bf16.mxu0 0
    %186 = vmatpush1.bf16.msra.mxu0 0
    %187 = vmatprep.subr.bf16.mxu0 0
    %188 = vmatpush1.bf16.msra.mxu0 0
    %189 = vmatprep.subr.bf16.mxu0 0
    %190 = vmatpush1.bf16.msra.mxu0 0
    %191 = vmatprep.subr.bf16.mxu0 0
    %192 = vmatpush1.bf16.msra.mxu0 0
    %193 = vmatprep.mubr.bf16.mxu0 0
    %194 = vmatmul.mubr.bf16.gmra.mrb[0].mxu0 %v109
    %v195 = vpop.f32.mrb[0].mxu0
    %v196 = vadd.f32 0.0, %v195
    %v197 = vpop.f32.mrb[0].mxu0
    %v198 = vpop.f32.mrb[0].mxu0
    %v199 = vadd.f32 0.0, %v198
    %v200 = vpop.f32.mrb[0].mxu0
    %201 = vmatprep.mubr.bf16.mxu0 0
    %202 = vmatmul.mubr.bf16.gmra.mrb[0].mxu0 %v110
    %v203 = vpop.f32.mrb[0].mxu0
    %v204 = vadd.f32 0.0, %v203
    %v205 = vpop.f32.mrb[0].mxu0
    %v206 = vpop.f32.mrb[0].mxu0
    %v207 = vadd.f32 0.0, %v206
    %v208 = vpop.f32.mrb[0].mxu0
    %209 = vdwg.mxu0
    %v210 = vld [vmem:[%s3] sm:$0x1]
    %v212 = vlaneseq
    %v213 = vshrl.u32 %v212, 7
    %v214 = vsub.s32 0, %v213
    %v215 = vrot.slane %v210, %v214
    %v217 = vadd.f32 %v78, %v215
    %v218 = vadd.f32 %v80, %v215
    %v219 = vadd.f32 %v82, %v215
    %v220 = vadd.f32 %v84, %v215
    %v221 = vmul.f32 %v196, 2.0
    %v222 = vmul.f32 %v199, 2.0
    %v223 = vmul.f32 %v204, 2.0
    %v224 = vmul.f32 %v207, 2.0
    %v225 = vsub.f32 %v217, %v221
    %v226 = vsub.f32 %v218, %v222
    %v227 = vsub.f32 %v219, %v223
    %v228 = vsub.f32 %v220, %v224
    %v229 = vlaneseq
    %v230 = vand.u32 %v229, 127
    %vm231 = vcmp.lt.s32.totalorder %v230, 64
    %v232 = vsel %vm231, %v225, 1e+30
    %v233 = vsel %vm231, %v226, 1e+30
    %v234 = vsel %vm231, %v227, 1e+30
    %v235 = vsel %vm231, %v228, 1e+30
    %236 = vmin.xlane.f32.xlu0 %v232
    %v237 = vpop.xlane.xlu0 %236
    %238 = vmin.xlane.f32.xlu0 %v233
    %v239 = vpop.xlane.xlu0 %238
    %240 = vmin.xlane.f32.xlu0 %v234
    %v241 = vpop.xlane.xlu0 %240
    %242 = vmin.xlane.f32.xlu0 %v235
    %v243 = vpop.xlane.xlu0 %242
    %vm244 = vcmp.eq.f32.partialorder %v232, %v237
    %vm245 = vcmp.eq.f32.partialorder %v233, %v239
    %vm246 = vcmp.eq.f32.partialorder %v234, %v241
    %vm247 = vcmp.eq.f32.partialorder %v235, %v243
    %v248 = vsel %vm244, %v230, 128
    %v249 = vsel %vm245, %v230, 128
    %v250 = vsel %vm246, %v230, 128
    %v251 = vsel %vm247, %v230, 128
    %v252 = vand.u32 %v248, 65535
    %v253 = vshra.s32 %v248, 16
    %v254 = vcvt.s32.f32 %v252
    %v255 = vcvt.s32.f32 %v253
    %256 = vmin.xlane.f32.xlu0 %v255
    %v257 = vpop.xlane.xlu0 %256
    %vm258 = vcmp.eq.f32.partialorder %v255, %v257
    %v259 = vsel %vm258, %v254, inf
    %260 = vmin.xlane.f32.xlu0 %v259
    %v261 = vpop.xlane.xlu0 %260
    %v262 = vcvt.f32.s32 %v261
    %v263 = vcvt.f32.s32 %v257
    %v264 = vshll.u32 %v263, 16
    %v265 = vadd.s32 %v264, %v262
    %v266 = vand.u32 %v249, 65535
    %v267 = vshra.s32 %v249, 16
    %v268 = vcvt.s32.f32 %v266
    %v269 = vcvt.s32.f32 %v267
    %270 = vmin.xlane.f32.xlu0 %v269
    %v271 = vpop.xlane.xlu0 %270
    %vm272 = vcmp.eq.f32.partialorder %v269, %v271
    %v273 = vsel %vm272, %v268, inf
    %274 = vmin.xlane.f32.xlu0 %v273
    %v275 = vpop.xlane.xlu0 %274
    %v276 = vcvt.f32.s32 %v275
    %v277 = vcvt.f32.s32 %v271
    %v278 = vshll.u32 %v277, 16
    %v279 = vadd.s32 %v278, %v276
    %v280 = vand.u32 %v250, 65535
    %v281 = vshra.s32 %v250, 16
    %v282 = vcvt.s32.f32 %v280
    %v283 = vcvt.s32.f32 %v281
    %284 = vmin.xlane.f32.xlu0 %v283
    %v285 = vpop.xlane.xlu0 %284
    %vm286 = vcmp.eq.f32.partialorder %v283, %v285
    %v287 = vsel %vm286, %v282, inf
    %288 = vmin.xlane.f32.xlu0 %v287
    %v289 = vpop.xlane.xlu0 %288
    %v290 = vcvt.f32.s32 %v289
    %v291 = vcvt.f32.s32 %v285
    %v292 = vshll.u32 %v291, 16
    %v293 = vadd.s32 %v292, %v290
    %v294 = vand.u32 %v251, 65535
    %v295 = vshra.s32 %v251, 16
    %v296 = vcvt.s32.f32 %v294
    %v297 = vcvt.s32.f32 %v295
    %298 = vmin.xlane.f32.xlu0 %v297
    %v299 = vpop.xlane.xlu0 %298
    %vm300 = vcmp.eq.f32.partialorder %v297, %v299
    %v301 = vsel %vm300, %v296, inf
    %302 = vmin.xlane.f32.xlu0 %v301
    %v303 = vpop.xlane.xlu0 %302
    %v304 = vcvt.f32.s32 %v303
    %v305 = vcvt.f32.s32 %v299
    %v306 = vshll.u32 %v305, 16
    %v307 = vadd.s32 %v306, %v304
    %s308 = sadd.s32 0, 0
    %s309 = smul.u32 %s308, 32
    %v310 = vlaneseq
    %v311 = vshrl.u32 %v310, 7
    %v312 = vadd.s32 %v311, 8
    %v313 = vadd.s32 %v311, 16
    %v314 = vadd.s32 %v311, 24
    %v315 = vstv %s309
    %v316 = vadd.s32 %v315, %v311
    %v317 = vadd.s32 %v315, %v312
    %v318 = vadd.s32 %v315, %v313
    %v319 = vadd.s32 %v315, %v314
    %vm320 = vcmp.lt.s32.totalorder %v316, 32
    %vm321 = vcmp.lt.s32.totalorder %v317, 32
    %vm322 = vcmp.lt.s32.totalorder %v318, 32
    %vm323 = vcmp.lt.s32.totalorder %v319, 32
    %v324 = vsel %vm320, 1, 0
    %v325 = vsel %vm321, 1, 0
    %v326 = vsel %vm322, 1, 0
    %v327 = vsel %vm323, 1, 0
    %v328 = vcvt.s32.f32 %v324
    %v329 = vcvt.s32.f32 %v325
    %v330 = vcvt.s32.f32 %v326
    %v331 = vcvt.s32.f32 %v327
    %vm332 = vcmp.eq.s32.totalorder %v230, %v265
    %vm333 = vcmp.eq.s32.totalorder %v230, %v279
    %vm334 = vcmp.eq.s32.totalorder %v230, %v293
    %vm335 = vcmp.eq.s32.totalorder %v230, %v307
    %v336 = vsel %vm332, 1.0, 0.0
    %v337 = vsel %vm333, 1.0, 0.0
    %v338 = vsel %vm334, 1.0, 0.0
    %v339 = vsel %vm335, 1.0, 0.0
    %v340 = vmul.f32 %v336, %v328
    %v341 = vmul.f32 %v337, %v329
    %v342 = vmul.f32 %v338, %v330
    %v343 = vmul.f32 %v339, %v331
    %v344 = vpack.c.bf16 %v341, %v340
    %v345 = vpack.c.bf16 %v343, %v342
    %v346 = vld [vmem:[%s1] sm:$0xf]
    %v347 = vld [vmem:[%s1 + $0x4] sm:$0xf]
    %v348 = vld [vmem:[%s1 + $0x8] sm:$0xf]
    %v349 = vld [vmem:[%s1 + $0xc] sm:$0xf]
    %v350 = vld [vmem:[%s1 + $0x10] sm:$0xf]
    %v351 = vld [vmem:[%s1 + $0x14] sm:$0xf]
    %v352 = vld [vmem:[%s1 + $0x18] sm:$0xf]
    %v353 = vld [vmem:[%s1 + $0x1c] sm:$0xf]
    %v354 = vld [vmem:[%s1 + $0x20] sm:$0xf]
    %v355 = vld [vmem:[%s1 + $0x24] sm:$0xf]
    %v356 = vld [vmem:[%s1 + $0x28] sm:$0xf]
    %v357 = vld [vmem:[%s1 + $0x2c] sm:$0xf]
    %v358 = vld [vmem:[%s1 + $0x30] sm:$0xf]
    %v359 = vld [vmem:[%s1 + $0x34] sm:$0xf]
    %v360 = vld [vmem:[%s1 + $0x38] sm:$0xf]
    %v361 = vld [vmem:[%s1 + $0x3c] sm:$0xf]
    %v378 = vunpack.c.l.b16 %v346
    %v379 = vunpack.c.l.b16 %v347
    %v380 = vunpack.c.l.b16 %v348
    %v381 = vunpack.c.l.b16 %v349
    %v382 = vunpack.c.l.b16 %v350
    %v383 = vunpack.c.l.b16 %v351
    %v384 = vunpack.c.l.b16 %v352
    %v385 = vunpack.c.l.b16 %v353
    %v386 = vunpack.c.l.b16 %v354
    %v387 = vunpack.c.l.b16 %v355
    %v388 = vunpack.c.l.b16 %v356
    %v389 = vunpack.c.l.b16 %v357
    %v390 = vunpack.c.l.b16 %v358
    %v391 = vunpack.c.l.b16 %v359
    %v392 = vunpack.c.l.b16 %v360
    %v393 = vunpack.c.l.b16 %v361
    %v394 = vpack.c.b16 %v379, %v378
    %v395 = vpack.c.b16 %v381, %v380
    %v396 = vpack.c.b16 %v383, %v382
    %v397 = vpack.c.b16 %v385, %v384
    %v398 = vpack.c.b16 %v387, %v386
    %v399 = vpack.c.b16 %v389, %v388
    %v400 = vpack.c.b16 %v391, %v390
    %v401 = vpack.c.b16 %v393, %v392
    %410 = vmatprep.subr.bf16.mxu0 0
    %411 = vmatpush1.bf16.msra.mxu0 %v394
    %412 = vmatprep.subr.bf16.mxu0 0
    %413 = vmatpush1.bf16.msra.mxu0 %v395
    %414 = vmatprep.subr.bf16.mxu0 0
    %415 = vmatpush1.bf16.msra.mxu0 %v396
    %416 = vmatprep.subr.bf16.mxu0 0
    %417 = vmatpush1.bf16.msra.mxu0 %v397
    %418 = vmatprep.subr.bf16.mxu0 0
    %419 = vmatpush1.bf16.msra.mxu0 %v398
    %420 = vmatprep.subr.bf16.mxu0 0
    %421 = vmatpush1.bf16.msra.mxu0 %v399
    %422 = vmatprep.subr.bf16.mxu0 0
    %423 = vmatpush1.bf16.msra.mxu0 %v400
    %424 = vmatprep.subr.bf16.mxu0 0
    %425 = vmatpush1.bf16.msra.mxu0 %v401
    %426 = vmatprep.subr.bf16.mxu0 0
    %427 = vmatpush1.bf16.msra.mxu0 0
    %428 = vmatprep.subr.bf16.mxu0 0
    %429 = vmatpush1.bf16.msra.mxu0 0
    %430 = vmatprep.subr.bf16.mxu0 0
    %431 = vmatpush1.bf16.msra.mxu0 0
    %432 = vmatprep.subr.bf16.mxu0 0
    %433 = vmatpush1.bf16.msra.mxu0 0
    %434 = vmatprep.subr.bf16.mxu0 0
    %435 = vmatpush1.bf16.msra.mxu0 0
    %436 = vmatprep.subr.bf16.mxu0 0
    %437 = vmatpush1.bf16.msra.mxu0 0
    %438 = vmatprep.subr.bf16.mxu0 0
    %439 = vmatpush1.bf16.msra.mxu0 0
    %440 = vmatprep.subr.bf16.mxu0 0
    %441 = vmatpush1.bf16.msra.mxu0 0
    %442 = vmatprep.mubr.bf16.mxu0 0
    %443 = vmatmul.mubr.bf16.gmra.mrb[0].mxu0 %v344
    %v444 = vpop.f32.mrb[0].mxu0
    %v445 = vadd.f32 0.0, %v444
    %v446 = vpop.f32.mrb[0].mxu0
    %v447 = vpop.f32.mrb[0].mxu0
    %v448 = vadd.f32 0.0, %v447
    %v449 = vpop.f32.mrb[0].mxu0
    %450 = vmatprep.mubr.bf16.mxu0 0
    %451 = vmatmul.mubr.bf16.gmra.mrb[0].mxu0 %v345
    %v452 = vpop.f32.mrb[0].mxu0
    %v453 = vadd.f32 0.0, %v452
    %v454 = vpop.f32.mrb[0].mxu0
    %v455 = vpop.f32.mrb[0].mxu0
    %v456 = vadd.f32 0.0, %v455
    %v457 = vpop.f32.mrb[0].mxu0
    %458 = vdwg.mxu0
    %v459 = vpack.c.bf16 %v448, %v445
    %v460 = vpack.c.bf16 %v456, %v453
    %v463 = vunpack.c.l.b16 %v459
    %v464 = vunpack.c.h.b16 %v459
    %v465 = vunpack.c.l.b16 %v460
    %v466 = vunpack.c.h.b16 %v460
    %v467 = vpack.c.b16 %v463, %v463
    %v468 = vpack.c.b16 %v464, %v464
    %v469 = vpack.c.b16 %v465, %v465
    %v470 = vpack.c.b16 %v466, %v466
    %475 = vst [vmem:[%s54] sm:$0xf] %v467
    %476 = vst [vmem:[%s54 + $0x4] sm:$0xf] %v468
    %477 = vst [vmem:[%s54 + $0x8] sm:$0xf] %v469
    %478 = vst [vmem:[%s54 + $0xc] sm:$0xf] %v470
    %v479 = vsub.f32 %v445, %v69
    %v480 = vsub.f32 %v448, %v70
    %v481 = vsub.f32 %v453, %v71
    %v482 = vsub.f32 %v456, %v72
    %v483 = vld [vmem:[#allocation2] sm:$0x1]
    %v484 = vmul.f32 %v479, %v479
    %v485 = vmul.f32 %v480, %v480
    %v486 = vmul.f32 %v481, %v481
    %v487 = vmul.f32 %v482, %v482
    %v488 = vadd.f32 %v484, %v485
    %v489 = vadd.f32 %v488, %v486
    %v490 = vadd.f32 %v489, %v487
    %491 = vadd.xlane.f32.xlu0 %v490
    %v492 = vpop.xlane.xlu0 %491
    %v493 = vrot.slane %v492, 4
    %v494 = vadd.f32 %v492, %v493
    %v495 = vrot.slane %v494, 2
    %v496 = vadd.f32 %v494, %v495
    %v497 = vrot.slane %v496, 1
    %v498 = vadd.f32 %v496, %v497
    %s499 = vtos %v498
    %v500 = vstv %s499
    %v501 = vadd.f32 %v483, %v500
    %vm502 = vcmask 0
    %503 = vst.msk [vmem:[#allocation2] sm:$0x1] %vm502, %v501
    %v504 = vld [vmem:[#allocation3] sm:$0x1]
    %v505 = vadd.f32 %v340, %v341
    %v506 = vadd.f32 %v505, %v342
    %v507 = vadd.f32 %v506, %v343
    %v508 = vrot.slane %v507, 4
    %v509 = vadd.f32 %v507, %v508
    %v510 = vrot.slane %v509, 2
    %v511 = vadd.f32 %v509, %v510
    %v512 = vrot.slane %v511, 1
    %v513 = vadd.f32 %v511, %v512
    %v514 = vadd.f32 %v504, %v513
    %515 = vst [vmem:[#allocation3] sm:$0x1] %v514
    // Predicated region
    $region22: #{vq_vae_forward.24} parent=1 // pred_check
      %p516 = pneg %p58
    $region23: #{vq_vae_forward.24} parent=1 // pred_check_branch
      %518 = sbr.rel (%p516) target = $region25
    $region24: #{vq_vae_forward.24} parent=1 // pred_region
      %v519 = vld [vmem:[#allocation2] sm:$0x1]
      %v521 = vlaneseq
      %v522 = vshrl.u32 %v521, 7
      %v523 = vsub.s32 0, %v522
      %v524 = vrot.slane %v519, %v523
      %525 = vset.pattern.permute.xlu0 0
      %526 = vperm.xlu0 %525, %v524
      %v527 = vpop.permute.xlu0 %526
      %529 = vst [vmem:[%s5] sm:$0xff] %v527
      %v530 = vld [vmem:[#allocation3] sm:$0x1]
      %v532 = vlaneseq
      %v533 = vshrl.u32 %v532, 7
      %v534 = vsub.s32 0, %v533
      %v535 = vrot.slane %v530, %v534
      %537 = vst [vmem:[#allocation4] sm:$0xff] %v535
    $region25: #{vq_vae_forward.24} parent=1 // pred_fallthru
      _
    %s538 = sadd.s32 0, 0
    %s539 = smul.u32 4, %s538
    %p540 = scmp.lt.s32.totalorder %s539, 3
    %s541 = scalar_select %p540, %s539, 3
    %s542 = smul.addr %s541, 4
    %s543 = scalar_lea.vmem %s4, %s542
    // Predicated region
    $region26: #{vq_vae_forward.24} parent=1 // pred_check
      _
    $region27: #{vq_vae_forward.24} parent=1 // pred_check_branch
      %545 = sbr.rel (0) target = $region29
    $region28: #{vq_vae_forward.24} parent=1 // pred_region
      %s546 = sadd.s32 0, 0
      %s547 = smul.u32 4, %s546
    $region29: #{vq_vae_forward.24} parent=1 // pred_fallthru
      _
    // Predicated region
    $region30: #{vq_vae_forward.24} parent=1 // pred_check
      _
    $region31: #{vq_vae_forward.24} parent=1 // pred_check_branch
      %549 = sbr.rel (0) target = $region33
    $region32: #{vq_vae_forward.24} parent=1 // pred_region
      _
    $region33: #{vq_vae_forward.24} parent=1 // pred_fallthru
      _
    // Predicated region
    $region34: #{vq_vae_forward.24} parent=1 // pred_check
      _
    $region35: #{vq_vae_forward.24} parent=1 // pred_check_branch
      %551 = sbr.rel (0) target = $region37
    $region36: #{vq_vae_forward.24} parent=1 // pred_region
      %s553 = ssub.s32 128, 128
      %554 = vsyncadd [#allocation5], %s553
      %s556 = sshll.u32 [#allocation4], 4
      %s557 = int_to_ptr.vmem [resolvable:$true] %s556
      %559 = dma.vmem_to_hbm [thread:$0]  %s557, 128, %s6, [#allocation5]
    $region37: #{vq_vae_forward.24} parent=1 // pred_fallthru
      _
    // Predicated region
    $region38: #{vq_vae_forward.24} parent=1 // pred_check
      _
    $region39: #{vq_vae_forward.24} parent=1 // pred_check_branch
      %561 = sbr.rel (0) target = $region41
    $region40: #{vq_vae_forward.24} parent=1 // pred_region
      %s562 = sadd.s32 0, 0
      %s563 = smul.u32 4, %s562
      %p564 = scmp.lt.s32.totalorder %s563, 3
      %s565 = scalar_select %p564, %s563, 3
      %s566 = smul.addr %s565, 4
      %s567 = scalar_lea.vmem %s4, %s566
    $region41: #{vq_vae_forward.24} parent=1 // pred_fallthru
      _
    // Predicated region
    $region42: #{vq_vae_forward.24} parent=1 // pred_check
      _
    $region43: #{vq_vae_forward.24} parent=1 // pred_check_branch
      %569 = sbr.rel (0) target = $region45
    $region44: #{vq_vae_forward.24} parent=1 // pred_region
      _
    $region45: #{vq_vae_forward.24} parent=1 // pred_fallthru
      _
    // Predicated region
    $region46: #{vq_vae_forward.24} parent=1 // pred_check
      _
    $region47: #{vq_vae_forward.24} parent=1 // pred_check_branch
      %571 = sbr.rel (0) target = $region49
    $region48: #{vq_vae_forward.24} parent=1 // pred_region
      %572 = dma.done [#allocation5], 128
    $region49: #{vq_vae_forward.24} parent=1 // pred_fallthru
      _
    %573 = vsyncpa [#allocation5], 1

// kernel: vq_vae_forward.25
$region0: #{vq_vae_forward.25}
  #allocation0 [shape = 'u32[]', space=smem, size = 0x4, offset = 0x4, fixed_abs, tag = 'smem constant byte address 0x4 - core index']
  #allocation1 [shape = 'u32[144,128]{1,0:T(1,128)}', space=vmem, size = 0x12000, scoped, tag = 'internal scratch']
  #allocation2 [shape = 'f32[32,128]{1,0:T(8,128)}', space=vmem, size = 0x4000, scoped, tag = 'scratch operand']
  %s0 = inlined_call_operand.vmem [shape: bf16[32,256], index: 0, kind: input, shape index: {}]
  %s1 = inlined_call_operand.vmem [shape: bf16[256,128], index: 1, kind: input, shape index: {}]
  %s2 = inlined_call_operand.vmem [shape: f32[1,128], index: 2, kind: input, shape index: {}]
  %s3 = inlined_call_operand.vmem [shape: bf16[32,128], index: 3, kind: output, shape index: {}]
  %s4 = sld [smem:[#allocation0]]
  $region94: #{vq_vae_forward.25} parent=0
    _
  %s6 = ssub.s32 1, %s4
  %s7 = scalar_select 0, %s6, %s4
  $region1: #{vq_vae_forward.25} parent=0
    #allocation3 [shape = 'u8[16384]{0}', space=vmem, size = 0x4000, scoped, tag = 'input window, operand 0']
    loop: start=0, step=1, limit=4
    $region2: #{vq_vae_forward.25} parent=1 // loop_pre_header
      _
    $region3: #{vq_vae_forward.25} parent=1 // loop_header
      %s9 = sphi 0, %s13
      %p10 = scmp.ge.s32.totalorder %s9, 4
      %s16 = sphi 0, %s35
      %s17 = sphi 0, %s31
      %s18 = sphi 0, %s27
      %s19 = sphi 0, %s16
      %s20 = sphi 0, %s17
      %s21 = sphi 0, %s18
      %s22 = sphi 0, %s19
      %s23 = sphi 0, %s20
      %s24 = sphi 0, %s21
      %s40 = sphi 0, %s42
      %s43 = sphi 0, %s40
      %s44 = sphi 0, %s43
      %s60 = sphi 0, %s44
      %s68 = sphi 0, %s70
      %s71 = sphi 0, %s68
      %s72 = sphi 0, %s71
      %s88 = sphi 0, %s72
      %s94 = sphi 0, %s96
      %s97 = sphi 0, %s94
      %s98 = sphi 0, %s97
      %s114 = sphi 0, %s98
      %s122 = sphi 0, %s124
      %s125 = sphi 0, %s122
      %s126 = sphi 0, %s125
      %s142 = sphi 0, %s126
    $region4: #{vq_vae_forward.25} parent=1 // loop_header_branch
      %12 = sbr.rel (%p10) target = $region8
    $region5: #{vq_vae_forward.25} parent=1 // loop_body
      %s14 = ssub.s32 %s9, 1
      %s15 = ssub.s32 %s9, 2
      %s25 = sadd.s32 1, %s18
      %p26 = scmp.ge.s32.totalorder %s25, 2
      %s27 = scalar_select %p26, 0, %s25
      %s28 = sadd.s32 1, %s17
      %s29 = scalar_select %p26, %s28, %s17
      %p30 = scmp.ge.s32.totalorder %s29, 1
      %s31 = scalar_select %p30, 0, %s29
      %s32 = sadd.s32 1, %s16
      %s33 = scalar_select %p30, %s32, %s16
      %p34 = scmp.ge.s32.totalorder %s33, 1
      %s35 = scalar_select %p34, 0, %s33
      %s36 = ssub.s32 %s16, %s35
      %s37 = ssub.s32 %s18, %s27
      %s38 = sor.u32 %s36, %s37
      %p39 = scmp.eq.s32.totalorder %s38, 0
      %s41 = sadd.s32 %s40, 1
      %s42 = scalar_select %p39, %s40, %s41
      %p45 = pneg %p39
      %p46 = scmp.eq.s32.totalorder %s9, 1
      %p47 = por %p45, %p46
      %p48 = scmp.ne.s32.totalorder %s40, %s43
      %p49 = scmp.eq.s32.totalorder %s9, 0
      %p50 = por %p48, %p49
      %p51 = scmp.ne.s32.totalorder %s40, %s43
      %p52 = scmp.eq.s32.totalorder %s14, 1
      %p53 = por %p51, %p52
      %p54 = scmp.ne.s32.totalorder %s43, %s44
      %p55 = scmp.eq.s32.totalorder %s14, 0
      %p56 = por %p54, %p55
      %p57 = scmp.ne.s32.totalorder %s43, %s44
      %p58 = scmp.eq.s32.totalorder %s15, 1
      %p59 = por %p57, %p58
      %p61 = scmp.ne.s32.totalorder %s44, %s60
      %p62 = scmp.eq.s32.totalorder %s15, 0
      %p63 = por %p61, %p62
      %s64 = ssub.s32 %s18, %s27
      %s65 = ssub.s32 %s17, %s31
      %s66 = sor.u32 %s64, %s65
      %p67 = scmp.eq.s32.totalorder %s66, 0
      %s69 = sadd.s32 %s68, 1
      %s70 = scalar_select %p67, %s68, %s69
      %p73 = pneg %p67
      %p74 = scmp.eq.s32.totalorder %s9, 1
      %p75 = por %p73, %p74
      %p76 = scmp.ne.s32.totalorder %s68, %s71
      %p77 = scmp.eq.s32.totalorder %s9, 0
      %p78 = por %p76, %p77
      %p79 = scmp.ne.s32.totalorder %s68, %s71
      %p80 = scmp.eq.s32.totalorder %s14, 1
      %p81 = por %p79, %p80
      %p82 = scmp.ne.s32.totalorder %s71, %s72
      %p83 = scmp.eq.s32.totalorder %s14, 0
      %p84 = por %p82, %p83
      %p85 = scmp.ne.s32.totalorder %s71, %s72
      %p86 = scmp.eq.s32.totalorder %s15, 1
      %p87 = por %p85, %p86
      %p89 = scmp.ne.s32.totalorder %s72, %s88
      %p90 = scmp.eq.s32.totalorder %s15, 0
      %p91 = por %p89, %p90
      %s92 = ssub.s32 %s17, %s31
      %p93 = scmp.eq.s32.totalorder %s92, 0
      %s95 = sadd.s32 %s94, 1
      %s96 = scalar_select %p93, %s94, %s95
      %p99 = pneg %p93
      %p100 = scmp.eq.s32.totalorder %s9, 1
      %p101 = por %p99, %p100
      %p102 = scmp.ne.s32.totalorder %s94, %s97
      %p103 = scmp.eq.s32.totalorder %s9, 0
      %p104 = por %p102, %p103
      %p105 = scmp.ne.s32.totalorder %s94, %s97
      %p106 = scmp.eq.s32.totalorder %s14, 1
      %p107 = por %p105, %p106
      %p108 = scmp.ne.s32.totalorder %s97, %s98
      %p109 = scmp.eq.s32.totalorder %s14, 0
      %p110 = por %p108, %p109
      %p111 = scmp.ne.s32.totalorder %s97, %s98
      %p112 = scmp.eq.s32.totalorder %s15, 1
      %p113 = por %p111, %p112
      %p115 = scmp.ne.s32.totalorder %s98, %s114
      %p116 = scmp.eq.s32.totalorder %s15, 0
      %p117 = por %p115, %p116
      %s118 = ssub.s32 %s16, %s35
      %s119 = ssub.s32 %s17, %s31
      %s120 = sor.u32 %s118, %s119
      %p121 = scmp.eq.s32.totalorder %s120, 0
      %s123 = sadd.s32 %s122, 1
      %s124 = scalar_select %p121, %s122, %s123
      %p127 = pneg %p121
      %p128 = scmp.eq.s32.totalorder %s9, 1
      %p129 = por %p127, %p128
      %p130 = scmp.ne.s32.totalorder %s122, %s125
      %p131 = scmp.eq.s32.totalorder %s9, 0
      %p132 = por %p130, %p131
      %p133 = scmp.ne.s32.totalorder %s122, %s125
      %p134 = scmp.eq.s32.totalorder %s14, 1
      %p135 = por %p133, %p134
      %p136 = scmp.ne.s32.totalorder %s125, %s126
      %p137 = scmp.eq.s32.totalorder %s14, 0
      %p138 = por %p136, %p137
      %p139 = scmp.ne.s32.totalorder %s125, %s126
      %p140 = scmp.eq.s32.totalorder %s15, 1
      %p141 = por %p139, %p140
      %p143 = scmp.ne.s32.totalorder %s126, %s142
      %p144 = scmp.eq.s32.totalorder %s15, 0
      %p145 = por %p143, %p144
      %p146 = scmp.le.s32.totalorder 1, %s9
      %p147 = scmp.lt.s32.totalorder %s9, 3
      %p148 = pnand %p146, %p147
      %p149 = pneg %p148
      // Predicated region
      $region9: #{vq_vae_forward.25} parent=5 // pred_check
        _
      $region10: #{vq_vae_forward.25} parent=5 // pred_check_branch
        %151 = sbr.rel (%p148) target = $region12
      $region11: #{vq_vae_forward.25} parent=5 // pred_region
        %s152 = ssub.s32 %s9, 1
        // Predicated region
        $region13: #{vq_vae_forward.25} parent=11 // pred_check
          %p153 = pneg %p110
        $region14: #{vq_vae_forward.25} parent=11 // pred_check_branch
          %155 = sbr.rel (%p153) target = $region16
        $region15: #{vq_vae_forward.25} parent=11 // pred_region
          %p156 = scmp.lt.s32.totalorder %s20, 0
          %s157 = scalar_select %p156, %s20, 0
          %s158 = scalar_lea.vmem %s2, %s157
        $region16: #{vq_vae_forward.25} parent=11 // pred_fallthru
          _
      $region12: #{vq_vae_forward.25} parent=5 // pred_fallthru
        _
      %p159 = scmp.lt.s32.totalorder %s9, 2
      // Predicated region
      $region17: #{vq_vae_forward.25} parent=5 // pred_check
        %p160 = pneg %p159
      $region18: #{vq_vae_forward.25} parent=5 // pred_check_branch
        %162 = sbr.rel (%p160) target = $region20
      $region19: #{vq_vae_forward.25} parent=5 // pred_region
        // Predicated region
        $region21: #{vq_vae_forward.25} parent=19 // pred_check
          %p163 = pneg %p50
        $region22: #{vq_vae_forward.25} parent=19 // pred_check_branch
          %165 = sbr.rel (%p163) target = $region24
        $region23: #{vq_vae_forward.25} parent=19 // pred_region
          %s166 = sand.u32 %s40, 1
          %s167 = sand.u32 %s40, 1
          %s168 = smul.addr %s167, 16
          %s169 = scalar_lea.vmem [#allocation3], %s168
          %s170 = smul.u32 4, %s16
          %s171 = smul.addr %s170, 2
          %s172 = sadd.s32 %s18, %s171
          %s173 = smul.addr %s172, 4
          %s174 = scalar_lea.vmem %s0, %s173
          // Predicated region
          $region25: #{vq_vae_forward.25} parent=23 // pred_check
            _
          $region26: #{vq_vae_forward.25} parent=23 // pred_check_branch
            %176 = sbr.rel (0) target = $region28
          $region27: #{vq_vae_forward.25} parent=23 // pred_region
            // Predicated region
            $region29: #{vq_vae_forward.25} parent=27 // pred_check
              _
            $region30: #{vq_vae_forward.25} parent=27 // pred_check_branch
              %178 = sbr.rel target = $region32
            $region31: #{vq_vae_forward.25} parent=27 // pred_region
              // Predicated region
              $region44: #{vq_vae_forward.25} parent=31 // pred_check
                _
              $region45: #{vq_vae_forward.25} parent=31 // pred_check_branch
                %199 = sbr.rel (0) target = $region47
              $region46: #{vq_vae_forward.25} parent=31 // pred_region
                loop: start=0, step=1, limit=1
                $region48: #{vq_vae_forward.25} parent=46 // loop_pre_header
                  _
                $region49: #{vq_vae_forward.25} parent=46 // loop_header
                  %s201 = sphi 0, %s205
                  %p202 = scmp.ge.s32.totalorder %s201, 1
                  %s206 = sphi %s174, %s174
                  %s207 = sphi %s169, %s169
                $region50: #{vq_vae_forward.25} parent=46 // loop_header_branch
                  %204 = sbr.rel (%p202) target = $region54
                $region51: #{vq_vae_forward.25} parent=46 // loop_body
                  _
                $region52: #{vq_vae_forward.25} parent=46 // loop_footer
                  %s205 = sadd.s32 1, %s201
                $region53: #{vq_vae_forward.25} parent=46 // loop_footer_branch
                  %200 = sbr.rel target = $region49
                $region54: #{vq_vae_forward.25} parent=46 // loop_exit
                  _
                loop: start=0, step=1, limit=1
                $region55: #{vq_vae_forward.25} parent=46 // loop_pre_header
                  _
                $region56: #{vq_vae_forward.25} parent=46 // loop_header
                  %s210 = sphi 0, %s214
                  %p211 = scmp.ge.s32.totalorder %s210, 1
                  %s215 = sphi %s174, %s174
                  %s216 = sphi %s169, %s169
                $region57: #{vq_vae_forward.25} parent=46 // loop_header_branch
                  %213 = sbr.rel (%p211) target = $region61
                $region58: #{vq_vae_forward.25} parent=46 // loop_body
                  %v217 = vld [vmem:[%s215] sm:$0xf]
                  %218 = vst [vmem:[%s216] sm:$0xf] %v217
                  %v219 = vld [vmem:[%s215 + $0x8] sm:$0xf]
                  %220 = vst [vmem:[%s216 + $0x4] sm:$0xf] %v219
                  %v221 = vld [vmem:[%s215 + $0x10] sm:$0xf]
                  %222 = vst [vmem:[%s216 + $0x8] sm:$0xf] %v221
                  %v223 = vld [vmem:[%s215 + $0x18] sm:$0xf]
                  %224 = vst [vmem:[%s216 + $0xc] sm:$0xf] %v223
                $region59: #{vq_vae_forward.25} parent=46 // loop_footer
                  %s214 = sadd.s32 1, %s210
                $region60: #{vq_vae_forward.25} parent=46 // loop_footer_branch
                  %209 = sbr.rel target = $region56
                $region61: #{vq_vae_forward.25} parent=46 // loop_exit
                  _
              $region47: #{vq_vae_forward.25} parent=31 // pred_fallthru
                _
            $region32: #{vq_vae_forward.25} parent=27 // pred_fallthru
              _
            // Predicated region
            $region33: #{vq_vae_forward.25} parent=27 // pred_check
              _
            $region34: #{vq_vae_forward.25} parent=27 // pred_check_branch
              %180 = sbr.rel (0) target = $region36
            $region35: #{vq_vae_forward.25} parent=27 // pred_region
              loop: start=0, step=1, limit=1
              $region37: #{vq_vae_forward.25} parent=35 // loop_pre_header
                _
              $region38: #{vq_vae_forward.25} parent=35 // loop_header
                %s183 = sphi 0, %s187
                %p184 = scmp.ge.s32.totalorder %s183, 1
                %s188 = sphi %s174, %s174
                %s189 = sphi %s169, %s169
              $region39: #{vq_vae_forward.25} parent=35 // loop_header_branch
                %186 = sbr.rel (%p184) target = $region43
              $region40: #{vq_vae_forward.25} parent=35 // loop_body
                %v190 = vld [vmem:[%s188] sm:$0xf]
                %191 = vst [vmem:[%s189] sm:$0xf] %v190
                %v192 = vld [vmem:[%s188 + $0x8] sm:$0xf]
                %193 = vst [vmem:[%s189 + $0x4] sm:$0xf] %v192
                %v194 = vld [vmem:[%s188 + $0x10] sm:$0xf]
                %195 = vst [vmem:[%s189 + $0x8] sm:$0xf] %v194
                %v196 = vld [vmem:[%s188 + $0x18] sm:$0xf]
                %197 = vst [vmem:[%s189 + $0xc] sm:$0xf] %v196
              $region41: #{vq_vae_forward.25} parent=35 // loop_footer
                %s187 = sadd.s32 1, %s183
              $region42: #{vq_vae_forward.25} parent=35 // loop_footer_branch
                %182 = sbr.rel target = $region38
              $region43: #{vq_vae_forward.25} parent=35 // loop_exit
                _
            $region36: #{vq_vae_forward.25} parent=27 // pred_fallthru
              _
          $region28: #{vq_vae_forward.25} parent=23 // pred_fallthru
            _
          %225 = vnop
        $region24: #{vq_vae_forward.25} parent=19 // pred_fallthru
          _
        // Predicated region
        $region62: #{vq_vae_forward.25} parent=19 // pred_check
          %p226 = pneg %p78
        $region63: #{vq_vae_forward.25} parent=19 // pred_check_branch
          %228 = sbr.rel (%p226) target = $region65
        $region64: #{vq_vae_forward.25} parent=19 // pred_region
          %s229 = smul.u32 16, %s18
          %p230 = scmp.lt.s32.totalorder %s229, 31
          %s231 = scalar_select %p230, %s229, 31
          %p232 = scmp.lt.s32.totalorder %s17, 0
          %s233 = scalar_select %p232, %s17, 0
          %s234 = sadd.s32 %s233, %s231
          %s235 = smul.addr %s234, 4
          %s236 = scalar_lea.vmem %s1, %s235
          %s237 = smul.u32 16, %s18
        $region65: #{vq_vae_forward.25} parent=19 // pred_fallthru
          _
      $region20: #{vq_vae_forward.25} parent=5 // pred_fallthru
        _
      %p238 = scmp.le.s32.totalorder 1, %s9
      %p239 = scmp.lt.s32.totalorder %s9, 3
      %p240 = pnand %p238, %p239
      %p241 = pneg %p240
      // Predicated region
      $region66: #{vq_vae_forward.25} parent=5 // pred_check
        _
      $region67: #{vq_vae_forward.25} parent=5 // pred_check_branch
        %243 = sbr.rel (%p240) target = $region69
      $region68: #{vq_vae_forward.25} parent=5 // pred_region
        %s244 = ssub.s32 %s9, 1
        %s245 = sand.u32 %s43, 1
        %s246 = sand.u32 %s43, 1
        %s247 = smul.addr %s246, 16
        %s248 = scalar_lea.vmem [#allocation3], %s247
        // Predicated region
        $region70: #{vq_vae_forward.25} parent=68 // pred_check
          %p249 = pneg %p56
        $region71: #{vq_vae_forward.25} parent=68 // pred_check_branch
          %251 = sbr.rel (%p249) target = $region73
        $region72: #{vq_vae_forward.25} parent=68 // pred_region
          _
        $region73: #{vq_vae_forward.25} parent=68 // pred_fallthru
          _
        %s252 = sand.u32 %s43, 1
        %s253 = sand.u32 %s43, 1
        %s254 = smul.addr %s253, 16
        %s255 = scalar_lea.vmem [#allocation3], %s254
        %p256 = pneg %p56
        %p257 = pneg %p53
        %s258 = smul.u32 16, %s21
        %p259 = scmp.lt.s32.totalorder %s258, 31
        %s260 = scalar_select %p259, %s258, 31
        %p261 = scmp.lt.s32.totalorder %s20, 0
        %s262 = scalar_select %p261, %s20, 0
        %s263 = sadd.s32 %s262, %s260
        %s264 = smul.addr %s263, 4
        %s265 = scalar_lea.vmem %s1, %s264
        %p266 = pneg %p84
        %p267 = pneg %p81
        %p268 = scmp.lt.s32.totalorder %s20, 0
        %s269 = scalar_select %p268, %s20, 0
        %s270 = scalar_lea.vmem %s2, %s269
        %p271 = pneg %p110
        %p272 = pneg %p107
        %p273 = pneg %p138
        %p274 = pneg %p135
        %s275 = smul.u32 4, %s19
        %p276 = scmp.lt.s32.totalorder %s275, 3
        %s277 = scalar_select %p276, %s275, 3
        %p278 = scmp.lt.s32.totalorder %s20, 0
        %s279 = scalar_select %p278, %s20, 0
        %s280 = sadd.s32 %s279, %s277
        %s281 = smul.addr %s280, 4
        %s282 = scalar_lea.vmem %s3, %s281
        %s283 = smul.u32 4, %s19
        %s284 = smul.u32 16, %s21
        %p285 = scmp.lt.s32.totalorder %s284, 31
        %s286 = scalar_select %p285, %s284, 31
        %p287 = scmp.lt.s32.totalorder %s20, 0
        %s288 = scalar_select %p287, %s20, 0
        %s289 = sadd.s32 %s288, %s286
        %s290 = smul.addr %s289, 4
        %s291 = scalar_lea.vmem %s1, %s290
        %s292 = smul.u32 16, %s21
        %p293 = scmp.lt.s32.totalorder %s20, 0
        %s294 = scalar_select %p293, %s20, 0
        %s295 = scalar_lea.vmem %s2, %s294
        %s296 = smul.u32 4, %s19
        %p297 = scmp.lt.s32.totalorder %s296, 3
        %s298 = scalar_select %p297, %s296, 3
        %p299 = scmp.lt.s32.totalorder %s20, 0
        %s300 = scalar_select %p299, %s20, 0
        %s301 = sadd.s32 %s300, %s298
        %s302 = smul.addr %s301, 4
        %s303 = scalar_lea.vmem %s3, %s302
        %s304 = smul.u32 4, %s19
        %p306 = scmp.eq.s32.totalorder %s21, 0
        // Predicated region
        $region74: #{vq_vae_forward.25} parent=68 // pred_check
          %p307 = pneg %p306
        $region75: #{vq_vae_forward.25} parent=68 // pred_check_branch
          %309 = sbr.rel (%p307) target = $region77
        $region76: #{vq_vae_forward.25} parent=68 // pred_region
          %310 = vst [vmem:[#allocation2] sm:$0xff] 0.0
          %311 = vst [vmem:[#allocation2 + $0x8] sm:$0xff] 0.0
          %312 = vst [vmem:[#allocation2 + $0x10] sm:$0xff] 0.0
          %313 = vst [vmem:[#allocation2 + $0x18] sm:$0xff] 0.0
        $region77: #{vq_vae_forward.25} parent=68 // pred_fallthru
          _
        %v314 = vld [vmem:[%s248] sm:$0xf]
        %v315 = vld [vmem:[%s248 + $0x4] sm:$0xf]
        %v316 = vld [vmem:[%s248 + $0x8] sm:$0xf]
        %v317 = vld [vmem:[%s248 + $0xc] sm:$0xf]
        %v318 = vld [vmem:[#allocation2] sm:$0xff]
        %v319 = vld [vmem:[#allocation2 + $0x8] sm:$0xff]
        %v320 = vld [vmem:[#allocation2 + $0x10] sm:$0xff]
        %v321 = vld [vmem:[#allocation2 + $0x18] sm:$0xff]
        %v322 = vld [vmem:[%s291] sm:$0xf]
        %v323 = vld [vmem:[%s291 + $0x4] sm:$0xf]
        %v324 = vld [vmem:[%s291 + $0x8] sm:$0xf]
        %v325 = vld [vmem:[%s291 + $0xc] sm:$0xf]
        %v326 = vld [vmem:[%s291 + $0x10] sm:$0xf]
        %v327 = vld [vmem:[%s291 + $0x14] sm:$0xf]
        %v328 = vld [vmem:[%s291 + $0x18] sm:$0xf]
        %v329 = vld [vmem:[%s291 + $0x1c] sm:$0xf]
        %v330 = vld [vmem:[%s291 + $0x20] sm:$0xf]
        %v331 = vld [vmem:[%s291 + $0x24] sm:$0xf]
        %v332 = vld [vmem:[%s291 + $0x28] sm:$0xf]
        %v333 = vld [vmem:[%s291 + $0x2c] sm:$0xf]
        %v334 = vld [vmem:[%s291 + $0x30] sm:$0xf]
        %v335 = vld [vmem:[%s291 + $0x34] sm:$0xf]
        %v336 = vld [vmem:[%s291 + $0x38] sm:$0xf]
        %v337 = vld [vmem:[%s291 + $0x3c] sm:$0xf]
        %v342 = vunpack.c.l.b16 %v314
        %v343 = vunpack.c.l.b16 %v315
        %v344 = vunpack.c.l.b16 %v316
        %v345 = vunpack.c.l.b16 %v317
        %v346 = vpack.c.b16 %v343, %v342
        %v347 = vpack.c.b16 %v345, %v344
        %v366 = vunpack.c.l.b16 %v322
        %v367 = vunpack.c.l.b16 %v323
        %v368 = vunpack.c.l.b16 %v324
        %v369 = vunpack.c.l.b16 %v325
        %v370 = vunpack.c.l.b16 %v326
        %v371 = vunpack.c.l.b16 %v327
        %v372 = vunpack.c.l.b16 %v328
        %v373 = vunpack.c.l.b16 %v329
        %v374 = vunpack.c.l.b16 %v330
        %v375 = vunpack.c.l.b16 %v331
        %v376 = vunpack.c.l.b16 %v332
        %v377 = vunpack.c.l.b16 %v333
        %v378 = vunpack.c.l.b16 %v334
        %v379 = vunpack.c.l.b16 %v335
        %v380 = vunpack.c.l.b16 %v336
        %v381 = vunpack.c.l.b16 %v337
        %v382 = vpack.c.b16 %v367, %v366
        %v383 = vpack.c.b16 %v369, %v368
        %v384 = vpack.c.b16 %v371, %v370
        %v385 = vpack.c.b16 %v373, %v372
        %v386 = vpack.c.b16 %v375, %v374
        %v387 = vpack.c.b16 %v377, %v376
        %v388 = vpack.c.b16 %v379, %v378
        %v389 = vpack.c.b16 %v381, %v380
        %398 = vmatprep.subr.bf16.mxu0 0
        %399 = vmatpush1.bf16.msra.mxu0 %v382
        %400 = vmatprep.subr.bf16.mxu0 0
        %401 = vmatpush1.bf16.msra.mxu0 %v383
        %402 = vmatprep.subr.bf16.mxu0 0
        %403 = vmatpush1.bf16.msra.mxu0 %v384
        %404 = vmatprep.subr.bf16.mxu0 0
        %405 = vmatpush1.bf16.msra.mxu0 %v385
        %406 = vmatprep.subr.bf16.mxu0 0
        %407 = vmatpush1.bf16.msra.mxu0 %v386
        %408 = vmatprep.subr.bf16.mxu0 0
        %409 = vmatpush1.bf16.msra.mxu0 %v387
        %410 = vmatprep.subr.bf16.mxu0 0
        %411 = vmatpush1.bf16.msra.mxu0 %v388
        %412 = vmatprep.subr.bf16.mxu0 0
        %413 = vmatpush1.bf16.msra.mxu0 %v389
        %414 = vmatprep.subr.bf16.mxu0 0
        %415 = vmatpush1.bf16.msra.mxu0 0
        %416 = vmatprep.subr.bf16.mxu0 0
        %417 = vmatpush1.bf16.msra.mxu0 0
        %418 = vmatprep.subr.bf16.mxu0 0
        %419 = vmatpush1.bf16.msra.mxu0 0
        %420 = vmatprep.subr.bf16.mxu0 0
        %421 = vmatpush1.bf16.msra.mxu0 0
        %422 = vmatprep.subr.bf16.mxu0 0
        %423 = vmatpush1.bf16.msra.mxu0 0
        %424 = vmatprep.subr.bf16.mxu0 0
        %425 = vmatpush1.bf16.msra.mxu0 0
        %426 = vmatprep.subr.bf16.mxu0 0
        %427 = vmatpush1.bf16.msra.mxu0 0
        %428 = vmatprep.subr.bf16.mxu0 0
        %429 = vmatpush1.bf16.msra.mxu0 0
        %430 = vmatprep.mubr.bf16.mxu0 0
        %431 = vmatmul.mubr.bf16.gmra.mrb[0].mxu0 %v346
        %v432 = vpop.f32.mrb[0].mxu0
        %v433 = vadd.f32 0.0, %v432
        %v434 = vpop.f32.mrb[0].mxu0
        %v435 = vpop.f32.mrb[0].mxu0
        %v436 = vadd.f32 0.0, %v435
        %v437 = vpop.f32.mrb[0].mxu0
        %438 = vmatprep.mubr.bf16.mxu0 0
        %439 = vmatmul.mubr.bf16.gmra.mrb[0].mxu0 %v347
        %v440 = vpop.f32.mrb[0].mxu0
        %v441 = vadd.f32 0.0, %v440
        %v442 = vpop.f32.mrb[0].mxu0
        %v443 = vpop.f32.mrb[0].mxu0
        %v444 = vadd.f32 0.0, %v443
        %v445 = vpop.f32.mrb[0].mxu0
        %446 = vdwg.mxu0
        %v447 = vadd.f32 %v318, %v433
        %v448 = vadd.f32 %v319, %v436
        %v449 = vadd.f32 %v320, %v441
        %v450 = vadd.f32 %v321, %v444
        %451 = vst [vmem:[#allocation2] sm:$0xff] %v447
        %452 = vst [vmem:[#allocation2 + $0x8] sm:$0xff] %v448
        %453 = vst [vmem:[#allocation2 + $0x10] sm:$0xff] %v449
        %454 = vst [vmem:[#allocation2 + $0x18] sm:$0xff] %v450
        %p455 = scmp.eq.s32.totalorder %s21, 1
        // Predicated region
        $region78: #{vq_vae_forward.25} parent=68 // pred_check
          %p456 = pneg %p455
        $region79: #{vq_vae_forward.25} parent=68 // pred_check_branch
          %458 = sbr.rel (%p456) target = $region81
        $region80: #{vq_vae_forward.25} parent=68 // pred_region
          %v459 = vld [vmem:[#allocation2] sm:$0xff]
          %v460 = vld [vmem:[#allocation2 + $0x8] sm:$0xff]
          %v461 = vld [vmem:[#allocation2 + $0x10] sm:$0xff]
          %v462 = vld [vmem:[#allocation2 + $0x18] sm:$0xff]
          %v463 = vld [vmem:[%s295] sm:$0x1]
          %v465 = vlaneseq
          %v466 = vshrl.u32 %v465, 7
          %v467 = vsub.s32 0, %v466
          %v468 = vrot.slane %v463, %v467
          %v470 = vadd.f32 %v459, %v468
          %v471 = vadd.f32 %v460, %v468
          %v472 = vadd.f32 %v461, %v468
          %v473 = vadd.f32 %v462, %v468
          %v474 = vpack.c.bf16 %v471, %v470
          %v475 = vpack.c.bf16 %v473, %v472
          %v478 = vunpack.c.l.b16 %v474
          %v479 = vunpack.c.h.b16 %v474
          %v480 = vunpack.c.l.b16 %v475
          %v481 = vunpack.c.h.b16 %v475
          %v482 = vpack.c.b16 %v478, %v478
          %v483 = vpack.c.b16 %v479, %v479
          %v484 = vpack.c.b16 %v480, %v480
          %v485 = vpack.c.b16 %v481, %v481
          %490 = vst [vmem:[%s303] sm:$0xf] %v482
          %491 = vst [vmem:[%s303 + $0x4] sm:$0xf] %v483
          %492 = vst [vmem:[%s303 + $0x8] sm:$0xf] %v484
          %493 = vst [vmem:[%s303 + $0xc] sm:$0xf] %v485
        $region81: #{vq_vae_forward.25} parent=68 // pred_fallthru
          _
        %s494 = smul.u32 4, %s19
        %p495 = scmp.lt.s32.totalorder %s494, 3
        %s496 = scalar_select %p495, %s494, 3
        %p497 = scmp.lt.s32.totalorder %s20, 0
        %s498 = scalar_select %p497, %s20, 0
        %s499 = sadd.s32 %s498, %s496
        %s500 = smul.addr %s499, 4
        %s501 = scalar_lea.vmem %s3, %s500
        // Predicated region
        $region82: #{vq_vae_forward.25} parent=68 // pred_check
          %p502 = pneg %p135
        $region83: #{vq_vae_forward.25} parent=68 // pred_check_branch
          %504 = sbr.rel (%p502) target = $region85
        $region84: #{vq_vae_forward.25} parent=68 // pred_region
          %s505 = smul.u32 4, %s19
        $region85: #{vq_vae_forward.25} parent=68 // pred_fallthru
          _
        // Predicated region
        $region86: #{vq_vae_forward.25} parent=68 // pred_check
          %p506 = pneg %p135
        $region87: #{vq_vae_forward.25} parent=68 // pred_check_branch
          %508 = sbr.rel (%p506) target = $region89
        $region88: #{vq_vae_forward.25} parent=68 // pred_region
          %s509 = smul.u32 4, %s19
          %p510 = scmp.lt.s32.totalorder %s509, 3
          %s511 = scalar_select %p510, %s509, 3
          %p512 = scmp.lt.s32.totalorder %s20, 0
          %s513 = scalar_select %p512, %s20, 0
          %s514 = sadd.s32 %s513, %s511
          %s515 = smul.addr %s514, 4
          %s516 = scalar_lea.vmem %s3, %s515
        $region89: #{vq_vae_forward.25} parent=68 // pred_fallthru
          _
      $region69: #{vq_vae_forward.25} parent=5 // pred_fallthru
        _
      %p517 = scmp.le.s32.totalorder 2, %s9
      // Predicated region
      $region90: #{vq_vae_forward.25} parent=5 // pred_check
        %p518 = pneg %p517
      $region91: #{vq_vae_forward.25} parent=5 // pred_check_branch
        %520 = sbr.rel (%p518) target = $region93
      $region92: #{vq_vae_forward.25} parent=5 // pred_region
        %s521 = ssub.s32 %s9, 2
      $region93: #{vq_vae_forward.25} parent=5 // pred_fallthru
        _
    $region6: #{vq_vae_forward.25} parent=1 // loop_footer
      %s13 = sadd.s32 1, %s9
    $region7: #{vq_vae_forward.25} parent=1 // loop_footer_branch
      %8 = sbr.rel target = $region3
    $region8: #{vq_vae_forward.25} parent=1 // loop_exit
      _

// kernel: tile.18
$region0: #{tile.18}
  #allocation0 [shape = 's32[1]{0}', space=sflag, size = 0x4, scoped, tag = 'scoped memory for tile.18']
  %s0 = inlined_call_operand.vmem [shape: f32[3], index: 0, kind: input, shape index: {}]
  %s1 = inlined_call_operand.vmem [shape: f32[4,3], index: 1, kind: output, shape index: {}]
  // Predicated region
  $region2: #{tile.18} parent=0 // pred_check
    _
  $region3: #{tile.18} parent=0 // pred_check_branch
    %3 = sbr.rel (0) target = $region5
  $region4: #{tile.18} parent=0 // pred_region
    _
  $region5: #{tile.18} parent=0 // pred_fallthru
    _
  %v4 = vld [vmem:[%s0] ss:$0 sm:$0xff]
  %5 = vst [vmem:[%s1] sm:$0xf] %v4

// kernel: tile.19
$region0: #{tile.19}
  %s0 = inlined_call_operand.vmem [shape: f32[4,3], index: 0, kind: input, shape index: {}]
  %s1 = inlined_call_operand.vmem [shape: f32[12], index: 1, kind: output, shape index: {}]
  $region1: #{tile.19} parent=0
    #allocation0 [shape = 'u8[4096]{0}', space=vmem, size = 0x1000, scoped, tag = 'scoped mem for output reshape']
    #allocation1 [shape = 'u8[4096]{0}', space=vmem, size = 0x1000, scoped, tag = 'scoped mem for input reshape']
    %s3 = sshllo.u32 0, 4
    %v4 = vld [vmem:[%s0] sm:%s3]
    %5 = vst [vmem:[#allocation1] sm:%s3] %v4
    %v6 = vld [vmem:[#allocation1] sm:$0x1]
    %vm7 = vcmask 23552
    %8 = vst.msk [vmem:[#allocation0] sm:$0x1] %vm7, %v6
    %s9 = scalar_lea.vmem [#allocation1], 3
    %v10 = vld [vmem:[%s9] sm:$0x1]
    %11 = vrot.lane.b32.xlu0 %v10, 9
    %v12 = vpop.permute.xlu0 %11
    %vm13 = vcmask 97352
    %14 = vst.msk [vmem:[#allocation0] sm:$0x1] %vm13, %v12
    %s15 = scalar_lea.vmem [#allocation1], 2
    %v16 = vld [vmem:[%s15] sm:$0x1]
    %17 = vrot.lane.b32.xlu0 %v16, 6
    %v18 = vpop.permute.xlu0 %17
    %vm19 = vcmask 72752
    %20 = vst.msk [vmem:[#allocation0] sm:$0x1] %vm19, %v18
    %s21 = scalar_lea.vmem [#allocation1], 1
    %v22 = vld [vmem:[%s21] sm:$0x1]
    %23 = vrot.lane.b32.xlu0 %v22, 3
    %v24 = vpop.permute.xlu0 %23
    %vm25 = vcmask 48152
    %26 = vst.msk [vmem:[#allocation0] sm:$0x1] %vm25, %v24
    %s28 = sshllo.u32 0, 1
    %v30 = vld [vmem:[#allocation0] sm:%s28]
    %s31 = sshllo.u32 0, 1
    %32 = vst [vmem:[%s1] sm:%s31] %v30

// kernel: vq_vae_forward.31
$region0: #{vq_vae_forward.31}
  #allocation0 [shape = 'u32[]', space=smem, size = 0x4, offset = 0x4, fixed_abs, tag = 'smem constant byte address 0x4 - core index']
  #allocation1 [shape = 'u32[144,128]{1,0:T(1,128)}', space=vmem, size = 0x12000, scoped, tag = 'internal scratch']
  #allocation2 [shape = 'f32[128,128]{1,0:T(8,128)}', space=vmem, size = 0x10000, scoped, tag = 'scratch operand']
  %s0 = inlined_call_operand.vmem [shape: bf16[128,256], index: 0, kind: input, shape index: {}]
  %s1 = inlined_call_operand.vmem [shape: bf16[256,128], index: 1, kind: input, shape index: {}]
  %s2 = inlined_call_operand.vmem [shape: f32[1,128], index: 2, kind: input, shape index: {}]
  %s3 = inlined_call_operand.vmem [shape: bf16[128,128], index: 3, kind: output, shape index: {}]
  %s4 = sld [smem:[#allocation0]]
  $region94: #{vq_vae_forward.31} parent=0
    _
  %s6 = ssub.s32 1, %s4
  %s7 = scalar_select 0, %s6, %s4
  $region1: #{vq_vae_forward.31} parent=0
    #allocation3 [shape = 'u8[65536]{0}', space=vmem, size = 0x10000, scoped, tag = 'input window, operand 0']
    loop: start=0, step=1, limit=4
    $region2: #{vq_vae_forward.31} parent=1 // loop_pre_header
      _
    $region3: #{vq_vae_forward.31} parent=1 // loop_header
      %s9 = sphi 0, %s13
      %p10 = scmp.ge.s32.totalorder %s9, 4
      %s16 = sphi 0, %s35
      %s17 = sphi 0, %s31
      %s18 = sphi 0, %s27
      %s19 = sphi 0, %s16
      %s20 = sphi 0, %s17
      %s21 = sphi 0, %s18
      %s22 = sphi 0, %s19
      %s23 = sphi 0, %s20
      %s24 = sphi 0, %s21
      %s40 = sphi 0, %s42
      %s43 = sphi 0, %s40
      %s44 = sphi 0, %s43
      %s60 = sphi 0, %s44
      %s68 = sphi 0, %s70
      %s71 = sphi 0, %s68
      %s72 = sphi 0, %s71
      %s88 = sphi 0, %s72
      %s94 = sphi 0, %s96
      %s97 = sphi 0, %s94
      %s98 = sphi 0, %s97
      %s114 = sphi 0, %s98
      %s122 = sphi 0, %s124
      %s125 = sphi 0, %s122
      %s126 = sphi 0, %s125
      %s142 = sphi 0, %s126
    $region4: #{vq_vae_forward.31} parent=1 // loop_header_branch
      %12 = sbr.rel (%p10) target = $region8
    $region5: #{vq_vae_forward.31} parent=1 // loop_body
      %s14 = ssub.s32 %s9, 1
      %s15 = ssub.s32 %s9, 2
      %s25 = sadd.s32 1, %s18
      %p26 = scmp.ge.s32.totalorder %s25, 2
      %s27 = scalar_select %p26, 0, %s25
      %s28 = sadd.s32 1, %s17
      %s29 = scalar_select %p26, %s28, %s17
      %p30 = scmp.ge.s32.totalorder %s29, 1
      %s31 = scalar_select %p30, 0, %s29
      %s32 = sadd.s32 1, %s16
      %s33 = scalar_select %p30, %s32, %s16
      %p34 = scmp.ge.s32.totalorder %s33, 1
      %s35 = scalar_select %p34, 0, %s33
      %s36 = ssub.s32 %s16, %s35
      %s37 = ssub.s32 %s18, %s27
      %s38 = sor.u32 %s36, %s37
      %p39 = scmp.eq.s32.totalorder %s38, 0
      %s41 = sadd.s32 %s40, 1
      %s42 = scalar_select %p39, %s40, %s41
      %p45 = pneg %p39
      %p46 = scmp.eq.s32.totalorder %s9, 1
      %p47 = por %p45, %p46
      %p48 = scmp.ne.s32.totalorder %s40, %s43
      %p49 = scmp.eq.s32.totalorder %s9, 0
      %p50 = por %p48, %p49
      %p51 = scmp.ne.s32.totalorder %s40, %s43
      %p52 = scmp.eq.s32.totalorder %s14, 1
      %p53 = por %p51, %p52
      %p54 = scmp.ne.s32.totalorder %s43, %s44
      %p55 = scmp.eq.s32.totalorder %s14, 0
      %p56 = por %p54, %p55
      %p57 = scmp.ne.s32.totalorder %s43, %s44
      %p58 = scmp.eq.s32.totalorder %s15, 1
      %p59 = por %p57, %p58
      %p61 = scmp.ne.s32.totalorder %s44, %s60
      %p62 = scmp.eq.s32.totalorder %s15, 0
      %p63 = por %p61, %p62
      %s64 = ssub.s32 %s18, %s27
      %s65 = ssub.s32 %s17, %s31
      %s66 = sor.u32 %s64, %s65
      %p67 = scmp.eq.s32.totalorder %s66, 0
      %s69 = sadd.s32 %s68, 1
      %s70 = scalar_select %p67, %s68, %s69
      %p73 = pneg %p67
      %p74 = scmp.eq.s32.totalorder %s9, 1
      %p75 = por %p73, %p74
      %p76 = scmp.ne.s32.totalorder %s68, %s71
      %p77 = scmp.eq.s32.totalorder %s9, 0
      %p78 = por %p76, %p77
      %p79 = scmp.ne.s32.totalorder %s68, %s71
      %p80 = scmp.eq.s32.totalorder %s14, 1
      %p81 = por %p79, %p80
      %p82 = scmp.ne.s32.totalorder %s71, %s72
      %p83 = scmp.eq.s32.totalorder %s14, 0
      %p84 = por %p82, %p83
      %p85 = scmp.ne.s32.totalorder %s71, %s72
      %p86 = scmp.eq.s32.totalorder %s15, 1
      %p87 = por %p85, %p86
      %p89 = scmp.ne.s32.totalorder %s72, %s88
      %p90 = scmp.eq.s32.totalorder %s15, 0
      %p91 = por %p89, %p90
      %s92 = ssub.s32 %s17, %s31
      %p93 = scmp.eq.s32.totalorder %s92, 0
      %s95 = sadd.s32 %s94, 1
      %s96 = scalar_select %p93, %s94, %s95
      %p99 = pneg %p93
      %p100 = scmp.eq.s32.totalorder %s9, 1
      %p101 = por %p99, %p100
      %p102 = scmp.ne.s32.totalorder %s94, %s97
      %p103 = scmp.eq.s32.totalorder %s9, 0
      %p104 = por %p102, %p103
      %p105 = scmp.ne.s32.totalorder %s94, %s97
      %p106 = scmp.eq.s32.totalorder %s14, 1
      %p107 = por %p105, %p106
      %p108 = scmp.ne.s32.totalorder %s97, %s98
      %p109 = scmp.eq.s32.totalorder %s14, 0
      %p110 = por %p108, %p109
      %p111 = scmp.ne.s32.totalorder %s97, %s98
      %p112 = scmp.eq.s32.totalorder %s15, 1
      %p113 = por %p111, %p112
      %p115 = scmp.ne.s32.totalorder %s98, %s114
      %p116 = scmp.eq.s32.totalorder %s15, 0
      %p117 = por %p115, %p116
      %s118 = ssub.s32 %s16, %s35
      %s119 = ssub.s32 %s17, %s31
      %s120 = sor.u32 %s118, %s119
      %p121 = scmp.eq.s32.totalorder %s120, 0
      %s123 = sadd.s32 %s122, 1
      %s124 = scalar_select %p121, %s122, %s123
      %p127 = pneg %p121
      %p128 = scmp.eq.s32.totalorder %s9, 1
      %p129 = por %p127, %p128
      %p130 = scmp.ne.s32.totalorder %s122, %s125
      %p131 = scmp.eq.s32.totalorder %s9, 0
      %p132 = por %p130, %p131
      %p133 = scmp.ne.s32.totalorder %s122, %s125
      %p134 = scmp.eq.s32.totalorder %s14, 1
      %p135 = por %p133, %p134
      %p136 = scmp.ne.s32.totalorder %s125, %s126
      %p137 = scmp.eq.s32.totalorder %s14, 0
      %p138 = por %p136, %p137
      %p139 = scmp.ne.s32.totalorder %s125, %s126
      %p140 = scmp.eq.s32.totalorder %s15, 1
      %p141 = por %p139, %p140
      %p143 = scmp.ne.s32.totalorder %s126, %s142
      %p144 = scmp.eq.s32.totalorder %s15, 0
      %p145 = por %p143, %p144
      %p146 = scmp.le.s32.totalorder 1, %s9
      %p147 = scmp.lt.s32.totalorder %s9, 3
      %p148 = pnand %p146, %p147
      %p149 = pneg %p148
      // Predicated region
      $region9: #{vq_vae_forward.31} parent=5 // pred_check
        _
      $region10: #{vq_vae_forward.31} parent=5 // pred_check_branch
        %151 = sbr.rel (%p148) target = $region12
      $region11: #{vq_vae_forward.31} parent=5 // pred_region
        %s152 = ssub.s32 %s9, 1
        // Predicated region
        $region13: #{vq_vae_forward.31} parent=11 // pred_check
          %p153 = pneg %p110
        $region14: #{vq_vae_forward.31} parent=11 // pred_check_branch
          %155 = sbr.rel (%p153) target = $region16
        $region15: #{vq_vae_forward.31} parent=11 // pred_region
          %p156 = scmp.lt.s32.totalorder %s20, 0
          %s157 = scalar_select %p156, %s20, 0
          %s158 = scalar_lea.vmem %s2, %s157
        $region16: #{vq_vae_forward.31} parent=11 // pred_fallthru
          _
      $region12: #{vq_vae_forward.31} parent=5 // pred_fallthru
        _
      %p159 = scmp.lt.s32.totalorder %s9, 2
      // Predicated region
      $region17: #{vq_vae_forward.31} parent=5 // pred_check
        %p160 = pneg %p159
      $region18: #{vq_vae_forward.31} parent=5 // pred_check_branch
        %162 = sbr.rel (%p160) target = $region20
      $region19: #{vq_vae_forward.31} parent=5 // pred_region
        // Predicated region
        $region21: #{vq_vae_forward.31} parent=19 // pred_check
          %p163 = pneg %p50
        $region22: #{vq_vae_forward.31} parent=19 // pred_check_branch
          %165 = sbr.rel (%p163) target = $region24
        $region23: #{vq_vae_forward.31} parent=19 // pred_region
          %s166 = sand.u32 %s40, 1
          %s167 = sand.u32 %s40, 1
          %s168 = smul.addr %s167, 64
          %s169 = scalar_lea.vmem [#allocation3], %s168
          %s170 = smul.u32 16, %s16
          %s171 = smul.addr %s170, 2
          %s172 = sadd.s32 %s18, %s171
          %s173 = smul.addr %s172, 4
          %s174 = scalar_lea.vmem %s0, %s173
          // Predicated region
          $region25: #{vq_vae_forward.31} parent=23 // pred_check
            _
          $region26: #{vq_vae_forward.31} parent=23 // pred_check_branch
            %176 = sbr.rel (0) target = $region28
          $region27: #{vq_vae_forward.31} parent=23 // pred_region
            // Predicated region
            $region29: #{vq_vae_forward.31} parent=27 // pred_check
              _
            $region30: #{vq_vae_forward.31} parent=27 // pred_check_branch
              %178 = sbr.rel target = $region32
            $region31: #{vq_vae_forward.31} parent=27 // pred_region
              // Predicated region
              $region44: #{vq_vae_forward.31} parent=31 // pred_check
                _
              $region45: #{vq_vae_forward.31} parent=31 // pred_check_branch
                %223 = sbr.rel (0) target = $region47
              $region46: #{vq_vae_forward.31} parent=31 // pred_region
                loop: start=0, step=1, limit=1
                $region48: #{vq_vae_forward.31} parent=46 // loop_pre_header
                  _
                $region49: #{vq_vae_forward.31} parent=46 // loop_header
                  %s225 = sphi 0, %s229
                  %p226 = scmp.ge.s32.totalorder %s225, 1
                  %s230 = sphi %s174, %s174
                  %s231 = sphi %s169, %s169
                $region50: #{vq_vae_forward.31} parent=46 // loop_header_branch
                  %228 = sbr.rel (%p226) target = $region54
                $region51: #{vq_vae_forward.31} parent=46 // loop_body
                  _
                $region52: #{vq_vae_forward.31} parent=46 // loop_footer
                  %s229 = sadd.s32 1, %s225
                $region53: #{vq_vae_forward.31} parent=46 // loop_footer_branch
                  %224 = sbr.rel target = $region49
                $region54: #{vq_vae_forward.31} parent=46 // loop_exit
                  _
                loop: start=0, step=1, limit=1
                $region55: #{vq_vae_forward.31} parent=46 // loop_pre_header
                  _
                $region56: #{vq_vae_forward.31} parent=46 // loop_header
                  %s234 = sphi 0, %s238
                  %p235 = scmp.ge.s32.totalorder %s234, 1
                  %s239 = sphi %s174, %s174
                  %s240 = sphi %s169, %s169
                $region57: #{vq_vae_forward.31} parent=46 // loop_header_branch
                  %237 = sbr.rel (%p235) target = $region61
                $region58: #{vq_vae_forward.31} parent=46 // loop_body
                  %v241 = vld [vmem:[%s239] sm:$0xf]
                  %242 = vst [vmem:[%s240] sm:$0xf] %v241
                  %v243 = vld [vmem:[%s239 + $0x8] sm:$0xf]
                  %244 = vst [vmem:[%s240 + $0x4] sm:$0xf] %v243
                  %v245 = vld [vmem:[%s239 + $0x10] sm:$0xf]
                  %246 = vst [vmem:[%s240 + $0x8] sm:$0xf] %v245
                  %v247 = vld [vmem:[%s239 + $0x18] sm:$0xf]
                  %248 = vst [vmem:[%s240 + $0xc] sm:$0xf] %v247
                  %v249 = vld [vmem:[%s239 + $0x20] sm:$0xf]
                  %250 = vst [vmem:[%s240 + $0x10] sm:$0xf] %v249
                  %v251 = vld [vmem:[%s239 + $0x28] sm:$0xf]
                  %252 = vst [vmem:[%s240 + $0x14] sm:$0xf] %v251
                  %v253 = vld [vmem:[%s239 + $0x30] sm:$0xf]
                  %254 = vst [vmem:[%s240 + $0x18] sm:$0xf] %v253
                  %v255 = vld [vmem:[%s239 + $0x38] sm:$0xf]
                  %256 = vst [vmem:[%s240 + $0x1c] sm:$0xf] %v255
                  %v257 = vld [vmem:[%s239 + $0x40] sm:$0xf]
                  %258 = vst [vmem:[%s240 + $0x20] sm:$0xf] %v257
                  %v259 = vld [vmem:[%s239 + $0x48] sm:$0xf]
                  %260 = vst [vmem:[%s240 + $0x24] sm:$0xf] %v259
                  %v261 = vld [vmem:[%s239 + $0x50] sm:$0xf]
                  %262 = vst [vmem:[%s240 + $0x28] sm:$0xf] %v261
                  %v263 = vld [vmem:[%s239 + $0x58] sm:$0xf]
                  %264 = vst [vmem:[%s240 + $0x2c] sm:$0xf] %v263
                  %v265 = vld [vmem:[%s239 + $0x60] sm:$0xf]
                  %266 = vst [vmem:[%s240 + $0x30] sm:$0xf] %v265
                  %v267 = vld [vmem:[%s239 + $0x68] sm:$0xf]
                  %268 = vst [vmem:[%s240 + $0x34] sm:$0xf] %v267
                  %v269 = vld [vmem:[%s239 + $0x70] sm:$0xf]
                  %270 = vst [vmem:[%s240 + $0x38] sm:$0xf] %v269
                  %v271 = vld [vmem:[%s239 + $0x78] sm:$0xf]
                  %272 = vst [vmem:[%s240 + $0x3c] sm:$0xf] %v271
                $region59: #{vq_vae_forward.31} parent=46 // loop_footer
                  %s238 = sadd.s32 1, %s234
                $region60: #{vq_vae_forward.31} parent=46 // loop_footer_branch
                  %233 = sbr.rel target = $region56
                $region61: #{vq_vae_forward.31} parent=46 // loop_exit
                  _
              $region47: #{vq_vae_forward.31} parent=31 // pred_fallthru
                _
            $region32: #{vq_vae_forward.31} parent=27 // pred_fallthru
              _
            // Predicated region
            $region33: #{vq_vae_forward.31} parent=27 // pred_check
              _
            $region34: #{vq_vae_forward.31} parent=27 // pred_check_branch
              %180 = sbr.rel (0) target = $region36
            $region35: #{vq_vae_forward.31} parent=27 // pred_region
              loop: start=0, step=1, limit=1
              $region37: #{vq_vae_forward.31} parent=35 // loop_pre_header
                _
              $region38: #{vq_vae_forward.31} parent=35 // loop_header
                %s183 = sphi 0, %s187
                %p184 = scmp.ge.s32.totalorder %s183, 1
                %s188 = sphi %s174, %s174
                %s189 = sphi %s169, %s169
              $region39: #{vq_vae_forward.31} parent=35 // loop_header_branch
                %186 = sbr.rel (%p184) target = $region43
              $region40: #{vq_vae_forward.31} parent=35 // loop_body
                %v190 = vld [vmem:[%s188] sm:$0xf]
                %191 = vst [vmem:[%s189] sm:$0xf] %v190
                %v192 = vld [vmem:[%s188 + $0x8] sm:$0xf]
                %193 = vst [vmem:[%s189 + $0x4] sm:$0xf] %v192
                %v194 = vld [vmem:[%s188 + $0x10] sm:$0xf]
                %195 = vst [vmem:[%s189 + $0x8] sm:$0xf] %v194
                %v196 = vld [vmem:[%s188 + $0x18] sm:$0xf]
                %197 = vst [vmem:[%s189 + $0xc] sm:$0xf] %v196
                %v198 = vld [vmem:[%s188 + $0x20] sm:$0xf]
                %199 = vst [vmem:[%s189 + $0x10] sm:$0xf] %v198
                %v200 = vld [vmem:[%s188 + $0x28] sm:$0xf]
                %201 = vst [vmem:[%s189 + $0x14] sm:$0xf] %v200
                %v202 = vld [vmem:[%s188 + $0x30] sm:$0xf]
                %203 = vst [vmem:[%s189 + $0x18] sm:$0xf] %v202
                %v204 = vld [vmem:[%s188 + $0x38] sm:$0xf]
                %205 = vst [vmem:[%s189 + $0x1c] sm:$0xf] %v204
                %v206 = vld [vmem:[%s188 + $0x40] sm:$0xf]
                %207 = vst [vmem:[%s189 + $0x20] sm:$0xf] %v206
                %v208 = vld [vmem:[%s188 + $0x48] sm:$0xf]
                %209 = vst [vmem:[%s189 + $0x24] sm:$0xf] %v208
                %v210 = vld [vmem:[%s188 + $0x50] sm:$0xf]
                %211 = vst [vmem:[%s189 + $0x28] sm:$0xf] %v210
                %v212 = vld [vmem:[%s188 + $0x58] sm:$0xf]
                %213 = vst [vmem:[%s189 + $0x2c] sm:$0xf] %v212
                %v214 = vld [vmem:[%s188 + $0x60] sm:$0xf]
                %215 = vst [vmem:[%s189 + $0x30] sm:$0xf] %v214
                %v216 = vld [vmem:[%s188 + $0x68] sm:$0xf]
                %217 = vst [vmem:[%s189 + $0x34] sm:$0xf] %v216
                %v218 = vld [vmem:[%s188 + $0x70] sm:$0xf]
                %219 = vst [vmem:[%s189 + $0x38] sm:$0xf] %v218
                %v220 = vld [vmem:[%s188 + $0x78] sm:$0xf]
                %221 = vst [vmem:[%s189 + $0x3c] sm:$0xf] %v220
              $region41: #{vq_vae_forward.31} parent=35 // loop_footer
                %s187 = sadd.s32 1, %s183
              $region42: #{vq_vae_forward.31} parent=35 // loop_footer_branch
                %182 = sbr.rel target = $region38
              $region43: #{vq_vae_forward.31} parent=35 // loop_exit
                _
            $region36: #{vq_vae_forward.31} parent=27 // pred_fallthru
              _
          $region28: #{vq_vae_forward.31} parent=23 // pred_fallthru
            _
          %273 = vnop
        $region24: #{vq_vae_forward.31} parent=19 // pred_fallthru
          _
        // Predicated region
        $region62: #{vq_vae_forward.31} parent=19 // pred_check
          %p274 = pneg %p78
        $region63: #{vq_vae_forward.31} parent=19 // pred_check_branch
          %276 = sbr.rel (%p274) target = $region65
        $region64: #{vq_vae_forward.31} parent=19 // pred_region
          %s277 = smul.u32 16, %s18
          %p278 = scmp.lt.s32.totalorder %s277, 31
          %s279 = scalar_select %p278, %s277, 31
          %p280 = scmp.lt.s32.totalorder %s17, 0
          %s281 = scalar_select %p280, %s17, 0
          %s282 = sadd.s32 %s281, %s279
          %s283 = smul.addr %s282, 4
          %s284 = scalar_lea.vmem %s1, %s283
          %s285 = smul.u32 16, %s18
        $region65: #{vq_vae_forward.31} parent=19 // pred_fallthru
          _
      $region20: #{vq_vae_forward.31} parent=5 // pred_fallthru
        _
      %p286 = scmp.le.s32.totalorder 1, %s9
      %p287 = scmp.lt.s32.totalorder %s9, 3
      %p288 = pnand %p286, %p287
      %p289 = pneg %p288
      // Predicated region
      $region66: #{vq_vae_forward.31} parent=5 // pred_check
        _
      $region67: #{vq_vae_forward.31} parent=5 // pred_check_branch
        %291 = sbr.rel (%p288) target = $region69
      $region68: #{vq_vae_forward.31} parent=5 // pred_region
        %s292 = ssub.s32 %s9, 1
        %s293 = sand.u32 %s43, 1
        %s294 = sand.u32 %s43, 1
        %s295 = smul.addr %s294, 64
        %s296 = scalar_lea.vmem [#allocation3], %s295
        // Predicated region
        $region70: #{vq_vae_forward.31} parent=68 // pred_check
          %p297 = pneg %p56
        $region71: #{vq_vae_forward.31} parent=68 // pred_check_branch
          %299 = sbr.rel (%p297) target = $region73
        $region72: #{vq_vae_forward.31} parent=68 // pred_region
          _
        $region73: #{vq_vae_forward.31} parent=68 // pred_fallthru
          _
        %s300 = sand.u32 %s43, 1
        %s301 = sand.u32 %s43, 1
        %s302 = smul.addr %s301, 64
        %s303 = scalar_lea.vmem [#allocation3], %s302
        %p304 = pneg %p56
        %p305 = pneg %p53
        %s306 = smul.u32 16, %s21
        %p307 = scmp.lt.s32.totalorder %s306, 31
        %s308 = scalar_select %p307, %s306, 31
        %p309 = scmp.lt.s32.totalorder %s20, 0
        %s310 = scalar_select %p309, %s20, 0
        %s311 = sadd.s32 %s310, %s308
        %s312 = smul.addr %s311, 4
        %s313 = scalar_lea.vmem %s1, %s312
        %p314 = pneg %p84
        %p315 = pneg %p81
        %p316 = scmp.lt.s32.totalorder %s20, 0
        %s317 = scalar_select %p316, %s20, 0
        %s318 = scalar_lea.vmem %s2, %s317
        %p319 = pneg %p110
        %p320 = pneg %p107
        %p321 = pneg %p138
        %p322 = pneg %p135
        %s323 = smul.u32 16, %s19
        %p324 = scmp.lt.s32.totalorder %s323, 15
        %s325 = scalar_select %p324, %s323, 15
        %p326 = scmp.lt.s32.totalorder %s20, 0
        %s327 = scalar_select %p326, %s20, 0
        %s328 = sadd.s32 %s327, %s325
        %s329 = smul.addr %s328, 4
        %s330 = scalar_lea.vmem %s3, %s329
        %s331 = smul.u32 16, %s19
        %s332 = smul.u32 16, %s21
        %p333 = scmp.lt.s32.totalorder %s332, 31
        %s334 = scalar_select %p333, %s332, 31
        %p335 = scmp.lt.s32.totalorder %s20, 0
        %s336 = scalar_select %p335, %s20, 0
        %s337 = sadd.s32 %s336, %s334
        %s338 = smul.addr %s337, 4
        %s339 = scalar_lea.vmem %s1, %s338
        %s340 = smul.u32 16, %s21
        %p341 = scmp.lt.s32.totalorder %s20, 0
        %s342 = scalar_select %p341, %s20, 0
        %s343 = scalar_lea.vmem %s2, %s342
        %s344 = smul.u32 16, %s19
        %p345 = scmp.lt.s32.totalorder %s344, 15
        %s346 = scalar_select %p345, %s344, 15
        %p347 = scmp.lt.s32.totalorder %s20, 0
        %s348 = scalar_select %p347, %s20, 0
        %s349 = sadd.s32 %s348, %s346
        %s350 = smul.addr %s349, 4
        %s351 = scalar_lea.vmem %s3, %s350
        %s352 = smul.u32 16, %s19
        %p354 = scmp.eq.s32.totalorder %s21, 0
        // Predicated region
        $region74: #{vq_vae_forward.31} parent=68 // pred_check
          %p355 = pneg %p354
        $region75: #{vq_vae_forward.31} parent=68 // pred_check_branch
          %357 = sbr.rel (%p355) target = $region77
        $region76: #{vq_vae_forward.31} parent=68 // pred_region
          %358 = vst [vmem:[#allocation2] sm:$0xff] 0.0
          %359 = vst [vmem:[#allocation2 + $0x8] sm:$0xff] 0.0
          %360 = vst [vmem:[#allocation2 + $0x10] sm:$0xff] 0.0
          %361 = vst [vmem:[#allocation2 + $0x18] sm:$0xff] 0.0
          %362 = vst [vmem:[#allocation2 + $0x20] sm:$0xff] 0.0
          %363 = vst [vmem:[#allocation2 + $0x28] sm:$0xff] 0.0
          %364 = vst [vmem:[#allocation2 + $0x30] sm:$0xff] 0.0
          %365 = vst [vmem:[#allocation2 + $0x38] sm:$0xff] 0.0
          %366 = vst [vmem:[#allocation2 + $0x40] sm:$0xff] 0.0
          %367 = vst [vmem:[#allocation2 + $0x48] sm:$0xff] 0.0
          %368 = vst [vmem:[#allocation2 + $0x50] sm:$0xff] 0.0
          %369 = vst [vmem:[#allocation2 + $0x58] sm:$0xff] 0.0
          %370 = vst [vmem:[#allocation2 + $0x60] sm:$0xff] 0.0
          %371 = vst [vmem:[#allocation2 + $0x68] sm:$0xff] 0.0
          %372 = vst [vmem:[#allocation2 + $0x70] sm:$0xff] 0.0
          %373 = vst [vmem:[#allocation2 + $0x78] sm:$0xff] 0.0
        $region77: #{vq_vae_forward.31} parent=68 // pred_fallthru
          _
        %v374 = vld [vmem:[%s296] sm:$0xf]
        %v375 = vld [vmem:[%s296 + $0x4] sm:$0xf]
        %v376 = vld [vmem:[%s296 + $0x8] sm:$0xf]
        %v377 = vld [vmem:[%s296 + $0xc] sm:$0xf]
        %v378 = vld [vmem:[%s296 + $0x10] sm:$0xf]
        %v379 = vld [vmem:[%s296 + $0x14] sm:$0xf]
        %v380 = vld [vmem:[%s296 + $0x18] sm:$0xf]
        %v381 = vld [vmem:[%s296 + $0x1c] sm:$0xf]
        %v382 = vld [vmem:[%s296 + $0x20] sm:$0xf]
        %v383 = vld [vmem:[%s296 + $0x24] sm:$0xf]
        %v384 = vld [vmem:[%s296 + $0x28] sm:$0xf]
        %v385 = vld [vmem:[%s296 + $0x2c] sm:$0xf]
        %v386 = vld [vmem:[%s296 + $0x30] sm:$0xf]
        %v387 = vld [vmem:[%s296 + $0x34] sm:$0xf]
        %v388 = vld [vmem:[%s296 + $0x38] sm:$0xf]
        %v389 = vld [vmem:[%s296 + $0x3c] sm:$0xf]
        %v390 = vmax.bf16 %v374, 0
        %v391 = vmax.bf16 %v375, 0
        %v392 = vmax.bf16 %v376, 0
        %v393 = vmax.bf16 %v377, 0
        %v394 = vmax.bf16 %v378, 0
        %v395 = vmax.bf16 %v379, 0
        %v396 = vmax.bf16 %v380, 0
        %v397 = vmax.bf16 %v381, 0
        %v398 = vmax.bf16 %v382, 0
        %v399 = vmax.bf16 %v383, 0
        %v400 = vmax.bf16 %v384, 0
        %v401 = vmax.bf16 %v385, 0
        %v402 = vmax.bf16 %v386, 0
        %v403 = vmax.bf16 %v387, 0
        %v404 = vmax.bf16 %v388, 0
        %v405 = vmax.bf16 %v389, 0
        %v406 = vld [vmem:[#allocation2] sm:$0xff]
        %v407 = vld [vmem:[#allocation2 + $0x8] sm:$0xff]
        %v408 = vld [vmem:[#allocation2 + $0x10] sm:$0xff]
        %v409 = vld [vmem:[#allocation2 + $0x18] sm:$0xff]
        %v410 = vld [vmem:[#allocation2 + $0x20] sm:$0xff]
        %v411 = vld [vmem:[#allocation2 + $0x28] sm:$0xff]
        %v412 = vld [vmem:[#allocation2 + $0x30] sm:$0xff]
        %v413 = vld [vmem:[#allocation2 + $0x38] sm:$0xff]
        %v414 = vld [vmem:[#allocation2 + $0x40] sm:$0xff]
        %v415 = vld [vmem:[#allocation2 + $0x48] sm:$0xff]
        %v416 = vld [vmem:[#allocation2 + $0x50] sm:$0xff]
        %v417 = vld [vmem:[#allocation2 + $0x58] sm:$0xff]
        %v418 = vld [vmem:[#allocation2 + $0x60] sm:$0xff]
        %v419 = vld [vmem:[#allocation2 + $0x68] sm:$0xff]
        %v420 = vld [vmem:[#allocation2 + $0x70] sm:$0xff]
        %v421 = vld [vmem:[#allocation2 + $0x78] sm:$0xff]
        %v422 = vld [vmem:[%s339] sm:$0xf]
        %v423 = vld [vmem:[%s339 + $0x4] sm:$0xf]
        %v424 = vld [vmem:[%s339 + $0x8] sm:$0xf]
        %v425 = vld [vmem:[%s339 + $0xc] sm:$0xf]
        %v426 = vld [vmem:[%s339 + $0x10] sm:$0xf]
        %v427 = vld [vmem:[%s339 + $0x14] sm:$0xf]
        %v428 = vld [vmem:[%s339 + $0x18] sm:$0xf]
        %v429 = vld [vmem:[%s339 + $0x1c] sm:$0xf]
        %v430 = vld [vmem:[%s339 + $0x20] sm:$0xf]
        %v431 = vld [vmem:[%s339 + $0x24] sm:$0xf]
        %v432 = vld [vmem:[%s339 + $0x28] sm:$0xf]
        %v433 = vld [vmem:[%s339 + $0x2c] sm:$0xf]
        %v434 = vld [vmem:[%s339 + $0x30] sm:$0xf]
        %v435 = vld [vmem:[%s339 + $0x34] sm:$0xf]
        %v436 = vld [vmem:[%s339 + $0x38] sm:$0xf]
        %v437 = vld [vmem:[%s339 + $0x3c] sm:$0xf]
        %v454 = vunpack.c.l.b16 %v390
        %v455 = vunpack.c.l.b16 %v391
        %v456 = vunpack.c.l.b16 %v392
        %v457 = vunpack.c.l.b16 %v393
        %v458 = vunpack.c.l.b16 %v394
        %v459 = vunpack.c.l.b16 %v395
        %v460 = vunpack.c.l.b16 %v396
        %v461 = vunpack.c.l.b16 %v397
        %v462 = vunpack.c.l.b16 %v398
        %v463 = vunpack.c.l.b16 %v399
        %v464 = vunpack.c.l.b16 %v400
        %v465 = vunpack.c.l.b16 %v401
        %v466 = vunpack.c.l.b16 %v402
        %v467 = vunpack.c.l.b16 %v403
        %v468 = vunpack.c.l.b16 %v404
        %v469 = vunpack.c.l.b16 %v405
        %v470 = vpack.c.b16 %v455, %v454
        %v471 = vpack.c.b16 %v457, %v456
        %v472 = vpack.c.b16 %v459, %v458
        %v473 = vpack.c.b16 %v461, %v460
        %v474 = vpack.c.b16 %v463, %v462
        %v475 = vpack.c.b16 %v465, %v464
        %v476 = vpack.c.b16 %v467, %v466
        %v477 = vpack.c.b16 %v469, %v468
        %v502 = vunpack.c.l.b16 %v422
        %v503 = vunpack.c.l.b16 %v423
        %v504 = vunpack.c.l.b16 %v424
        %v505 = vunpack.c.l.b16 %v425
        %v506 = vunpack.c.l.b16 %v426
        %v507 = vunpack.c.l.b16 %v427
        %v508 = vunpack.c.l.b16 %v428
        %v509 = vunpack.c.l.b16 %v429
        %v510 = vunpack.c.l.b16 %v430
        %v511 = vunpack.c.l.b16 %v431
        %v512 = vunpack.c.l.b16 %v432
        %v513 = vunpack.c.l.b16 %v433
        %v514 = vunpack.c.l.b16 %v434
        %v515 = vunpack.c.l.b16 %v435
        %v516 = vunpack.c.l.b16 %v436
        %v517 = vunpack.c.l.b16 %v437
        %v518 = vpack.c.b16 %v503, %v502
        %v519 = vpack.c.b16 %v505, %v504
        %v520 = vpack.c.b16 %v507, %v506
        %v521 = vpack.c.b16 %v509, %v508
        %v522 = vpack.c.b16 %v511, %v510
        %v523 = vpack.c.b16 %v513, %v512
        %v524 = vpack.c.b16 %v515, %v514
        %v525 = vpack.c.b16 %v517, %v516
        %534 = vmatprep.subr.bf16.mxu0 0
        %535 = vmatpush1.bf16.msra.mxu0 %v518
        %536 = vmatprep.subr.bf16.mxu0 0
        %537 = vmatpush1.bf16.msra.mxu0 %v519
        %538 = vmatprep.subr.bf16.mxu0 0
        %539 = vmatpush1.bf16.msra.mxu0 %v520
        %540 = vmatprep.subr.bf16.mxu0 0
        %541 = vmatpush1.bf16.msra.mxu0 %v521
        %542 = vmatprep.subr.bf16.mxu0 0
        %543 = vmatpush1.bf16.msra.mxu0 %v522
        %544 = vmatprep.subr.bf16.mxu0 0
        %545 = vmatpush1.bf16.msra.mxu0 %v523
        %546 = vmatprep.subr.bf16.mxu0 0
        %547 = vmatpush1.bf16.msra.mxu0 %v524
        %548 = vmatprep.subr.bf16.mxu0 0
        %549 = vmatpush1.bf16.msra.mxu0 %v525
        %550 = vmatprep.subr.bf16.mxu0 0
        %551 = vmatpush1.bf16.msra.mxu0 0
        %552 = vmatprep.subr.bf16.mxu0 0
        %553 = vmatpush1.bf16.msra.mxu0 0
        %554 = vmatprep.subr.bf16.mxu0 0
        %555 = vmatpush1.bf16.msra.mxu0 0
        %556 = vmatprep.subr.bf16.mxu0 0
        %557 = vmatpush1.bf16.msra.mxu0 0
        %558 = vmatprep.subr.bf16.mxu0 0
        %559 = vmatpush1.bf16.msra.mxu0 0
        %560 = vmatprep.subr.bf16.mxu0 0
        %561 = vmatpush1.bf16.msra.mxu0 0
        %562 = vmatprep.subr.bf16.mxu0 0
        %563 = vmatpush1.bf16.msra.mxu0 0
        %564 = vmatprep.subr.bf16.mxu0 0
        %565 = vmatpush1.bf16.msra.mxu0 0
        %566 = vmatprep.mubr.bf16.mxu0 0
        %567 = vmatmul.mubr.bf16.gmra.mrb[0].mxu0 %v470
        %v568 = vpop.f32.mrb[0].mxu0
        %v569 = vadd.f32 0.0, %v568
        %v570 = vpop.f32.mrb[0].mxu0
        %v571 = vpop.f32.mrb[0].mxu0
        %v572 = vadd.f32 0.0, %v571
        %v573 = vpop.f32.mrb[0].mxu0
        %574 = vmatprep.mubr.bf16.mxu0 0
        %575 = vmatmul.mubr.bf16.gmra.mrb[0].mxu0 %v471
        %v576 = vpop.f32.mrb[0].mxu0
        %v577 = vadd.f32 0.0, %v576
        %v578 = vpop.f32.mrb[0].mxu0
        %v579 = vpop.f32.mrb[0].mxu0
        %v580 = vadd.f32 0.0, %v579
        %v581 = vpop.f32.mrb[0].mxu0
        %582 = vmatprep.mubr.bf16.mxu0 0
        %583 = vmatmul.mubr.bf16.gmra.mrb[0].mxu0 %v472
        %v584 = vpop.f32.mrb[0].mxu0
        %v585 = vadd.f32 0.0, %v584
        %v586 = vpop.f32.mrb[0].mxu0
        %v587 = vpop.f32.mrb[0].mxu0
        %v588 = vadd.f32 0.0, %v587
        %v589 = vpop.f32.mrb[0].mxu0
        %590 = vmatprep.mubr.bf16.mxu0 0
        %591 = vmatmul.mubr.bf16.gmra.mrb[0].mxu0 %v473
        %v592 = vpop.f32.mrb[0].mxu0
        %v593 = vadd.f32 0.0, %v592
        %v594 = vpop.f32.mrb[0].mxu0
        %v595 = vpop.f32.mrb[0].mxu0
        %v596 = vadd.f32 0.0, %v595
        %v597 = vpop.f32.mrb[0].mxu0
        %598 = vmatprep.mubr.bf16.mxu0 0
        %599 = vmatmul.mubr.bf16.gmra.mrb[0].mxu0 %v474
        %v600 = vpop.f32.mrb[0].mxu0
        %v601 = vadd.f32 0.0, %v600
        %v602 = vpop.f32.mrb[0].mxu0
        %v603 = vpop.f32.mrb[0].mxu0
        %v604 = vadd.f32 0.0, %v603
        %v605 = vpop.f32.mrb[0].mxu0
        %606 = vmatprep.mubr.bf16.mxu0 0
        %607 = vmatmul.mubr.bf16.gmra.mrb[0].mxu0 %v475
        %v608 = vpop.f32.mrb[0].mxu0
        %v609 = vadd.f32 0.0, %v608
        %v610 = vpop.f32.mrb[0].mxu0
        %v611 = vpop.f32.mrb[0].mxu0
        %v612 = vadd.f32 0.0, %v611
        %v613 = vpop.f32.mrb[0].mxu0
        %614 = vmatprep.mubr.bf16.mxu0 0
        %615 = vmatmul.mubr.bf16.gmra.mrb[0].mxu0 %v476
        %v616 = vpop.f32.mrb[0].mxu0
        %v617 = vadd.f32 0.0, %v616
        %v618 = vpop.f32.mrb[0].mxu0
        %v619 = vpop.f32.mrb[0].mxu0
        %v620 = vadd.f32 0.0, %v619
        %v621 = vpop.f32.mrb[0].mxu0
        %622 = vmatprep.mubr.bf16.mxu0 0
        %623 = vmatmul.mubr.bf16.gmra.mrb[0].mxu0 %v477
        %v624 = vpop.f32.mrb[0].mxu0
        %v625 = vadd.f32 0.0, %v624
        %v626 = vpop.f32.mrb[0].mxu0
        %v627 = vpop.f32.mrb[0].mxu0
        %v628 = vadd.f32 0.0, %v627
        %v629 = vpop.f32.mrb[0].mxu0
        %630 = vdwg.mxu0
        %v631 = vadd.f32 %v406, %v569
        %v632 = vadd.f32 %v407, %v572
        %v633 = vadd.f32 %v408, %v577
        %v634 = vadd.f32 %v409, %v580
        %v635 = vadd.f32 %v410, %v585
        %v636 = vadd.f32 %v411, %v588
        %v637 = vadd.f32 %v412, %v593
        %v638 = vadd.f32 %v413, %v596
        %v639 = vadd.f32 %v414, %v601
        %v640 = vadd.f32 %v415, %v604
        %v641 = vadd.f32 %v416, %v609
        %v642 = vadd.f32 %v417, %v612
        %v643 = vadd.f32 %v418, %v617
        %v644 = vadd.f32 %v419, %v620
        %v645 = vadd.f32 %v420, %v625
        %v646 = vadd.f32 %v421, %v628
        %647 = vst [vmem:[#allocation2] sm:$0xff] %v631
        %648 = vst [vmem:[#allocation2 + $0x8] sm:$0xff] %v632
        %649 = vst [vmem:[#allocation2 + $0x10] sm:$0xff] %v633
        %650 = vst [vmem:[#allocation2 + $0x18] sm:$0xff] %v634
        %651 = vst [vmem:[#allocation2 + $0x20] sm:$0xff] %v635
        %652 = vst [vmem:[#allocation2 + $0x28] sm:$0xff] %v636
        %653 = vst [vmem:[#allocation2 + $0x30] sm:$0xff] %v637
        %654 = vst [vmem:[#allocation2 + $0x38] sm:$0xff] %v638
        %655 = vst [vmem:[#allocation2 + $0x40] sm:$0xff] %v639
        %656 = vst [vmem:[#allocation2 + $0x48] sm:$0xff] %v640
        %657 = vst [vmem:[#allocation2 + $0x50] sm:$0xff] %v641
        %658 = vst [vmem:[#allocation2 + $0x58] sm:$0xff] %v642
        %659 = vst [vmem:[#allocation2 + $0x60] sm:$0xff] %v643
        %660 = vst [vmem:[#allocation2 + $0x68] sm:$0xff] %v644
        %661 = vst [vmem:[#allocation2 + $0x70] sm:$0xff] %v645
        %662 = vst [vmem:[#allocation2 + $0x78] sm:$0xff] %v646
        %p663 = scmp.eq.s32.totalorder %s21, 1
        // Predicated region
        $region78: #{vq_vae_forward.31} parent=68 // pred_check
          %p664 = pneg %p663
        $region79: #{vq_vae_forward.31} parent=68 // pred_check_branch
          %666 = sbr.rel (%p664) target = $region81
        $region80: #{vq_vae_forward.31} parent=68 // pred_region
          %v667 = vld [vmem:[#allocation2] sm:$0xff]
          %v668 = vld [vmem:[#allocation2 + $0x8] sm:$0xff]
          %v669 = vld [vmem:[#allocation2 + $0x10] sm:$0xff]
          %v670 = vld [vmem:[#allocation2 + $0x18] sm:$0xff]
          %v671 = vld [vmem:[#allocation2 + $0x20] sm:$0xff]
          %v672 = vld [vmem:[#allocation2 + $0x28] sm:$0xff]
          %v673 = vld [vmem:[#allocation2 + $0x30] sm:$0xff]
          %v674 = vld [vmem:[#allocation2 + $0x38] sm:$0xff]
          %v675 = vld [vmem:[#allocation2 + $0x40] sm:$0xff]
          %v676 = vld [vmem:[#allocation2 + $0x48] sm:$0xff]
          %v677 = vld [vmem:[#allocation2 + $0x50] sm:$0xff]
          %v678 = vld [vmem:[#allocation2 + $0x58] sm:$0xff]
          %v679 = vld [vmem:[#allocation2 + $0x60] sm:$0xff]
          %v680 = vld [vmem:[#allocation2 + $0x68] sm:$0xff]
          %v681 = vld [vmem:[#allocation2 + $0x70] sm:$0xff]
          %v682 = vld [vmem:[#allocation2 + $0x78] sm:$0xff]
          %v683 = vld [vmem:[%s343] sm:$0x1]
          %v685 = vlaneseq
          %v686 = vshrl.u32 %v685, 7
          %v687 = vsub.s32 0, %v686
          %v688 = vrot.slane %v683, %v687
          %v690 = vadd.f32 %v667, %v688
          %v691 = vadd.f32 %v668, %v688
          %v692 = vadd.f32 %v669, %v688
          %v693 = vadd.f32 %v670, %v688
          %v694 = vadd.f32 %v671, %v688
          %v695 = vadd.f32 %v672, %v688
          %v696 = vadd.f32 %v673, %v688
          %v697 = vadd.f32 %v674, %v688
          %v698 = vadd.f32 %v675, %v688
          %v699 = vadd.f32 %v676, %v688
          %v700 = vadd.f32 %v677, %v688
          %v701 = vadd.f32 %v678, %v688
          %v702 = vadd.f32 %v679, %v688
          %v703 = vadd.f32 %v680, %v688
          %v704 = vadd.f32 %v681, %v688
          %v705 = vadd.f32 %v682, %v688
          %v706 = vpack.c.bf16 %v691, %v690
          %v707 = vpack.c.bf16 %v693, %v692
          %v708 = vpack.c.bf16 %v695, %v694
          %v709 = vpack.c.bf16 %v697, %v696
          %v710 = vpack.c.bf16 %v699, %v698
          %v711 = vpack.c.bf16 %v701, %v700
          %v712 = vpack.c.bf16 %v703, %v702
          %v713 = vpack.c.bf16 %v705, %v704
          %v722 = vunpack.c.l.b16 %v706
          %v723 = vunpack.c.h.b16 %v706
          %v724 = vunpack.c.l.b16 %v707
          %v725 = vunpack.c.h.b16 %v707
          %v726 = vunpack.c.l.b16 %v708
          %v727 = vunpack.c.h.b16 %v708
          %v728 = vunpack.c.l.b16 %v709
          %v729 = vunpack.c.h.b16 %v709
          %v730 = vunpack.c.l.b16 %v710
          %v731 = vunpack.c.h.b16 %v710
          %v732 = vunpack.c.l.b16 %v711
          %v733 = vunpack.c.h.b16 %v711
          %v734 = vunpack.c.l.b16 %v712
          %v735 = vunpack.c.h.b16 %v712
          %v736 = vunpack.c.l.b16 %v713
          %v737 = vunpack.c.h.b16 %v713
          %v738 = vpack.c.b16 %v722, %v722
          %v739 = vpack.c.b16 %v723, %v723
          %v740 = vpack.c.b16 %v724, %v724
          %v741 = vpack.c.b16 %v725, %v725
          %v742 = vpack.c.b16 %v726, %v726
          %v743 = vpack.c.b16 %v727, %v727
          %v744 = vpack.c.b16 %v728, %v728
          %v745 = vpack.c.b16 %v729, %v729
          %v746 = vpack.c.b16 %v730, %v730
          %v747 = vpack.c.b16 %v731, %v731
          %v748 = vpack.c.b16 %v732, %v732
          %v749 = vpack.c.b16 %v733, %v733
          %v750 = vpack.c.b16 %v734, %v734
          %v751 = vpack.c.b16 %v735, %v735
          %v752 = vpack.c.b16 %v736, %v736
          %v753 = vpack.c.b16 %v737, %v737
          %770 = vst [vmem:[%s351] sm:$0xf] %v738
          %771 = vst [vmem:[%s351 + $0x4] sm:$0xf] %v739
          %772 = vst [vmem:[%s351 + $0x8] sm:$0xf] %v740
          %773 = vst [vmem:[%s351 + $0xc] sm:$0xf] %v741
          %774 = vst [vmem:[%s351 + $0x10] sm:$0xf] %v742
          %775 = vst [vmem:[%s351 + $0x14] sm:$0xf] %v743
          %776 = vst [vmem:[%s351 + $0x18] sm:$0xf] %v744
          %777 = vst [vmem:[%s351 + $0x1c] sm:$0xf] %v745
          %778 = vst [vmem:[%s351 + $0x20] sm:$0xf] %v746
          %779 = vst [vmem:[%s351 + $0x24] sm:$0xf] %v747
          %780 = vst [vmem:[%s351 + $0x28] sm:$0xf] %v748
          %781 = vst [vmem:[%s351 + $0x2c] sm:$0xf] %v749
          %782 = vst [vmem:[%s351 + $0x30] sm:$0xf] %v750
          %783 = vst [vmem:[%s351 + $0x34] sm:$0xf] %v751
          %784 = vst [vmem:[%s351 + $0x38] sm:$0xf] %v752
          %785 = vst [vmem:[%s351 + $0x3c] sm:$0xf] %v753
        $region81: #{vq_vae_forward.31} parent=68 // pred_fallthru
          _
        %s786 = smul.u32 16, %s19
        %p787 = scmp.lt.s32.totalorder %s786, 15
        %s788 = scalar_select %p787, %s786, 15
        %p789 = scmp.lt.s32.totalorder %s20, 0
        %s790 = scalar_select %p789, %s20, 0
        %s791 = sadd.s32 %s790, %s788
        %s792 = smul.addr %s791, 4
        %s793 = scalar_lea.vmem %s3, %s792
        // Predicated region
        $region82: #{vq_vae_forward.31} parent=68 // pred_check
          %p794 = pneg %p135
        $region83: #{vq_vae_forward.31} parent=68 // pred_check_branch
          %796 = sbr.rel (%p794) target = $region85
        $region84: #{vq_vae_forward.31} parent=68 // pred_region
          %s797 = smul.u32 16, %s19
        $region85: #{vq_vae_forward.31} parent=68 // pred_fallthru
          _
        // Predicated region
        $region86: #{vq_vae_forward.31} parent=68 // pred_check
          %p798 = pneg %p135
        $region87: #{vq_vae_forward.31} parent=68 // pred_check_branch
          %800 = sbr.rel (%p798) target = $region89
        $region88: #{vq_vae_forward.31} parent=68 // pred_region
          %s801 = smul.u32 16, %s19
          %p802 = scmp.lt.s32.totalorder %s801, 15
          %s803 = scalar_select %p802, %s801, 15
          %p804 = scmp.lt.s32.totalorder %s20, 0
          %s805 = scalar_select %p804, %s20, 0
          %s806 = sadd.s32 %s805, %s803
          %s807 = smul.addr %s806, 4
          %s808 = scalar_lea.vmem %s3, %s807
        $region89: #{vq_vae_forward.31} parent=68 // pred_fallthru
          _
      $region69: #{vq_vae_forward.31} parent=5 // pred_fallthru
        _
      %p809 = scmp.le.s32.totalorder 2, %s9
      // Predicated region
      $region90: #{vq_vae_forward.31} parent=5 // pred_check
        %p810 = pneg %p809
      $region91: #{vq_vae_forward.31} parent=5 // pred_check_branch
        %812 = sbr.rel (%p810) target = $region93
      $region92: #{vq_vae_forward.31} parent=5 // pred_region
        %s813 = ssub.s32 %s9, 2
      $region93: #{vq_vae_forward.31} parent=5 // pred_fallthru
        _
    $region6: #{vq_vae_forward.31} parent=1 // loop_footer
      %s13 = sadd.s32 1, %s9
    $region7: #{vq_vae_forward.31} parent=1 // loop_footer_branch
      %8 = sbr.rel target = $region3
    $region8: #{vq_vae_forward.31} parent=1 // loop_exit
      _

</llo_original>
